<compile_context>
chip_gen: v6e
topology: v6e:2x2x1
jax: 0.10.0
libtpu: 0.0.40
codegen_flags: <defaults>
</compile_context>

<pallas_src>
import functools

import jax
import jax.numpy as jnp
from jax import lax
from jax.experimental import pallas as pl
from jax.experimental.pallas import tpu as pltpu

# ---------------- small BERT config ----------------
VOCAB = 64
MAX_POS = 32
TYPE_VOCAB = 2
HIDDEN = 128
NUM_HEADS = 4
HEAD_DIM = HIDDEN // NUM_HEADS
INTERMEDIATE = 256
NUM_LAYERS = 2
LN_EPS = 1e-12


# ---------------- in-kernel helpers (all f32) ----------------
def _layernorm(x, gamma, beta):
    mu = jnp.mean(x, axis=-1, keepdims=True)
    var = jnp.mean(jnp.square(x - mu), axis=-1, keepdims=True)
    return (x - mu) * lax.rsqrt(var + LN_EPS) * gamma + beta


def _gelu(x):
    # TODO(synk): HF BERT default act is exact (erf) GELU; tanh approximation used for robust TPU lowering.
    return 0.5 * x * (1.0 + jnp.tanh(0.7978845608028654 * (x + 0.044715 * x * x * x)))


# ---------------- fused encoder kernel ----------------
def fused_bert_kernel(emb_ref, mask_ref, eg_ref, eb_ref,
                      wqkv_ref, bqkv_ref, wo_ref, bo_ref,
                      ln1g_ref, ln1b_ref, w1_ref, b1_ref,
                      w2_ref, b2_ref, ln2g_ref, ln2b_ref,
                      o_ref, *, batch, seq):
    l = pl.program_id(0)

    # Layer 0: initialize the resident hidden state with the embedding LayerNorm.
    @pl.when(l == 0)
    def _():
        o_ref[...] = _layernorm(emb_ref[...].astype(jnp.float32),
                                eg_ref[...], eb_ref[...])

    x = o_ref[...]                                       # [B*S, H] f32, VMEM-resident
    xb = x.astype(jnp.bfloat16)

    # Fused QKV projection on the full [B*S, H] slab (bf16 MXU, f32 accumulate).
    qkv = jnp.dot(xb, wqkv_ref[0], preferred_element_type=jnp.float32) + bqkv_ref[0]
    q = qkv[:, :HIDDEN]
    k = qkv[:, HIDDEN:2 * HIDDEN]
    v = qkv[:, 2 * HIDDEN:]

    wo = wo_ref[0]                                       # [H, H] bf16
    scale = 1.0 / (HEAD_DIM ** 0.5)

    batch_rows = []
    for b in range(batch):                               # static unroll over batch
        rs = slice(b * seq, (b + 1) * seq)
        qb, kb, vb = q[rs], k[rs], v[rs]
        mb = mask_ref[b]                                 # [S, S] additive bias (0 / -10000)
        acc = jnp.zeros((seq, HIDDEN), jnp.float32)
        for h in range(NUM_HEADS):                       # static unroll over heads
            hs = slice(h * HEAD_DIM, (h + 1) * HEAD_DIM)
            qh = qb[:, hs].astype(jnp.bfloat16)
            kh = kb[:, hs].astype(jnp.bfloat16)
            vh = vb[:, hs].astype(jnp.bfloat16)
            # Q @ K^T as a contraction (no explicit transpose of a 32-lane slice).
            s = lax.dot_general(qh, kh, (((1,), (1,)), ((), ())),
                                preferred_element_type=jnp.float32) * scale + mb
            s = s - jnp.max(s, axis=-1, keepdims=True)
            p = jnp.exp(s)
            p = p * pl.reciprocal(jnp.sum(p, axis=-1, keepdims=True), approx=True)
            head = jnp.dot(p.astype(jnp.bfloat16), vh,
                           preferred_element_type=jnp.float32)      # [S, HD]
            # Fold output projection per head: no lane concat, work stays on the MXU.
            acc = acc + jnp.dot(head.astype(jnp.bfloat16), wo[hs, :],
                                preferred_element_type=jnp.float32)  # [S, H]
        batch_rows.append(acc)
    attn_out = jnp.concatenate(batch_rows, axis=0) + bo_ref[0]       # sublane (row) concat

    x1 = _layernorm(x + attn_out, ln1g_ref[0], ln1b_ref[0])

    h1 = jnp.dot(x1.astype(jnp.bfloat16), w1_ref[0],
                 preferred_element_type=jnp.float32) + b1_ref[0]     # [B*S, I]
    g = _gelu(h1)
    ffn = jnp.dot(g.astype(jnp.bfloat16), w2_ref[0],
                  preferred_element_type=jnp.float32) + b2_ref[0]    # [B*S, H]

    # Output block index is constant over the layer axis -> stays resident in VMEM.
    o_ref[...] = _layernorm(x1 + ffn, ln2g_ref[0], ln2b_ref[0])


# ---------------- wrapper ----------------
def _bert_forward(params, input_ids, token_type_ids, attention_mask):
    """Equivalent of BertModel(...)[0] -> last_hidden_state [B, S, H] (eval path)."""
    B, S = input_ids.shape
    H, I, L = HIDDEN, INTERMEDIATE, NUM_LAYERS

    # Embedding gathers (plain JAX glue), summed and flattened to [B*S, H].
    word = jnp.take(params['word_emb'], input_ids, axis=0)
    pos = params['pos_emb'][:S][None, :, :]
    typ = jnp.take(params['type_emb'], token_type_ids, axis=0)
    emb = (word + pos + typ).astype(jnp.float32).reshape(B * S, H)

    # HF-style extended attention mask, pre-broadcast to [B, S, S] additive bias.
    bias_row = (1.0 - attention_mask.astype(jnp.float32)) * -10000.0
    mask_bias = jnp.broadcast_to(bias_row[:, None, :], (B, S, S))

    # Matmul weights go to the kernel in bf16 (halves weight DMA, bf16-native MXU);
    # biases and LayerNorm params stay f32.
    wqkv = params['wqkv'].astype(jnp.bfloat16)
    wo = params['wo'].astype(jnp.bfloat16)
    w1 = params['w1'].astype(jnp.bfloat16)
    w2 = params['w2'].astype(jnp.bfloat16)

    def stat(shape):          # spec for arrays that do not depend on the layer index
        nd = len(shape)
        return pl.BlockSpec(tuple(shape), lambda l, _n=nd: (0,) * _n)

    def per_layer(shape):     # spec for [L, ...] stacked per-layer arrays
        nd = len(shape)
        return pl.BlockSpec((1,) + tuple(shape[1:]),
                            lambda l, _n=nd: (l,) + (0,) * (_n - 1))

    in_specs = [
        stat(emb.shape),                    # emb
        stat(mask_bias.shape),              # mask bias
        stat(params['emb_ln_g'].shape),     # embed LN gamma
        stat(params['emb_ln_b'].shape),     # embed LN beta
        per_layer(wqkv.shape), per_layer(params['bqkv'].shape),
        per_layer(wo.shape), per_layer(params['bo'].shape),
        per_layer(params['ln1_g'].shape), per_layer(params['ln1_b'].shape),
        per_layer(w1.shape), per_layer(params['b1'].shape),
        per_layer(w2.shape), per_layer(params['b2'].shape),
        per_layer(params['ln2_g'].shape), per_layer(params['ln2_b'].shape),
    ]

    out = pl.pallas_call(
        functools.partial(fused_bert_kernel, batch=B, seq=S),
        out_shape=jax.ShapeDtypeStruct((B * S, H), jnp.float32),
        grid=(L,),
        in_specs=in_specs,
        out_specs=pl.BlockSpec((B * S, H), lambda l: (0, 0)),
        compiler_params=pltpu.CompilerParams(
            dimension_semantics=("arbitrary",)),   # x carried across layer axis
    )(emb, mask_bias, params['emb_ln_g'], params['emb_ln_b'],
      wqkv, params['bqkv'], wo, params['bo'],
      params['ln1_g'], params['ln1_b'],
      w1, params['b1'], w2, params['b2'],
      params['ln2_g'], params['ln2_b'])

    return out.reshape(B, S, H)


bert_forward = jax.jit(_bert_forward)


# ---------------- deterministic parameter init (stacked per-layer weights) ----------------
def init_params(key):
    keys = iter(jax.random.split(key, 64))

    def w(shape, std=0.02):
        return (std * jax.random.normal(next(keys), shape)).astype(jnp.float32)

    L, H, I = NUM_LAYERS, HIDDEN, INTERMEDIATE
    ones = lambda s: jnp.ones(s, jnp.float32)
    zeros = lambda s: jnp.zeros(s, jnp.float32)

    return {
        'word_emb': w((VOCAB, H)),
        'pos_emb': w((MAX_POS, H)),
        'type_emb': w((TYPE_VOCAB, H)),
        'emb_ln_g': ones((1, H)),
        'emb_ln_b': zeros((1, H)),
        # stacked per-layer weights [L, ...]
        'wqkv': w((L, H, 3 * H)), 'bqkv': zeros((L, 1, 3 * H)),
        'wo': w((L, H, H)), 'bo': zeros((L, 1, H)),
        'ln1_g': ones((L, 1, H)), 'ln1_b': zeros((L, 1, H)),
        'w1': w((L, H, I)), 'b1': zeros((L, 1, I)),
        'w2': w((L, I, H)), 'b2': zeros((L, 1, H)),
        'ln2_g': ones((L, 1, H)), 'ln2_b': zeros((L, 1, H)),
    }


if __name__ == "__main__":
    key = jax.random.PRNGKey(0)
    pk, ik, tk = jax.random.split(key, 3)
    params = init_params(pk)

    B, S = 2, 8
    input_ids = jax.random.randint(ik, (B, S), 0, VOCAB, dtype=jnp.int32)
    token_type_ids = jax.random.randint(tk, (B, S), 0, TYPE_VOCAB, dtype=jnp.int32)
    # last two tokens are padding -> masked out
    attention_mask = jnp.ones((B, S), jnp.int32).at[:, S - 2:].set(0)

    top_vec = bert_forward(params, input_ids, token_type_ids, attention_mask)
    jax.block_until_ready(top_vec)
    assert top_vec.shape == (B, S, HIDDEN) and top_vec.dtype == jnp.float32
    assert bool(jnp.all(jnp.isfinite(top_vec)))
    print("KERNEL_OK")
</pallas_src>

<mosaic_0001>
module attributes {stable_mosaic.version = 11 : i64} {
  func.func @fused_bert_kernel(%arg0: i32, %arg1: memref<16x128xf32, #tpu.memory_space<vmem>>, %arg2: memref<2x8x8xf32, #tpu.memory_space<vmem>>, %arg3: memref<1x128xf32, #tpu.memory_space<vmem>>, %arg4: memref<1x128xf32, #tpu.memory_space<vmem>>, %arg5: memref<1x128x384xbf16, #tpu.memory_space<vmem>>, %arg6: memref<1x1x384xf32, #tpu.memory_space<vmem>>, %arg7: memref<1x128x128xbf16, #tpu.memory_space<vmem>>, %arg8: memref<1x1x128xf32, #tpu.memory_space<vmem>>, %arg9: memref<1x1x128xf32, #tpu.memory_space<vmem>>, %arg10: memref<1x1x128xf32, #tpu.memory_space<vmem>>, %arg11: memref<1x128x256xbf16, #tpu.memory_space<vmem>>, %arg12: memref<1x1x256xf32, #tpu.memory_space<vmem>>, %arg13: memref<1x256x128xbf16, #tpu.memory_space<vmem>>, %arg14: memref<1x1x128xf32, #tpu.memory_space<vmem>>, %arg15: memref<1x1x128xf32, #tpu.memory_space<vmem>>, %arg16: memref<1x1x128xf32, #tpu.memory_space<vmem>>, %arg17: memref<16x128xf32, #tpu.memory_space<vmem>>) attributes {dimension_semantics = [#tpu.dimension_semantics<arbitrary>], iteration_bounds = array<i64: 2>, scalar_prefetch = 0 : i64, scratch_operands = 0 : i64, tpu.core_type = #tpu.core_type<tc>, window_params = [{pipeline_mode = #tpu.pipeline_mode<synchronous>, transform_indices = @transform_0, window_bounds = array<i64: 16, 128>}, {pipeline_mode = #tpu.pipeline_mode<synchronous>, transform_indices = @transform_1, window_bounds = array<i64: 2, 8, 8>}, {pipeline_mode = #tpu.pipeline_mode<synchronous>, transform_indices = @transform_2, window_bounds = array<i64: 1, 128>}, {pipeline_mode = #tpu.pipeline_mode<synchronous>, transform_indices = @transform_3, window_bounds = array<i64: 1, 128>}, {transform_indices = @transform_4, window_bounds = array<i64: 1, 128, 384>}, {transform_indices = @transform_5, window_bounds = array<i64: 1, 1, 384>}, {transform_indices = @transform_6, window_bounds = array<i64: 1, 128, 128>}, {transform_indices = @transform_7, window_bounds = array<i64: 1, 1, 128>}, {transform_indices = @transform_8, window_bounds = array<i64: 1, 1, 128>}, {transform_indices = @transform_9, window_bounds = array<i64: 1, 1, 128>}, {transform_indices = @transform_10, window_bounds = array<i64: 1, 128, 256>}, {transform_indices = @transform_11, window_bounds = array<i64: 1, 1, 256>}, {transform_indices = @transform_12, window_bounds = array<i64: 1, 256, 128>}, {transform_indices = @transform_13, window_bounds = array<i64: 1, 1, 128>}, {transform_indices = @transform_14, window_bounds = array<i64: 1, 1, 128>}, {transform_indices = @transform_15, window_bounds = array<i64: 1, 1, 128>}, {pipeline_mode = #tpu.pipeline_mode<synchronous>, transform_indices = @transform_16, window_bounds = array<i64: 16, 128>}]} {
    %c0_i32 = arith.constant 0 : i32
    %0 = arith.cmpi eq, %arg0, %c0_i32 : i32
    %1 = arith.extui %0 : i1 to i32
    %c0_i32_0 = arith.constant 0 : i32
    %2 = arith.cmpi ne, %1, %c0_i32_0 : i32
    scf.if %2 {
      %c0_111 = arith.constant 0 : index
      %c0_112 = arith.constant 0 : index
      %326 = vector.load %arg1[%c0_111, %c0_112] : memref<16x128xf32, #tpu.memory_space<vmem>>, vector<16x128xf32>
      %c0_113 = arith.constant 0 : index
      %c0_114 = arith.constant 0 : index
      %327 = vector.load %arg3[%c0_113, %c0_114] : memref<1x128xf32, #tpu.memory_space<vmem>>, vector<1x128xf32>
      %c0_115 = arith.constant 0 : index
      %c0_116 = arith.constant 0 : index
      %328 = vector.load %arg4[%c0_115, %c0_116] : memref<1x128xf32, #tpu.memory_space<vmem>>, vector<1x128xf32>
      %cst_117 = arith.constant dense<0.000000e+00> : vector<16xf32>
      %329 = vector.multi_reduction <add>, %326, %cst_117 [1] : vector<16x128xf32> to vector<16xf32>
      %330 = vector.shape_cast %329 : vector<16xf32> to vector<16x1xf32>
      %cst_118 = arith.constant 1.280000e+02 : f32
      %331 = vector.broadcast %cst_118 : f32 to vector<16x1xf32>
      %332 = arith.divf %330, %331 : vector<16x1xf32>
      %333 = vector.broadcast %332 : vector<16x1xf32> to vector<16x128xf32>
      %334 = arith.subf %326, %333 : vector<16x128xf32>
      %335 = arith.mulf %334, %334 : vector<16x128xf32>
      %cst_119 = arith.constant dense<0.000000e+00> : vector<16xf32>
      %336 = vector.multi_reduction <add>, %335, %cst_119 [1] : vector<16x128xf32> to vector<16xf32>
      %337 = vector.shape_cast %336 : vector<16xf32> to vector<16x1xf32>
      %cst_120 = arith.constant 1.280000e+02 : f32
      %338 = vector.broadcast %cst_120 : f32 to vector<16x1xf32>
      %339 = arith.divf %337, %338 : vector<16x1xf32>
      %340 = vector.broadcast %332 : vector<16x1xf32> to vector<16x128xf32>
      %341 = arith.subf %326, %340 : vector<16x128xf32>
      %cst_121 = arith.constant 9.99999996E-13 : f32
      %342 = vector.broadcast %cst_121 : f32 to vector<16x1xf32>
      %343 = arith.addf %339, %342 : vector<16x1xf32>
      %344 = math.rsqrt %343 : vector<16x1xf32>
      %345 = vector.broadcast %344 : vector<16x1xf32> to vector<16x128xf32>
      %346 = arith.mulf %341, %345 : vector<16x128xf32>
      %347 = vector.broadcast %327 : vector<1x128xf32> to vector<16x128xf32>
      %348 = arith.mulf %346, %347 : vector<16x128xf32>
      %349 = vector.broadcast %328 : vector<1x128xf32> to vector<16x128xf32>
      %350 = arith.addf %348, %349 : vector<16x128xf32>
      %c0_122 = arith.constant 0 : index
      %c0_123 = arith.constant 0 : index
      %351 = vector.load %arg17[%c0_122, %c0_123] : memref<16x128xf32, #tpu.memory_space<vmem>>, vector<16x128xf32>
      tpu.vector_store %arg17[%c0_122, %c0_123], %350 {strides = array<i32>} : memref<16x128xf32, #tpu.memory_space<vmem>>, vector<16x128xf32>,
    } else {
    }
    %c0 = arith.constant 0 : index
    %c0_1 = arith.constant 0 : index
    %3 = vector.load %arg17[%c0, %c0_1] : memref<16x128xf32, #tpu.memory_space<vmem>>, vector<16x128xf32>
    %4 = arith.truncf %3 : vector<16x128xf32> to vector<16x128xbf16>
    %c0_2 = arith.constant 0 : index
    %c0_3 = arith.constant 0 : index
    %c0_4 = arith.constant 0 : index
    %5 = vector.load %arg5[%c0_2, %c0_3, %c0_4] : memref<1x128x384xbf16, #tpu.memory_space<vmem>>, vector<1x128x384xbf16>
    %6 = vector.shape_cast %5 : vector<1x128x384xbf16> to vector<128x384xbf16>
    %cst = arith.constant dense<0.000000e+00> : vector<16x384xf32>
    %7 = tpu.matmul %4, %6, %cst {dimension_numbers = #tpu.dot_dimension_numbers<[1], [0], [0], [1], [0, 0, 1, 1], [], []>} : vector<16x128xbf16>, vector<128x384xbf16>, vector<16x384xf32> -> vector<16x384xf32>
    %c0_5 = arith.constant 0 : index
    %c0_6 = arith.constant 0 : index
    %c0_7 = arith.constant 0 : index
    %8 = vector.load %arg6[%c0_5, %c0_6, %c0_7] : memref<1x1x384xf32, #tpu.memory_space<vmem>>, vector<1x1x384xf32>
    %9 = vector.shape_cast %8 : vector<1x1x384xf32> to vector<1x384xf32>
    %10 = vector.broadcast %9 : vector<1x384xf32> to vector<16x384xf32>
    %11 = arith.addf %7, %10 : vector<16x384xf32>
    %12 = vector.extract_strided_slice %11 {offsets = [0, 0], sizes = [16, 128], strides = [1, 1]} : vector<16x384xf32> to vector<16x128xf32>
    %13 = vector.extract_strided_slice %11 {offsets = [0, 128], sizes = [16, 128], strides = [1, 1]} : vector<16x384xf32> to vector<16x128xf32>
    %14 = vector.extract_strided_slice %11 {offsets = [0, 256], sizes = [16, 128], strides = [1, 1]} : vector<16x384xf32> to vector<16x128xf32>
    %c0_8 = arith.constant 0 : index
    %c0_9 = arith.constant 0 : index
    %c0_10 = arith.constant 0 : index
    %15 = vector.load %arg7[%c0_8, %c0_9, %c0_10] : memref<1x128x128xbf16, #tpu.memory_space<vmem>>, vector<1x128x128xbf16>
    %16 = vector.shape_cast %15 : vector<1x128x128xbf16> to vector<128x128xbf16>
    %17 = vector.extract_strided_slice %12 {offsets = [0, 0], sizes = [8, 128], strides = [1, 1]} : vector<16x128xf32> to vector<8x128xf32>
    %18 = vector.extract_strided_slice %13 {offsets = [0, 0], sizes = [8, 128], strides = [1, 1]} : vector<16x128xf32> to vector<8x128xf32>
    %19 = vector.extract_strided_slice %14 {offsets = [0, 0], sizes = [8, 128], strides = [1, 1]} : vector<16x128xf32> to vector<8x128xf32>
    %c0_11 = arith.constant 0 : index
    %c0_12 = arith.constant 0 : index
    %c0_13 = arith.constant 0 : index
    %20 = vector.load %arg2[%c0_11, %c0_12, %c0_13] : memref<2x8x8xf32, #tpu.memory_space<vmem>>, vector<1x8x8xf32>
    %21 = vector.shape_cast %20 : vector<1x8x8xf32> to vector<8x8xf32>
    %cst_14 = arith.constant 0.000000e+00 : f32
    %22 = vector.broadcast %cst_14 : f32 to vector<8x128xf32>
    %23 = vector.extract_strided_slice %17 {offsets = [0, 0], sizes = [8, 32], strides = [1, 1]} : vector<8x128xf32> to vector<8x32xf32>
    %24 = arith.truncf %23 : vector<8x32xf32> to vector<8x32xbf16>
    %25 = vector.extract_strided_slice %18 {offsets = [0, 0], sizes = [8, 32], strides = [1, 1]} : vector<8x128xf32> to vector<8x32xf32>
    %26 = arith.truncf %25 : vector<8x32xf32> to vector<8x32xbf16>
    %27 = vector.extract_strided_slice %19 {offsets = [0, 0], sizes = [8, 32], strides = [1, 1]} : vector<8x128xf32> to vector<8x32xf32>
    %28 = arith.truncf %27 : vector<8x32xf32> to vector<8x32xbf16>
    %cst_15 = arith.constant dense<0.000000e+00> : vector<8x8xf32>
    %29 = tpu.matmul %24, %26, %cst_15 {dimension_numbers = #tpu.dot_dimension_numbers<[1], [1], [0], [0], [0, 0, 1, 0], [], []>} : vector<8x32xbf16>, vector<8x32xbf16>, vector<8x8xf32> -> vector<8x8xf32>
    %cst_16 = arith.constant 0.176776692 : f32
    %30 = vector.broadcast %cst_16 : f32 to vector<8x8xf32>
    %31 = arith.mulf %29, %30 : vector<8x8xf32>
    %32 = arith.addf %31, %21 : vector<8x8xf32>
    %cst_17 = arith.constant dense<0xFF800000> : vector<8xf32>
    %33 = vector.multi_reduction <maximumf>, %32, %cst_17 [1] : vector<8x8xf32> to vector<8xf32>
    %34 = vector.shape_cast %33 : vector<8xf32> to vector<8x1xf32>
    %35 = vector.broadcast %34 : vector<8x1xf32> to vector<8x8xf32>
    %36 = arith.subf %32, %35 : vector<8x8xf32>
    %37 = math.exp %36 : vector<8x8xf32>
    %cst_18 = arith.constant dense<0.000000e+00> : vector<8xf32>
    %38 = vector.multi_reduction <add>, %37, %cst_18 [1] : vector<8x8xf32> to vector<8xf32>
    %39 = vector.shape_cast %38 : vector<8xf32> to vector<8x1xf32>
    %40 = tpu.reciprocal %39 {approx = true} : vector<8x1xf32> -> vector<8x1xf32>
    %41 = vector.broadcast %40 : vector<8x1xf32> to vector<8x8xf32>
    %42 = arith.mulf %37, %41 : vector<8x8xf32>
    %43 = arith.truncf %42 : vector<8x8xf32> to vector<8x8xbf16>
    %cst_19 = arith.constant dense<0.000000e+00> : vector<8x32xf32>
    %44 = tpu.matmul %43, %28, %cst_19 {dimension_numbers = #tpu.dot_dimension_numbers<[1], [0], [0], [1], [0, 0, 1, 1], [], []>} : vector<8x8xbf16>, vector<8x32xbf16>, vector<8x32xf32> -> vector<8x32xf32>
    %45 = arith.truncf %44 : vector<8x32xf32> to vector<8x32xbf16>
    %46 = vector.extract_strided_slice %16 {offsets = [0, 0], sizes = [32, 128], strides = [1, 1]} : vector<128x128xbf16> to vector<32x128xbf16>
    %cst_20 = arith.constant dense<0.000000e+00> : vector<8x128xf32>
    %47 = tpu.matmul %45, %46, %cst_20 {dimension_numbers = #tpu.dot_dimension_numbers<[1], [0], [0], [1], [0, 0, 1, 1], [], []>} : vector<8x32xbf16>, vector<32x128xbf16>, vector<8x128xf32> -> vector<8x128xf32>
    %48 = arith.addf %22, %47 : vector<8x128xf32>
    %49 = vector.extract_strided_slice %17 {offsets = [0, 32], sizes = [8, 32], strides = [1, 1]} : vector<8x128xf32> to vector<8x32xf32>
    %50 = arith.truncf %49 : vector<8x32xf32> to vector<8x32xbf16>
    %51 = vector.extract_strided_slice %18 {offsets = [0, 32], sizes = [8, 32], strides = [1, 1]} : vector<8x128xf32> to vector<8x32xf32>
    %52 = arith.truncf %51 : vector<8x32xf32> to vector<8x32xbf16>
    %53 = vector.extract_strided_slice %19 {offsets = [0, 32], sizes = [8, 32], strides = [1, 1]} : vector<8x128xf32> to vector<8x32xf32>
    %54 = arith.truncf %53 : vector<8x32xf32> to vector<8x32xbf16>
    %cst_21 = arith.constant dense<0.000000e+00> : vector<8x8xf32>
    %55 = tpu.matmul %50, %52, %cst_21 {dimension_numbers = #tpu.dot_dimension_numbers<[1], [1], [0], [0], [0, 0, 1, 0], [], []>} : vector<8x32xbf16>, vector<8x32xbf16>, vector<8x8xf32> -> vector<8x8xf32>
    %cst_22 = arith.constant 0.176776692 : f32
    %56 = vector.broadcast %cst_22 : f32 to vector<8x8xf32>
    %57 = arith.mulf %55, %56 : vector<8x8xf32>
    %58 = arith.addf %57, %21 : vector<8x8xf32>
    %cst_23 = arith.constant dense<0xFF800000> : vector<8xf32>
    %59 = vector.multi_reduction <maximumf>, %58, %cst_23 [1] : vector<8x8xf32> to vector<8xf32>
    %60 = vector.shape_cast %59 : vector<8xf32> to vector<8x1xf32>
    %61 = vector.broadcast %60 : vector<8x1xf32> to vector<8x8xf32>
    %62 = arith.subf %58, %61 : vector<8x8xf32>
    %63 = math.exp %62 : vector<8x8xf32>
    %cst_24 = arith.constant dense<0.000000e+00> : vector<8xf32>
    %64 = vector.multi_reduction <add>, %63, %cst_24 [1] : vector<8x8xf32> to vector<8xf32>
    %65 = vector.shape_cast %64 : vector<8xf32> to vector<8x1xf32>
    %66 = tpu.reciprocal %65 {approx = true} : vector<8x1xf32> -> vector<8x1xf32>
    %67 = vector.broadcast %66 : vector<8x1xf32> to vector<8x8xf32>
    %68 = arith.mulf %63, %67 : vector<8x8xf32>
    %69 = arith.truncf %68 : vector<8x8xf32> to vector<8x8xbf16>
    %cst_25 = arith.constant dense<0.000000e+00> : vector<8x32xf32>
    %70 = tpu.matmul %69, %54, %cst_25 {dimension_numbers = #tpu.dot_dimension_numbers<[1], [0], [0], [1], [0, 0, 1, 1], [], []>} : vector<8x8xbf16>, vector<8x32xbf16>, vector<8x32xf32> -> vector<8x32xf32>
    %71 = arith.truncf %70 : vector<8x32xf32> to vector<8x32xbf16>
    %72 = vector.extract_strided_slice %16 {offsets = [32, 0], sizes = [32, 128], strides = [1, 1]} : vector<128x128xbf16> to vector<32x128xbf16>
    %cst_26 = arith.constant dense<0.000000e+00> : vector<8x128xf32>
    %73 = tpu.matmul %71, %72, %cst_26 {dimension_numbers = #tpu.dot_dimension_numbers<[1], [0], [0], [1], [0, 0, 1, 1], [], []>} : vector<8x32xbf16>, vector<32x128xbf16>, vector<8x128xf32> -> vector<8x128xf32>
    %74 = arith.addf %48, %73 : vector<8x128xf32>
    %75 = vector.extract_strided_slice %17 {offsets = [0, 64], sizes = [8, 32], strides = [1, 1]} : vector<8x128xf32> to vector<8x32xf32>
    %76 = arith.truncf %75 : vector<8x32xf32> to vector<8x32xbf16>
    %77 = vector.extract_strided_slice %18 {offsets = [0, 64], sizes = [8, 32], strides = [1, 1]} : vector<8x128xf32> to vector<8x32xf32>
    %78 = arith.truncf %77 : vector<8x32xf32> to vector<8x32xbf16>
    %79 = vector.extract_strided_slice %19 {offsets = [0, 64], sizes = [8, 32], strides = [1, 1]} : vector<8x128xf32> to vector<8x32xf32>
    %80 = arith.truncf %79 : vector<8x32xf32> to vector<8x32xbf16>
    %cst_27 = arith.constant dense<0.000000e+00> : vector<8x8xf32>
    %81 = tpu.matmul %76, %78, %cst_27 {dimension_numbers = #tpu.dot_dimension_numbers<[1], [1], [0], [0], [0, 0, 1, 0], [], []>} : vector<8x32xbf16>, vector<8x32xbf16>, vector<8x8xf32> -> vector<8x8xf32>
    %cst_28 = arith.constant 0.176776692 : f32
    %82 = vector.broadcast %cst_28 : f32 to vector<8x8xf32>
    %83 = arith.mulf %81, %82 : vector<8x8xf32>
    %84 = arith.addf %83, %21 : vector<8x8xf32>
    %cst_29 = arith.constant dense<0xFF800000> : vector<8xf32>
    %85 = vector.multi_reduction <maximumf>, %84, %cst_29 [1] : vector<8x8xf32> to vector<8xf32>
    %86 = vector.shape_cast %85 : vector<8xf32> to vector<8x1xf32>
    %87 = vector.broadcast %86 : vector<8x1xf32> to vector<8x8xf32>
    %88 = arith.subf %84, %87 : vector<8x8xf32>
    %89 = math.exp %88 : vector<8x8xf32>
    %cst_30 = arith.constant dense<0.000000e+00> : vector<8xf32>
    %90 = vector.multi_reduction <add>, %89, %cst_30 [1] : vector<8x8xf32> to vector<8xf32>
    %91 = vector.shape_cast %90 : vector<8xf32> to vector<8x1xf32>
    %92 = tpu.reciprocal %91 {approx = true} : vector<8x1xf32> -> vector<8x1xf32>
    %93 = vector.broadcast %92 : vector<8x1xf32> to vector<8x8xf32>
    %94 = arith.mulf %89, %93 : vector<8x8xf32>
    %95 = arith.truncf %94 : vector<8x8xf32> to vector<8x8xbf16>
    %cst_31 = arith.constant dense<0.000000e+00> : vector<8x32xf32>
    %96 = tpu.matmul %95, %80, %cst_31 {dimension_numbers = #tpu.dot_dimension_numbers<[1], [0], [0], [1], [0, 0, 1, 1], [], []>} : vector<8x8xbf16>, vector<8x32xbf16>, vector<8x32xf32> -> vector<8x32xf32>
    %97 = arith.truncf %96 : vector<8x32xf32> to vector<8x32xbf16>
    %98 = vector.extract_strided_slice %16 {offsets = [64, 0], sizes = [32, 128], strides = [1, 1]} : vector<128x128xbf16> to vector<32x128xbf16>
    %cst_32 = arith.constant dense<0.000000e+00> : vector<8x128xf32>
    %99 = tpu.matmul %97, %98, %cst_32 {dimension_numbers = #tpu.dot_dimension_numbers<[1], [0], [0], [1], [0, 0, 1, 1], [], []>} : vector<8x32xbf16>, vector<32x128xbf16>, vector<8x128xf32> -> vector<8x128xf32>
    %100 = arith.addf %74, %99 : vector<8x128xf32>
    %101 = vector.extract_strided_slice %17 {offsets = [0, 96], sizes = [8, 32], strides = [1, 1]} : vector<8x128xf32> to vector<8x32xf32>
    %102 = arith.truncf %101 : vector<8x32xf32> to vector<8x32xbf16>
    %103 = vector.extract_strided_slice %18 {offsets = [0, 96], sizes = [8, 32], strides = [1, 1]} : vector<8x128xf32> to vector<8x32xf32>
    %104 = arith.truncf %103 : vector<8x32xf32> to vector<8x32xbf16>
    %105 = vector.extract_strided_slice %19 {offsets = [0, 96], sizes = [8, 32], strides = [1, 1]} : vector<8x128xf32> to vector<8x32xf32>
    %106 = arith.truncf %105 : vector<8x32xf32> to vector<8x32xbf16>
    %cst_33 = arith.constant dense<0.000000e+00> : vector<8x8xf32>
    %107 = tpu.matmul %102, %104, %cst_33 {dimension_numbers = #tpu.dot_dimension_numbers<[1], [1], [0], [0], [0, 0, 1, 0], [], []>} : vector<8x32xbf16>, vector<8x32xbf16>, vector<8x8xf32> -> vector<8x8xf32>
    %cst_34 = arith.constant 0.176776692 : f32
    %108 = vector.broadcast %cst_34 : f32 to vector<8x8xf32>
    %109 = arith.mulf %107, %108 : vector<8x8xf32>
    %110 = arith.addf %109, %21 : vector<8x8xf32>
    %cst_35 = arith.constant dense<0xFF800000> : vector<8xf32>
    %111 = vector.multi_reduction <maximumf>, %110, %cst_35 [1] : vector<8x8xf32> to vector<8xf32>
    %112 = vector.shape_cast %111 : vector<8xf32> to vector<8x1xf32>
    %113 = vector.broadcast %112 : vector<8x1xf32> to vector<8x8xf32>
    %114 = arith.subf %110, %113 : vector<8x8xf32>
    %115 = math.exp %114 : vector<8x8xf32>
    %cst_36 = arith.constant dense<0.000000e+00> : vector<8xf32>
    %116 = vector.multi_reduction <add>, %115, %cst_36 [1] : vector<8x8xf32> to vector<8xf32>
    %117 = vector.shape_cast %116 : vector<8xf32> to vector<8x1xf32>
    %118 = tpu.reciprocal %117 {approx = true} : vector<8x1xf32> -> vector<8x1xf32>
    %119 = vector.broadcast %118 : vector<8x1xf32> to vector<8x8xf32>
    %120 = arith.mulf %115, %119 : vector<8x8xf32>
    %121 = arith.truncf %120 : vector<8x8xf32> to vector<8x8xbf16>
    %cst_37 = arith.constant dense<0.000000e+00> : vector<8x32xf32>
    %122 = tpu.matmul %121, %106, %cst_37 {dimension_numbers = #tpu.dot_dimension_numbers<[1], [0], [0], [1], [0, 0, 1, 1], [], []>} : vector<8x8xbf16>, vector<8x32xbf16>, vector<8x32xf32> -> vector<8x32xf32>
    %123 = arith.truncf %122 : vector<8x32xf32> to vector<8x32xbf16>
    %124 = vector.extract_strided_slice %16 {offsets = [96, 0], sizes = [32, 128], strides = [1, 1]} : vector<128x128xbf16> to vector<32x128xbf16>
    %cst_38 = arith.constant dense<0.000000e+00> : vector<8x128xf32>
    %125 = tpu.matmul %123, %124, %cst_38 {dimension_numbers = #tpu.dot_dimension_numbers<[1], [0], [0], [1], [0, 0, 1, 1], [], []>} : vector<8x32xbf16>, vector<32x128xbf16>, vector<8x128xf32> -> vector<8x128xf32>
    %126 = arith.addf %100, %125 : vector<8x128xf32>
    %127 = vector.extract_strided_slice %12 {offsets = [8, 0], sizes = [8, 128], strides = [1, 1]} : vector<16x128xf32> to vector<8x128xf32>
    %128 = vector.extract_strided_slice %13 {offsets = [8, 0], sizes = [8, 128], strides = [1, 1]} : vector<16x128xf32> to vector<8x128xf32>
    %129 = vector.extract_strided_slice %14 {offsets = [8, 0], sizes = [8, 128], strides = [1, 1]} : vector<16x128xf32> to vector<8x128xf32>
    %c1 = arith.constant 1 : index
    %c0_39 = arith.constant 0 : index
    %c0_40 = arith.constant 0 : index
    %130 = vector.load %arg2[%c1, %c0_39, %c0_40] : memref<2x8x8xf32, #tpu.memory_space<vmem>>, vector<1x8x8xf32>
    %131 = vector.shape_cast %130 : vector<1x8x8xf32> to vector<8x8xf32>
    %cst_41 = arith.constant 0.000000e+00 : f32
    %132 = vector.broadcast %cst_41 : f32 to vector<8x128xf32>
    %133 = vector.extract_strided_slice %127 {offsets = [0, 0], sizes = [8, 32], strides = [1, 1]} : vector<8x128xf32> to vector<8x32xf32>
    %134 = arith.truncf %133 : vector<8x32xf32> to vector<8x32xbf16>
    %135 = vector.extract_strided_slice %128 {offsets = [0, 0], sizes = [8, 32], strides = [1, 1]} : vector<8x128xf32> to vector<8x32xf32>
    %136 = arith.truncf %135 : vector<8x32xf32> to vector<8x32xbf16>
    %137 = vector.extract_strided_slice %129 {offsets = [0, 0], sizes = [8, 32], strides = [1, 1]} : vector<8x128xf32> to vector<8x32xf32>
    %138 = arith.truncf %137 : vector<8x32xf32> to vector<8x32xbf16>
    %cst_42 = arith.constant dense<0.000000e+00> : vector<8x8xf32>
    %139 = tpu.matmul %134, %136, %cst_42 {dimension_numbers = #tpu.dot_dimension_numbers<[1], [1], [0], [0], [0, 0, 1, 0], [], []>} : vector<8x32xbf16>, vector<8x32xbf16>, vector<8x8xf32> -> vector<8x8xf32>
    %cst_43 = arith.constant 0.176776692 : f32
    %140 = vector.broadcast %cst_43 : f32 to vector<8x8xf32>
    %141 = arith.mulf %139, %140 : vector<8x8xf32>
    %142 = arith.addf %141, %131 : vector<8x8xf32>
    %cst_44 = arith.constant dense<0xFF800000> : vector<8xf32>
    %143 = vector.multi_reduction <maximumf>, %142, %cst_44 [1] : vector<8x8xf32> to vector<8xf32>
    %144 = vector.shape_cast %143 : vector<8xf32> to vector<8x1xf32>
    %145 = vector.broadcast %144 : vector<8x1xf32> to vector<8x8xf32>
    %146 = arith.subf %142, %145 : vector<8x8xf32>
    %147 = math.exp %146 : vector<8x8xf32>
    %cst_45 = arith.constant dense<0.000000e+00> : vector<8xf32>
    %148 = vector.multi_reduction <add>, %147, %cst_45 [1] : vector<8x8xf32> to vector<8xf32>
    %149 = vector.shape_cast %148 : vector<8xf32> to vector<8x1xf32>
    %150 = tpu.reciprocal %149 {approx = true} : vector<8x1xf32> -> vector<8x1xf32>
    %151 = vector.broadcast %150 : vector<8x1xf32> to vector<8x8xf32>
    %152 = arith.mulf %147, %151 : vector<8x8xf32>
    %153 = arith.truncf %152 : vector<8x8xf32> to vector<8x8xbf16>
    %cst_46 = arith.constant dense<0.000000e+00> : vector<8x32xf32>
    %154 = tpu.matmul %153, %138, %cst_46 {dimension_numbers = #tpu.dot_dimension_numbers<[1], [0], [0], [1], [0, 0, 1, 1], [], []>} : vector<8x8xbf16>, vector<8x32xbf16>, vector<8x32xf32> -> vector<8x32xf32>
    %155 = arith.truncf %154 : vector<8x32xf32> to vector<8x32xbf16>
    %156 = vector.extract_strided_slice %16 {offsets = [0, 0], sizes = [32, 128], strides = [1, 1]} : vector<128x128xbf16> to vector<32x128xbf16>
    %cst_47 = arith.constant dense<0.000000e+00> : vector<8x128xf32>
    %157 = tpu.matmul %155, %156, %cst_47 {dimension_numbers = #tpu.dot_dimension_numbers<[1], [0], [0], [1], [0, 0, 1, 1], [], []>} : vector<8x32xbf16>, vector<32x128xbf16>, vector<8x128xf32> -> vector<8x128xf32>
    %158 = arith.addf %132, %157 : vector<8x128xf32>
    %159 = vector.extract_strided_slice %127 {offsets = [0, 32], sizes = [8, 32], strides = [1, 1]} : vector<8x128xf32> to vector<8x32xf32>
    %160 = arith.truncf %159 : vector<8x32xf32> to vector<8x32xbf16>
    %161 = vector.extract_strided_slice %128 {offsets = [0, 32], sizes = [8, 32], strides = [1, 1]} : vector<8x128xf32> to vector<8x32xf32>
    %162 = arith.truncf %161 : vector<8x32xf32> to vector<8x32xbf16>
    %163 = vector.extract_strided_slice %129 {offsets = [0, 32], sizes = [8, 32], strides = [1, 1]} : vector<8x128xf32> to vector<8x32xf32>
    %164 = arith.truncf %163 : vector<8x32xf32> to vector<8x32xbf16>
    %cst_48 = arith.constant dense<0.000000e+00> : vector<8x8xf32>
    %165 = tpu.matmul %160, %162, %cst_48 {dimension_numbers = #tpu.dot_dimension_numbers<[1], [1], [0], [0], [0, 0, 1, 0], [], []>} : vector<8x32xbf16>, vector<8x32xbf16>, vector<8x8xf32> -> vector<8x8xf32>
    %cst_49 = arith.constant 0.176776692 : f32
    %166 = vector.broadcast %cst_49 : f32 to vector<8x8xf32>
    %167 = arith.mulf %165, %166 : vector<8x8xf32>
    %168 = arith.addf %167, %131 : vector<8x8xf32>
    %cst_50 = arith.constant dense<0xFF800000> : vector<8xf32>
    %169 = vector.multi_reduction <maximumf>, %168, %cst_50 [1] : vector<8x8xf32> to vector<8xf32>
    %170 = vector.shape_cast %169 : vector<8xf32> to vector<8x1xf32>
    %171 = vector.broadcast %170 : vector<8x1xf32> to vector<8x8xf32>
    %172 = arith.subf %168, %171 : vector<8x8xf32>
    %173 = math.exp %172 : vector<8x8xf32>
    %cst_51 = arith.constant dense<0.000000e+00> : vector<8xf32>
    %174 = vector.multi_reduction <add>, %173, %cst_51 [1] : vector<8x8xf32> to vector<8xf32>
    %175 = vector.shape_cast %174 : vector<8xf32> to vector<8x1xf32>
    %176 = tpu.reciprocal %175 {approx = true} : vector<8x1xf32> -> vector<8x1xf32>
    %177 = vector.broadcast %176 : vector<8x1xf32> to vector<8x8xf32>
    %178 = arith.mulf %173, %177 : vector<8x8xf32>
    %179 = arith.truncf %178 : vector<8x8xf32> to vector<8x8xbf16>
    %cst_52 = arith.constant dense<0.000000e+00> : vector<8x32xf32>
    %180 = tpu.matmul %179, %164, %cst_52 {dimension_numbers = #tpu.dot_dimension_numbers<[1], [0], [0], [1], [0, 0, 1, 1], [], []>} : vector<8x8xbf16>, vector<8x32xbf16>, vector<8x32xf32> -> vector<8x32xf32>
    %181 = arith.truncf %180 : vector<8x32xf32> to vector<8x32xbf16>
    %182 = vector.extract_strided_slice %16 {offsets = [32, 0], sizes = [32, 128], strides = [1, 1]} : vector<128x128xbf16> to vector<32x128xbf16>
    %cst_53 = arith.constant dense<0.000000e+00> : vector<8x128xf32>
    %183 = tpu.matmul %181, %182, %cst_53 {dimension_numbers = #tpu.dot_dimension_numbers<[1], [0], [0], [1], [0, 0, 1, 1], [], []>} : vector<8x32xbf16>, vector<32x128xbf16>, vector<8x128xf32> -> vector<8x128xf32>
    %184 = arith.addf %158, %183 : vector<8x128xf32>
    %185 = vector.extract_strided_slice %127 {offsets = [0, 64], sizes = [8, 32], strides = [1, 1]} : vector<8x128xf32> to vector<8x32xf32>
    %186 = arith.truncf %185 : vector<8x32xf32> to vector<8x32xbf16>
    %187 = vector.extract_strided_slice %128 {offsets = [0, 64], sizes = [8, 32], strides = [1, 1]} : vector<8x128xf32> to vector<8x32xf32>
    %188 = arith.truncf %187 : vector<8x32xf32> to vector<8x32xbf16>
    %189 = vector.extract_strided_slice %129 {offsets = [0, 64], sizes = [8, 32], strides = [1, 1]} : vector<8x128xf32> to vector<8x32xf32>
    %190 = arith.truncf %189 : vector<8x32xf32> to vector<8x32xbf16>
    %cst_54 = arith.constant dense<0.000000e+00> : vector<8x8xf32>
    %191 = tpu.matmul %186, %188, %cst_54 {dimension_numbers = #tpu.dot_dimension_numbers<[1], [1], [0], [0], [0, 0, 1, 0], [], []>} : vector<8x32xbf16>, vector<8x32xbf16>, vector<8x8xf32> -> vector<8x8xf32>
    %cst_55 = arith.constant 0.176776692 : f32
    %192 = vector.broadcast %cst_55 : f32 to vector<8x8xf32>
    %193 = arith.mulf %191, %192 : vector<8x8xf32>
    %194 = arith.addf %193, %131 : vector<8x8xf32>
    %cst_56 = arith.constant dense<0xFF800000> : vector<8xf32>
    %195 = vector.multi_reduction <maximumf>, %194, %cst_56 [1] : vector<8x8xf32> to vector<8xf32>
    %196 = vector.shape_cast %195 : vector<8xf32> to vector<8x1xf32>
    %197 = vector.broadcast %196 : vector<8x1xf32> to vector<8x8xf32>
    %198 = arith.subf %194, %197 : vector<8x8xf32>
    %199 = math.exp %198 : vector<8x8xf32>
    %cst_57 = arith.constant dense<0.000000e+00> : vector<8xf32>
    %200 = vector.multi_reduction <add>, %199, %cst_57 [1] : vector<8x8xf32> to vector<8xf32>
    %201 = vector.shape_cast %200 : vector<8xf32> to vector<8x1xf32>
    %202 = tpu.reciprocal %201 {approx = true} : vector<8x1xf32> -> vector<8x1xf32>
    %203 = vector.broadcast %202 : vector<8x1xf32> to vector<8x8xf32>
    %204 = arith.mulf %199, %203 : vector<8x8xf32>
    %205 = arith.truncf %204 : vector<8x8xf32> to vector<8x8xbf16>
    %cst_58 = arith.constant dense<0.000000e+00> : vector<8x32xf32>
    %206 = tpu.matmul %205, %190, %cst_58 {dimension_numbers = #tpu.dot_dimension_numbers<[1], [0], [0], [1], [0, 0, 1, 1], [], []>} : vector<8x8xbf16>, vector<8x32xbf16>, vector<8x32xf32> -> vector<8x32xf32>
    %207 = arith.truncf %206 : vector<8x32xf32> to vector<8x32xbf16>
    %208 = vector.extract_strided_slice %16 {offsets = [64, 0], sizes = [32, 128], strides = [1, 1]} : vector<128x128xbf16> to vector<32x128xbf16>
    %cst_59 = arith.constant dense<0.000000e+00> : vector<8x128xf32>
    %209 = tpu.matmul %207, %208, %cst_59 {dimension_numbers = #tpu.dot_dimension_numbers<[1], [0], [0], [1], [0, 0, 1, 1], [], []>} : vector<8x32xbf16>, vector<32x128xbf16>, vector<8x128xf32> -> vector<8x128xf32>
    %210 = arith.addf %184, %209 : vector<8x128xf32>
    %211 = vector.extract_strided_slice %127 {offsets = [0, 96], sizes = [8, 32], strides = [1, 1]} : vector<8x128xf32> to vector<8x32xf32>
    %212 = arith.truncf %211 : vector<8x32xf32> to vector<8x32xbf16>
    %213 = vector.extract_strided_slice %128 {offsets = [0, 96], sizes = [8, 32], strides = [1, 1]} : vector<8x128xf32> to vector<8x32xf32>
    %214 = arith.truncf %213 : vector<8x32xf32> to vector<8x32xbf16>
    %215 = vector.extract_strided_slice %129 {offsets = [0, 96], sizes = [8, 32], strides = [1, 1]} : vector<8x128xf32> to vector<8x32xf32>
    %216 = arith.truncf %215 : vector<8x32xf32> to vector<8x32xbf16>
    %cst_60 = arith.constant dense<0.000000e+00> : vector<8x8xf32>
    %217 = tpu.matmul %212, %214, %cst_60 {dimension_numbers = #tpu.dot_dimension_numbers<[1], [1], [0], [0], [0, 0, 1, 0], [], []>} : vector<8x32xbf16>, vector<8x32xbf16>, vector<8x8xf32> -> vector<8x8xf32>
    %cst_61 = arith.constant 0.176776692 : f32
    %218 = vector.broadcast %cst_61 : f32 to vector<8x8xf32>
    %219 = arith.mulf %217, %218 : vector<8x8xf32>
    %220 = arith.addf %219, %131 : vector<8x8xf32>
    %cst_62 = arith.constant dense<0xFF800000> : vector<8xf32>
    %221 = vector.multi_reduction <maximumf>, %220, %cst_62 [1] : vector<8x8xf32> to vector<8xf32>
    %222 = vector.shape_cast %221 : vector<8xf32> to vector<8x1xf32>
    %223 = vector.broadcast %222 : vector<8x1xf32> to vector<8x8xf32>
    %224 = arith.subf %220, %223 : vector<8x8xf32>
    %225 = math.exp %224 : vector<8x8xf32>
    %cst_63 = arith.constant dense<0.000000e+00> : vector<8xf32>
    %226 = vector.multi_reduction <add>, %225, %cst_63 [1] : vector<8x8xf32> to vector<8xf32>
    %227 = vector.shape_cast %226 : vector<8xf32> to vector<8x1xf32>
    %228 = tpu.reciprocal %227 {approx = true} : vector<8x1xf32> -> vector<8x1xf32>
    %229 = vector.broadcast %228 : vector<8x1xf32> to vector<8x8xf32>
    %230 = arith.mulf %225, %229 : vector<8x8xf32>
    %231 = arith.truncf %230 : vector<8x8xf32> to vector<8x8xbf16>
    %cst_64 = arith.constant dense<0.000000e+00> : vector<8x32xf32>
    %232 = tpu.matmul %231, %216, %cst_64 {dimension_numbers = #tpu.dot_dimension_numbers<[1], [0], [0], [1], [0, 0, 1, 1], [], []>} : vector<8x8xbf16>, vector<8x32xbf16>, vector<8x32xf32> -> vector<8x32xf32>
    %233 = arith.truncf %232 : vector<8x32xf32> to vector<8x32xbf16>
    %234 = vector.extract_strided_slice %16 {offsets = [96, 0], sizes = [32, 128], strides = [1, 1]} : vector<128x128xbf16> to vector<32x128xbf16>
    %cst_65 = arith.constant dense<0.000000e+00> : vector<8x128xf32>
    %235 = tpu.matmul %233, %234, %cst_65 {dimension_numbers = #tpu.dot_dimension_numbers<[1], [0], [0], [1], [0, 0, 1, 1], [], []>} : vector<8x32xbf16>, vector<32x128xbf16>, vector<8x128xf32> -> vector<8x128xf32>
    %236 = arith.addf %210, %235 : vector<8x128xf32>
    %237 = tpu.concatenate %126, %236 in 0 : vector<8x128xf32>, vector<8x128xf32> -> vector<16x128xf32>
    %c0_66 = arith.constant 0 : index
    %c0_67 = arith.constant 0 : index
    %c0_68 = arith.constant 0 : index
    %238 = vector.load %arg8[%c0_66, %c0_67, %c0_68] : memref<1x1x128xf32, #tpu.memory_space<vmem>>, vector<1x1x128xf32>
    %239 = vector.shape_cast %238 : vector<1x1x128xf32> to vector<1x128xf32>
    %240 = vector.broadcast %239 : vector<1x128xf32> to vector<16x128xf32>
    %241 = arith.addf %237, %240 : vector<16x128xf32>
    %242 = arith.addf %3, %241 : vector<16x128xf32>
    %c0_69 = arith.constant 0 : index
    %c0_70 = arith.constant 0 : index
    %c0_71 = arith.constant 0 : index
    %243 = vector.load %arg9[%c0_69, %c0_70, %c0_71] : memref<1x1x128xf32, #tpu.memory_space<vmem>>, vector<1x1x128xf32>
    %244 = vector.shape_cast %243 : vector<1x1x128xf32> to vector<1x128xf32>
    %c0_72 = arith.constant 0 : index
    %c0_73 = arith.constant 0 : index
    %c0_74 = arith.constant 0 : index
    %245 = vector.load %arg10[%c0_72, %c0_73, %c0_74] : memref<1x1x128xf32, #tpu.memory_space<vmem>>, vector<1x1x128xf32>
    %246 = vector.shape_cast %245 : vector<1x1x128xf32> to vector<1x128xf32>
    %cst_75 = arith.constant dense<0.000000e+00> : vector<16xf32>
    %247 = vector.multi_reduction <add>, %242, %cst_75 [1] : vector<16x128xf32> to vector<16xf32>
    %248 = vector.shape_cast %247 : vector<16xf32> to vector<16x1xf32>
    %cst_76 = arith.constant 1.280000e+02 : f32
    %249 = vector.broadcast %cst_76 : f32 to vector<16x1xf32>
    %250 = arith.divf %248, %249 : vector<16x1xf32>
    %251 = vector.broadcast %250 : vector<16x1xf32> to vector<16x128xf32>
    %252 = arith.subf %242, %251 : vector<16x128xf32>
    %253 = arith.mulf %252, %252 : vector<16x128xf32>
    %cst_77 = arith.constant dense<0.000000e+00> : vector<16xf32>
    %254 = vector.multi_reduction <add>, %253, %cst_77 [1] : vector<16x128xf32> to vector<16xf32>
    %255 = vector.shape_cast %254 : vector<16xf32> to vector<16x1xf32>
    %cst_78 = arith.constant 1.280000e+02 : f32
    %256 = vector.broadcast %cst_78 : f32 to vector<16x1xf32>
    %257 = arith.divf %255, %256 : vector<16x1xf32>
    %258 = vector.broadcast %250 : vector<16x1xf32> to vector<16x128xf32>
    %259 = arith.subf %242, %258 : vector<16x128xf32>
    %cst_79 = arith.constant 9.99999996E-13 : f32
    %260 = vector.broadcast %cst_79 : f32 to vector<16x1xf32>
    %261 = arith.addf %257, %260 : vector<16x1xf32>
    %262 = math.rsqrt %261 : vector<16x1xf32>
    %263 = vector.broadcast %262 : vector<16x1xf32> to vector<16x128xf32>
    %264 = arith.mulf %259, %263 : vector<16x128xf32>
    %265 = vector.broadcast %244 : vector<1x128xf32> to vector<16x128xf32>
    %266 = arith.mulf %264, %265 : vector<16x128xf32>
    %267 = vector.broadcast %246 : vector<1x128xf32> to vector<16x128xf32>
    %268 = arith.addf %266, %267 : vector<16x128xf32>
    %269 = arith.truncf %268 : vector<16x128xf32> to vector<16x128xbf16>
    %c0_80 = arith.constant 0 : index
    %c0_81 = arith.constant 0 : index
    %c0_82 = arith.constant 0 : index
    %270 = vector.load %arg11[%c0_80, %c0_81, %c0_82] : memref<1x128x256xbf16, #tpu.memory_space<vmem>>, vector<1x128x256xbf16>
    %271 = vector.shape_cast %270 : vector<1x128x256xbf16> to vector<128x256xbf16>
    %cst_83 = arith.constant dense<0.000000e+00> : vector<16x256xf32>
    %272 = tpu.matmul %269, %271, %cst_83 {dimension_numbers = #tpu.dot_dimension_numbers<[1], [0], [0], [1], [0, 0, 1, 1], [], []>} : vector<16x128xbf16>, vector<128x256xbf16>, vector<16x256xf32> -> vector<16x256xf32>
    %c0_84 = arith.constant 0 : index
    %c0_85 = arith.constant 0 : index
    %c0_86 = arith.constant 0 : index
    %273 = vector.load %arg12[%c0_84, %c0_85, %c0_86] : memref<1x1x256xf32, #tpu.memory_space<vmem>>, vector<1x1x256xf32>
    %274 = vector.shape_cast %273 : vector<1x1x256xf32> to vector<1x256xf32>
    %275 = vector.broadcast %274 : vector<1x256xf32> to vector<16x256xf32>
    %276 = arith.addf %272, %275 : vector<16x256xf32>
    %cst_87 = arith.constant 5.000000e-01 : f32
    %277 = vector.broadcast %cst_87 : f32 to vector<16x256xf32>
    %278 = arith.mulf %277, %276 : vector<16x256xf32>
    %cst_88 = arith.constant 4.471500e-02 : f32
    %279 = vector.broadcast %cst_88 : f32 to vector<16x256xf32>
    %280 = arith.mulf %279, %276 : vector<16x256xf32>
    %281 = arith.mulf %280, %276 : vector<16x256xf32>
    %282 = arith.mulf %281, %276 : vector<16x256xf32>
    %283 = arith.addf %276, %282 : vector<16x256xf32>
    %cst_89 = arith.constant 0.797884583 : f32
    %284 = vector.broadcast %cst_89 : f32 to vector<16x256xf32>
    %285 = arith.mulf %284, %283 : vector<16x256xf32>
    %286 = math.tanh %285 : vector<16x256xf32>
    %cst_90 = arith.constant 1.000000e+00 : f32
    %287 = vector.broadcast %cst_90 : f32 to vector<16x256xf32>
    %288 = arith.addf %287, %286 : vector<16x256xf32>
    %289 = arith.mulf %278, %288 : vector<16x256xf32>
    %290 = arith.truncf %289 : vector<16x256xf32> to vector<16x256xbf16>
    %c0_91 = arith.constant 0 : index
    %c0_92 = arith.constant 0 : index
    %c0_93 = arith.constant 0 : index
    %291 = vector.load %arg13[%c0_91, %c0_92, %c0_93] : memref<1x256x128xbf16, #tpu.memory_space<vmem>>, vector<1x256x128xbf16>
    %292 = vector.shape_cast %291 : vector<1x256x128xbf16> to vector<256x128xbf16>
    %cst_94 = arith.constant dense<0.000000e+00> : vector<16x128xf32>
    %293 = tpu.matmul %290, %292, %cst_94 {dimension_numbers = #tpu.dot_dimension_numbers<[1], [0], [0], [1], [0, 0, 1, 1], [], []>} : vector<16x256xbf16>, vector<256x128xbf16>, vector<16x128xf32> -> vector<16x128xf32>
    %c0_95 = arith.constant 0 : index
    %c0_96 = arith.constant 0 : index
    %c0_97 = arith.constant 0 : index
    %294 = vector.load %arg14[%c0_95, %c0_96, %c0_97] : memref<1x1x128xf32, #tpu.memory_space<vmem>>, vector<1x1x128xf32>
    %295 = vector.shape_cast %294 : vector<1x1x128xf32> to vector<1x128xf32>
    %296 = vector.broadcast %295 : vector<1x128xf32> to vector<16x128xf32>
    %297 = arith.addf %293, %296 : vector<16x128xf32>
    %298 = arith.addf %268, %297 : vector<16x128xf32>
    %c0_98 = arith.constant 0 : index
    %c0_99 = arith.constant 0 : index
    %c0_100 = arith.constant 0 : index
    %299 = vector.load %arg15[%c0_98, %c0_99, %c0_100] : memref<1x1x128xf32, #tpu.memory_space<vmem>>, vector<1x1x128xf32>
    %300 = vector.shape_cast %299 : vector<1x1x128xf32> to vector<1x128xf32>
    %c0_101 = arith.constant 0 : index
    %c0_102 = arith.constant 0 : index
    %c0_103 = arith.constant 0 : index
    %301 = vector.load %arg16[%c0_101, %c0_102, %c0_103] : memref<1x1x128xf32, #tpu.memory_space<vmem>>, vector<1x1x128xf32>
    %302 = vector.shape_cast %301 : vector<1x1x128xf32> to vector<1x128xf32>
    %cst_104 = arith.constant dense<0.000000e+00> : vector<16xf32>
    %303 = vector.multi_reduction <add>, %298, %cst_104 [1] : vector<16x128xf32> to vector<16xf32>
    %304 = vector.shape_cast %303 : vector<16xf32> to vector<16x1xf32>
    %cst_105 = arith.constant 1.280000e+02 : f32
    %305 = vector.broadcast %cst_105 : f32 to vector<16x1xf32>
    %306 = arith.divf %304, %305 : vector<16x1xf32>
    %307 = vector.broadcast %306 : vector<16x1xf32> to vector<16x128xf32>
    %308 = arith.subf %298, %307 : vector<16x128xf32>
    %309 = arith.mulf %308, %308 : vector<16x128xf32>
    %cst_106 = arith.constant dense<0.000000e+00> : vector<16xf32>
    %310 = vector.multi_reduction <add>, %309, %cst_106 [1] : vector<16x128xf32> to vector<16xf32>
    %311 = vector.shape_cast %310 : vector<16xf32> to vector<16x1xf32>
    %cst_107 = arith.constant 1.280000e+02 : f32
    %312 = vector.broadcast %cst_107 : f32 to vector<16x1xf32>
    %313 = arith.divf %311, %312 : vector<16x1xf32>
    %314 = vector.broadcast %306 : vector<16x1xf32> to vector<16x128xf32>
    %315 = arith.subf %298, %314 : vector<16x128xf32>
    %cst_108 = arith.constant 9.99999996E-13 : f32
    %316 = vector.broadcast %cst_108 : f32 to vector<16x1xf32>
    %317 = arith.addf %313, %316 : vector<16x1xf32>
    %318 = math.rsqrt %317 : vector<16x1xf32>
    %319 = vector.broadcast %318 : vector<16x1xf32> to vector<16x128xf32>
    %320 = arith.mulf %315, %319 : vector<16x128xf32>
    %321 = vector.broadcast %300 : vector<1x128xf32> to vector<16x128xf32>
    %322 = arith.mulf %320, %321 : vector<16x128xf32>
    %323 = vector.broadcast %302 : vector<1x128xf32> to vector<16x128xf32>
    %324 = arith.addf %322, %323 : vector<16x128xf32>
    %c0_109 = arith.constant 0 : index
    %c0_110 = arith.constant 0 : index
    %325 = vector.load %arg17[%c0_109, %c0_110] : memref<16x128xf32, #tpu.memory_space<vmem>>, vector<16x128xf32>
    tpu.vector_store %arg17[%c0_109, %c0_110], %324 {strides = array<i32>} : memref<16x128xf32, #tpu.memory_space<vmem>>, vector<16x128xf32>,
    return
  }
  func.func @transform_0(%arg0: i32) -> (i32, i32) {
    %c0_i32 = arith.constant 0 : i32
    %c0_i32_0 = arith.constant 0 : i32
    %c0_i32_1 = arith.constant 0 : i32
    return %c0_i32, %c0_i32_0 : i32, i32
  }
  func.func @transform_1(%arg0: i32) -> (i32, i32, i32) {
    %c0_i32 = arith.constant 0 : i32
    %c0_i32_0 = arith.constant 0 : i32
    %c0_i32_1 = arith.constant 0 : i32
    %c0_i32_2 = arith.constant 0 : i32
    return %c0_i32, %c0_i32_0, %c0_i32_1 : i32, i32, i32
  }
  func.func @transform_2(%arg0: i32) -> (i32, i32) {
    %c0_i32 = arith.constant 0 : i32
    %c0_i32_0 = arith.constant 0 : i32
    %c0_i32_1 = arith.constant 0 : i32
    return %c0_i32, %c0_i32_0 : i32, i32
  }
  func.func @transform_3(%arg0: i32) -> (i32, i32) {
    %c0_i32 = arith.constant 0 : i32
    %c0_i32_0 = arith.constant 0 : i32
    %c0_i32_1 = arith.constant 0 : i32
    return %c0_i32, %c0_i32_0 : i32, i32
  }
  func.func @transform_4(%arg0: i32) -> (i32, i32, i32) {
    %c0_i32 = arith.constant 0 : i32
    %c0_i32_0 = arith.constant 0 : i32
    %c0_i32_1 = arith.constant 0 : i32
    return %arg0, %c0_i32, %c0_i32_0 : i32, i32, i32
  }
  func.func @transform_5(%arg0: i32) -> (i32, i32, i32) {
    %c0_i32 = arith.constant 0 : i32
    %c0_i32_0 = arith.constant 0 : i32
    %c0_i32_1 = arith.constant 0 : i32
    return %arg0, %c0_i32, %c0_i32_0 : i32, i32, i32
  }
  func.func @transform_6(%arg0: i32) -> (i32, i32, i32) {
    %c0_i32 = arith.constant 0 : i32
    %c0_i32_0 = arith.constant 0 : i32
    %c0_i32_1 = arith.constant 0 : i32
    return %arg0, %c0_i32, %c0_i32_0 : i32, i32, i32
  }
  func.func @transform_7(%arg0: i32) -> (i32, i32, i32) {
    %c0_i32 = arith.constant 0 : i32
    %c0_i32_0 = arith.constant 0 : i32
    %c0_i32_1 = arith.constant 0 : i32
    return %arg0, %c0_i32, %c0_i32_0 : i32, i32, i32
  }
  func.func @transform_8(%arg0: i32) -> (i32, i32, i32) {
    %c0_i32 = arith.constant 0 : i32
    %c0_i32_0 = arith.constant 0 : i32
    %c0_i32_1 = arith.constant 0 : i32
    return %arg0, %c0_i32, %c0_i32_0 : i32, i32, i32
  }
  func.func @transform_9(%arg0: i32) -> (i32, i32, i32) {
    %c0_i32 = arith.constant 0 : i32
    %c0_i32_0 = arith.constant 0 : i32
    %c0_i32_1 = arith.constant 0 : i32
    return %arg0, %c0_i32, %c0_i32_0 : i32, i32, i32
  }
  func.func @transform_10(%arg0: i32) -> (i32, i32, i32) {
    %c0_i32 = arith.constant 0 : i32
    %c0_i32_0 = arith.constant 0 : i32
    %c0_i32_1 = arith.constant 0 : i32
    return %arg0, %c0_i32, %c0_i32_0 : i32, i32, i32
  }
  func.func @transform_11(%arg0: i32) -> (i32, i32, i32) {
    %c0_i32 = arith.constant 0 : i32
    %c0_i32_0 = arith.constant 0 : i32
    %c0_i32_1 = arith.constant 0 : i32
    return %arg0, %c0_i32, %c0_i32_0 : i32, i32, i32
  }
  func.func @transform_12(%arg0: i32) -> (i32, i32, i32) {
    %c0_i32 = arith.constant 0 : i32
    %c0_i32_0 = arith.constant 0 : i32
    %c0_i32_1 = arith.constant 0 : i32
    return %arg0, %c0_i32, %c0_i32_0 : i32, i32, i32
  }
  func.func @transform_13(%arg0: i32) -> (i32, i32, i32) {
    %c0_i32 = arith.constant 0 : i32
    %c0_i32_0 = arith.constant 0 : i32
    %c0_i32_1 = arith.constant 0 : i32
    return %arg0, %c0_i32, %c0_i32_0 : i32, i32, i32
  }
  func.func @transform_14(%arg0: i32) -> (i32, i32, i32) {
    %c0_i32 = arith.constant 0 : i32
    %c0_i32_0 = arith.constant 0 : i32
    %c0_i32_1 = arith.constant 0 : i32
    return %arg0, %c0_i32, %c0_i32_0 : i32, i32, i32
  }
  func.func @transform_15(%arg0: i32) -> (i32, i32, i32) {
    %c0_i32 = arith.constant 0 : i32
    %c0_i32_0 = arith.constant 0 : i32
    %c0_i32_1 = arith.constant 0 : i32
    return %arg0, %c0_i32, %c0_i32_0 : i32, i32, i32
  }
  func.func @transform_16(%arg0: i32) -> (i32, i32) {
    %c0_i32 = arith.constant 0 : i32
    %c0_i32_0 = arith.constant 0 : i32
    %c0_i32_1 = arith.constant 0 : i32
    return %c0_i32, %c0_i32_0 : i32, i32
  }
}

</mosaic_0001>

<llo_original>
// kernel: _bert_forward.1
$region0: #{_bert_forward.1}
  #allocation0 [shape = 'u32[]', space=smem, size = 0x4, offset = 0x4, fixed_abs, tag = 'smem constant byte address 0x4 - core index']
  #allocation1 [shape = 'u32[144,128]{1,0:T(1,128)}', space=vmem, size = 0x12000, scoped, tag = 'internal scratch']
  %s0 = inlined_call_operand.vmem [shape: f32[16,128], index: 0, kind: input, shape index: {}]
  %s1 = inlined_call_operand.vmem [shape: f32[2,8,8], index: 1, kind: input, shape index: {}]
  %s2 = inlined_call_operand.vmem [shape: f32[1,128], index: 2, kind: input, shape index: {}]
  %s3 = inlined_call_operand.vmem [shape: f32[1,128], index: 3, kind: input, shape index: {}]
  %s4 = inlined_call_operand.vmem [shape: bf16[2,128,384], index: 4, kind: input, shape index: {}]
  %s5 = inlined_call_operand.vmem [shape: f32[2,1,384], index: 5, kind: input, shape index: {}]
  %s6 = inlined_call_operand.vmem [shape: bf16[2,128,128], index: 6, kind: input, shape index: {}]
  %s7 = inlined_call_operand.vmem [shape: f32[2,1,128], index: 7, kind: input, shape index: {}]
  %s8 = inlined_call_operand.vmem [shape: f32[2,1,128], index: 8, kind: input, shape index: {}]
  %s9 = inlined_call_operand.vmem [shape: f32[2,1,128], index: 9, kind: input, shape index: {}]
  %s10 = inlined_call_operand.vmem [shape: bf16[2,128,256], index: 10, kind: input, shape index: {}]
  %s11 = inlined_call_operand.vmem [shape: f32[2,1,256], index: 11, kind: input, shape index: {}]
  %s12 = inlined_call_operand.vmem [shape: bf16[2,256,128], index: 12, kind: input, shape index: {}]
  %s13 = inlined_call_operand.vmem [shape: f32[2,1,128], index: 13, kind: input, shape index: {}]
  %s14 = inlined_call_operand.vmem [shape: f32[2,1,128], index: 14, kind: input, shape index: {}]
  %s15 = inlined_call_operand.vmem [shape: f32[2,1,128], index: 15, kind: input, shape index: {}]
  %s16 = inlined_call_operand.hbm [shape: f32[16,128], index: 16, kind: output, shape index: {}]
  %s17 = sld [smem:[#allocation0]]
  $region101: #{_bert_forward.1} parent=0
    _
  %s19 = ssub.s32 1, %s17
  %s20 = scalar_select 0, %s19, %s17
  $region1: #{_bert_forward.1} parent=0
    #allocation2 [shape = 'u8[8192]{0}', space=vmem, size = 0x2000, scoped, tag = 'output window, operand 0, single buffered']
    #allocation3 [shape = 's32[2]{0}', space=sflag, size = 0x8, scoped, tag = 'scoped memory for _bert_forward.1']
    %21 = vsyncpa [#allocation3], 0
    loop: start=0, step=1, limit=4
    $region2: #{_bert_forward.1} parent=1 // loop_pre_header
      _
    $region3: #{_bert_forward.1} parent=1 // loop_header
      %s23 = sphi 0, %s27
      %p24 = scmp.ge.s32.totalorder %s23, 4
      %s31 = sphi 0, %s31
      %s33 = sphi 0, %s31
      %s34 = sphi 0, %s33
      %s48 = sphi 0, %s34
      %s52 = sphi 0, %s52
      %s54 = sphi 0, %s52
      %s55 = sphi 0, %s54
      %s69 = sphi 0, %s55
      %s73 = sphi 0, %s73
      %s75 = sphi 0, %s73
      %s76 = sphi 0, %s75
      %s90 = sphi 0, %s76
      %s94 = sphi 0, %s94
      %s96 = sphi 0, %s94
      %s97 = sphi 0, %s96
      %s111 = sphi 0, %s97
      %s117 = sphi 0, %s119
      %s120 = sphi 0, %s117
      %s121 = sphi 0, %s120
      %s137 = sphi 0, %s121
      %s143 = sphi 0, %s145
      %s146 = sphi 0, %s143
      %s147 = sphi 0, %s146
      %s163 = sphi 0, %s147
      %s169 = sphi 0, %s171
      %s172 = sphi 0, %s169
      %s173 = sphi 0, %s172
      %s189 = sphi 0, %s173
      %s195 = sphi 0, %s197
      %s198 = sphi 0, %s195
      %s199 = sphi 0, %s198
      %s215 = sphi 0, %s199
      %s221 = sphi 0, %s223
      %s224 = sphi 0, %s221
      %s225 = sphi 0, %s224
      %s241 = sphi 0, %s225
      %s247 = sphi 0, %s249
      %s250 = sphi 0, %s247
      %s251 = sphi 0, %s250
      %s267 = sphi 0, %s251
      %s273 = sphi 0, %s275
      %s276 = sphi 0, %s273
      %s277 = sphi 0, %s276
      %s293 = sphi 0, %s277
      %s299 = sphi 0, %s301
      %s302 = sphi 0, %s299
      %s303 = sphi 0, %s302
      %s319 = sphi 0, %s303
      %s325 = sphi 0, %s327
      %s328 = sphi 0, %s325
      %s329 = sphi 0, %s328
      %s345 = sphi 0, %s329
      %s351 = sphi 0, %s353
      %s354 = sphi 0, %s351
      %s355 = sphi 0, %s354
      %s371 = sphi 0, %s355
      %s377 = sphi 0, %s379
      %s380 = sphi 0, %s377
      %s381 = sphi 0, %s380
      %s397 = sphi 0, %s381
      %s403 = sphi 0, %s405
      %s406 = sphi 0, %s403
      %s407 = sphi 0, %s406
      %s423 = sphi 0, %s407
      %s427 = sphi 0, %s427
      %s429 = sphi 0, %s427
      %s430 = sphi 0, %s429
      %s444 = sphi 0, %s430
    $region4: #{_bert_forward.1} parent=1 // loop_header_branch
      %26 = sbr.rel (%p24) target = $region8
    $region5: #{_bert_forward.1} parent=1 // loop_body
      %s28 = ssub.s32 %s23, 1
      %s29 = ssub.s32 %s23, 2
      %s30 = sadd.s32 %s23, 1
      %s32 = sadd.s32 %s31, 1
      %p35 = scmp.eq.s32.totalorder %s23, 1
      %p36 = scmp.ne.s32.totalorder %s31, %s33
      %p37 = scmp.eq.s32.totalorder %s23, 0
      %p38 = por %p36, %p37
      %p39 = scmp.ne.s32.totalorder %s31, %s33
      %p40 = scmp.eq.s32.totalorder %s28, 1
      %p41 = por %p39, %p40
      %p42 = scmp.ne.s32.totalorder %s33, %s34
      %p43 = scmp.eq.s32.totalorder %s28, 0
      %p44 = por %p42, %p43
      %p45 = scmp.ne.s32.totalorder %s33, %s34
      %p46 = scmp.eq.s32.totalorder %s29, 1
      %p47 = por %p45, %p46
      %p49 = scmp.ne.s32.totalorder %s34, %s48
      %p50 = scmp.eq.s32.totalorder %s29, 0
      %p51 = por %p49, %p50
      %s53 = sadd.s32 %s52, 1
      %p56 = scmp.eq.s32.totalorder %s23, 1
      %p57 = scmp.ne.s32.totalorder %s52, %s54
      %p58 = scmp.eq.s32.totalorder %s23, 0
      %p59 = por %p57, %p58
      %p60 = scmp.ne.s32.totalorder %s52, %s54
      %p61 = scmp.eq.s32.totalorder %s28, 1
      %p62 = por %p60, %p61
      %p63 = scmp.ne.s32.totalorder %s54, %s55
      %p64 = scmp.eq.s32.totalorder %s28, 0
      %p65 = por %p63, %p64
      %p66 = scmp.ne.s32.totalorder %s54, %s55
      %p67 = scmp.eq.s32.totalorder %s29, 1
      %p68 = por %p66, %p67
      %p70 = scmp.ne.s32.totalorder %s55, %s69
      %p71 = scmp.eq.s32.totalorder %s29, 0
      %p72 = por %p70, %p71
      %s74 = sadd.s32 %s73, 1
      %p77 = scmp.eq.s32.totalorder %s23, 1
      %p78 = scmp.ne.s32.totalorder %s73, %s75
      %p79 = scmp.eq.s32.totalorder %s23, 0
      %p80 = por %p78, %p79
      %p81 = scmp.ne.s32.totalorder %s73, %s75
      %p82 = scmp.eq.s32.totalorder %s28, 1
      %p83 = por %p81, %p82
      %p84 = scmp.ne.s32.totalorder %s75, %s76
      %p85 = scmp.eq.s32.totalorder %s28, 0
      %p86 = por %p84, %p85
      %p87 = scmp.ne.s32.totalorder %s75, %s76
      %p88 = scmp.eq.s32.totalorder %s29, 1
      %p89 = por %p87, %p88
      %p91 = scmp.ne.s32.totalorder %s76, %s90
      %p92 = scmp.eq.s32.totalorder %s29, 0
      %p93 = por %p91, %p92
      %s95 = sadd.s32 %s94, 1
      %p98 = scmp.eq.s32.totalorder %s23, 1
      %p99 = scmp.ne.s32.totalorder %s94, %s96
      %p100 = scmp.eq.s32.totalorder %s23, 0
      %p101 = por %p99, %p100
      %p102 = scmp.ne.s32.totalorder %s94, %s96
      %p103 = scmp.eq.s32.totalorder %s28, 1
      %p104 = por %p102, %p103
      %p105 = scmp.ne.s32.totalorder %s96, %s97
      %p106 = scmp.eq.s32.totalorder %s28, 0
      %p107 = por %p105, %p106
      %p108 = scmp.ne.s32.totalorder %s96, %s97
      %p109 = scmp.eq.s32.totalorder %s29, 1
      %p110 = por %p108, %p109
      %p112 = scmp.ne.s32.totalorder %s97, %s111
      %p113 = scmp.eq.s32.totalorder %s29, 0
      %p114 = por %p112, %p113
      %s115 = ssub.s32 %s23, %s30
      %p116 = scmp.eq.s32.totalorder %s115, 0
      %s118 = sadd.s32 %s117, 1
      %s119 = scalar_select %p116, %s117, %s118
      %p122 = pneg %p116
      %p123 = scmp.eq.s32.totalorder %s23, 1
      %p124 = por %p122, %p123
      %p125 = scmp.ne.s32.totalorder %s117, %s120
      %p126 = scmp.eq.s32.totalorder %s23, 0
      %p127 = por %p125, %p126
      %p128 = scmp.ne.s32.totalorder %s117, %s120
      %p129 = scmp.eq.s32.totalorder %s28, 1
      %p130 = por %p128, %p129
      %p131 = scmp.ne.s32.totalorder %s120, %s121
      %p132 = scmp.eq.s32.totalorder %s28, 0
      %p133 = por %p131, %p132
      %p134 = scmp.ne.s32.totalorder %s120, %s121
      %p135 = scmp.eq.s32.totalorder %s29, 1
      %p136 = por %p134, %p135
      %p138 = scmp.ne.s32.totalorder %s121, %s137
      %p139 = scmp.eq.s32.totalorder %s29, 0
      %p140 = por %p138, %p139
      %s141 = ssub.s32 %s23, %s30
      %p142 = scmp.eq.s32.totalorder %s141, 0
      %s144 = sadd.s32 %s143, 1
      %s145 = scalar_select %p142, %s143, %s144
      %p148 = pneg %p142
      %p149 = scmp.eq.s32.totalorder %s23, 1
      %p150 = por %p148, %p149
      %p151 = scmp.ne.s32.totalorder %s143, %s146
      %p152 = scmp.eq.s32.totalorder %s23, 0
      %p153 = por %p151, %p152
      %p154 = scmp.ne.s32.totalorder %s143, %s146
      %p155 = scmp.eq.s32.totalorder %s28, 1
      %p156 = por %p154, %p155
      %p157 = scmp.ne.s32.totalorder %s146, %s147
      %p158 = scmp.eq.s32.totalorder %s28, 0
      %p159 = por %p157, %p158
      %p160 = scmp.ne.s32.totalorder %s146, %s147
      %p161 = scmp.eq.s32.totalorder %s29, 1
      %p162 = por %p160, %p161
      %p164 = scmp.ne.s32.totalorder %s147, %s163
      %p165 = scmp.eq.s32.totalorder %s29, 0
      %p166 = por %p164, %p165
      %s167 = ssub.s32 %s23, %s30
      %p168 = scmp.eq.s32.totalorder %s167, 0
      %s170 = sadd.s32 %s169, 1
      %s171 = scalar_select %p168, %s169, %s170
      %p174 = pneg %p168
      %p175 = scmp.eq.s32.totalorder %s23, 1
      %p176 = por %p174, %p175
      %p177 = scmp.ne.s32.totalorder %s169, %s172
      %p178 = scmp.eq.s32.totalorder %s23, 0
      %p179 = por %p177, %p178
      %p180 = scmp.ne.s32.totalorder %s169, %s172
      %p181 = scmp.eq.s32.totalorder %s28, 1
      %p182 = por %p180, %p181
      %p183 = scmp.ne.s32.totalorder %s172, %s173
      %p184 = scmp.eq.s32.totalorder %s28, 0
      %p185 = por %p183, %p184
      %p186 = scmp.ne.s32.totalorder %s172, %s173
      %p187 = scmp.eq.s32.totalorder %s29, 1
      %p188 = por %p186, %p187
      %p190 = scmp.ne.s32.totalorder %s173, %s189
      %p191 = scmp.eq.s32.totalorder %s29, 0
      %p192 = por %p190, %p191
      %s193 = ssub.s32 %s23, %s30
      %p194 = scmp.eq.s32.totalorder %s193, 0
      %s196 = sadd.s32 %s195, 1
      %s197 = scalar_select %p194, %s195, %s196
      %p200 = pneg %p194
      %p201 = scmp.eq.s32.totalorder %s23, 1
      %p202 = por %p200, %p201
      %p203 = scmp.ne.s32.totalorder %s195, %s198
      %p204 = scmp.eq.s32.totalorder %s23, 0
      %p205 = por %p203, %p204
      %p206 = scmp.ne.s32.totalorder %s195, %s198
      %p207 = scmp.eq.s32.totalorder %s28, 1
      %p208 = por %p206, %p207
      %p209 = scmp.ne.s32.totalorder %s198, %s199
      %p210 = scmp.eq.s32.totalorder %s28, 0
      %p211 = por %p209, %p210
      %p212 = scmp.ne.s32.totalorder %s198, %s199
      %p213 = scmp.eq.s32.totalorder %s29, 1
      %p214 = por %p212, %p213
      %p216 = scmp.ne.s32.totalorder %s199, %s215
      %p217 = scmp.eq.s32.totalorder %s29, 0
      %p218 = por %p216, %p217
      %s219 = ssub.s32 %s23, %s30
      %p220 = scmp.eq.s32.totalorder %s219, 0
      %s222 = sadd.s32 %s221, 1
      %s223 = scalar_select %p220, %s221, %s222
      %p226 = pneg %p220
      %p227 = scmp.eq.s32.totalorder %s23, 1
      %p228 = por %p226, %p227
      %p229 = scmp.ne.s32.totalorder %s221, %s224
      %p230 = scmp.eq.s32.totalorder %s23, 0
      %p231 = por %p229, %p230
      %p232 = scmp.ne.s32.totalorder %s221, %s224
      %p233 = scmp.eq.s32.totalorder %s28, 1
      %p234 = por %p232, %p233
      %p235 = scmp.ne.s32.totalorder %s224, %s225
      %p236 = scmp.eq.s32.totalorder %s28, 0
      %p237 = por %p235, %p236
      %p238 = scmp.ne.s32.totalorder %s224, %s225
      %p239 = scmp.eq.s32.totalorder %s29, 1
      %p240 = por %p238, %p239
      %p242 = scmp.ne.s32.totalorder %s225, %s241
      %p243 = scmp.eq.s32.totalorder %s29, 0
      %p244 = por %p242, %p243
      %s245 = ssub.s32 %s23, %s30
      %p246 = scmp.eq.s32.totalorder %s245, 0
      %s248 = sadd.s32 %s247, 1
      %s249 = scalar_select %p246, %s247, %s248
      %p252 = pneg %p246
      %p253 = scmp.eq.s32.totalorder %s23, 1
      %p254 = por %p252, %p253
      %p255 = scmp.ne.s32.totalorder %s247, %s250
      %p256 = scmp.eq.s32.totalorder %s23, 0
      %p257 = por %p255, %p256
      %p258 = scmp.ne.s32.totalorder %s247, %s250
      %p259 = scmp.eq.s32.totalorder %s28, 1
      %p260 = por %p258, %p259
      %p261 = scmp.ne.s32.totalorder %s250, %s251
      %p262 = scmp.eq.s32.totalorder %s28, 0
      %p263 = por %p261, %p262
      %p264 = scmp.ne.s32.totalorder %s250, %s251
      %p265 = scmp.eq.s32.totalorder %s29, 1
      %p266 = por %p264, %p265
      %p268 = scmp.ne.s32.totalorder %s251, %s267
      %p269 = scmp.eq.s32.totalorder %s29, 0
      %p270 = por %p268, %p269
      %s271 = ssub.s32 %s23, %s30
      %p272 = scmp.eq.s32.totalorder %s271, 0
      %s274 = sadd.s32 %s273, 1
      %s275 = scalar_select %p272, %s273, %s274
      %p278 = pneg %p272
      %p279 = scmp.eq.s32.totalorder %s23, 1
      %p280 = por %p278, %p279
      %p281 = scmp.ne.s32.totalorder %s273, %s276
      %p282 = scmp.eq.s32.totalorder %s23, 0
      %p283 = por %p281, %p282
      %p284 = scmp.ne.s32.totalorder %s273, %s276
      %p285 = scmp.eq.s32.totalorder %s28, 1
      %p286 = por %p284, %p285
      %p287 = scmp.ne.s32.totalorder %s276, %s277
      %p288 = scmp.eq.s32.totalorder %s28, 0
      %p289 = por %p287, %p288
      %p290 = scmp.ne.s32.totalorder %s276, %s277
      %p291 = scmp.eq.s32.totalorder %s29, 1
      %p292 = por %p290, %p291
      %p294 = scmp.ne.s32.totalorder %s277, %s293
      %p295 = scmp.eq.s32.totalorder %s29, 0
      %p296 = por %p294, %p295
      %s297 = ssub.s32 %s23, %s30
      %p298 = scmp.eq.s32.totalorder %s297, 0
      %s300 = sadd.s32 %s299, 1
      %s301 = scalar_select %p298, %s299, %s300
      %p304 = pneg %p298
      %p305 = scmp.eq.s32.totalorder %s23, 1
      %p306 = por %p304, %p305
      %p307 = scmp.ne.s32.totalorder %s299, %s302
      %p308 = scmp.eq.s32.totalorder %s23, 0
      %p309 = por %p307, %p308
      %p310 = scmp.ne.s32.totalorder %s299, %s302
      %p311 = scmp.eq.s32.totalorder %s28, 1
      %p312 = por %p310, %p311
      %p313 = scmp.ne.s32.totalorder %s302, %s303
      %p314 = scmp.eq.s32.totalorder %s28, 0
      %p315 = por %p313, %p314
      %p316 = scmp.ne.s32.totalorder %s302, %s303
      %p317 = scmp.eq.s32.totalorder %s29, 1
      %p318 = por %p316, %p317
      %p320 = scmp.ne.s32.totalorder %s303, %s319
      %p321 = scmp.eq.s32.totalorder %s29, 0
      %p322 = por %p320, %p321
      %s323 = ssub.s32 %s23, %s30
      %p324 = scmp.eq.s32.totalorder %s323, 0
      %s326 = sadd.s32 %s325, 1
      %s327 = scalar_select %p324, %s325, %s326
      %p330 = pneg %p324
      %p331 = scmp.eq.s32.totalorder %s23, 1
      %p332 = por %p330, %p331
      %p333 = scmp.ne.s32.totalorder %s325, %s328
      %p334 = scmp.eq.s32.totalorder %s23, 0
      %p335 = por %p333, %p334
      %p336 = scmp.ne.s32.totalorder %s325, %s328
      %p337 = scmp.eq.s32.totalorder %s28, 1
      %p338 = por %p336, %p337
      %p339 = scmp.ne.s32.totalorder %s328, %s329
      %p340 = scmp.eq.s32.totalorder %s28, 0
      %p341 = por %p339, %p340
      %p342 = scmp.ne.s32.totalorder %s328, %s329
      %p343 = scmp.eq.s32.totalorder %s29, 1
      %p344 = por %p342, %p343
      %p346 = scmp.ne.s32.totalorder %s329, %s345
      %p347 = scmp.eq.s32.totalorder %s29, 0
      %p348 = por %p346, %p347
      %s349 = ssub.s32 %s23, %s30
      %p350 = scmp.eq.s32.totalorder %s349, 0
      %s352 = sadd.s32 %s351, 1
      %s353 = scalar_select %p350, %s351, %s352
      %p356 = pneg %p350
      %p357 = scmp.eq.s32.totalorder %s23, 1
      %p358 = por %p356, %p357
      %p359 = scmp.ne.s32.totalorder %s351, %s354
      %p360 = scmp.eq.s32.totalorder %s23, 0
      %p361 = por %p359, %p360
      %p362 = scmp.ne.s32.totalorder %s351, %s354
      %p363 = scmp.eq.s32.totalorder %s28, 1
      %p364 = por %p362, %p363
      %p365 = scmp.ne.s32.totalorder %s354, %s355
      %p366 = scmp.eq.s32.totalorder %s28, 0
      %p367 = por %p365, %p366
      %p368 = scmp.ne.s32.totalorder %s354, %s355
      %p369 = scmp.eq.s32.totalorder %s29, 1
      %p370 = por %p368, %p369
      %p372 = scmp.ne.s32.totalorder %s355, %s371
      %p373 = scmp.eq.s32.totalorder %s29, 0
      %p374 = por %p372, %p373
      %s375 = ssub.s32 %s23, %s30
      %p376 = scmp.eq.s32.totalorder %s375, 0
      %s378 = sadd.s32 %s377, 1
      %s379 = scalar_select %p376, %s377, %s378
      %p382 = pneg %p376
      %p383 = scmp.eq.s32.totalorder %s23, 1
      %p384 = por %p382, %p383
      %p385 = scmp.ne.s32.totalorder %s377, %s380
      %p386 = scmp.eq.s32.totalorder %s23, 0
      %p387 = por %p385, %p386
      %p388 = scmp.ne.s32.totalorder %s377, %s380
      %p389 = scmp.eq.s32.totalorder %s28, 1
      %p390 = por %p388, %p389
      %p391 = scmp.ne.s32.totalorder %s380, %s381
      %p392 = scmp.eq.s32.totalorder %s28, 0
      %p393 = por %p391, %p392
      %p394 = scmp.ne.s32.totalorder %s380, %s381
      %p395 = scmp.eq.s32.totalorder %s29, 1
      %p396 = por %p394, %p395
      %p398 = scmp.ne.s32.totalorder %s381, %s397
      %p399 = scmp.eq.s32.totalorder %s29, 0
      %p400 = por %p398, %p399
      %s401 = ssub.s32 %s23, %s30
      %p402 = scmp.eq.s32.totalorder %s401, 0
      %s404 = sadd.s32 %s403, 1
      %s405 = scalar_select %p402, %s403, %s404
      %p408 = pneg %p402
      %p409 = scmp.eq.s32.totalorder %s23, 1
      %p410 = por %p408, %p409
      %p411 = scmp.ne.s32.totalorder %s403, %s406
      %p412 = scmp.eq.s32.totalorder %s23, 0
      %p413 = por %p411, %p412
      %p414 = scmp.ne.s32.totalorder %s403, %s406
      %p415 = scmp.eq.s32.totalorder %s28, 1
      %p416 = por %p414, %p415
      %p417 = scmp.ne.s32.totalorder %s406, %s407
      %p418 = scmp.eq.s32.totalorder %s28, 0
      %p419 = por %p417, %p418
      %p420 = scmp.ne.s32.totalorder %s406, %s407
      %p421 = scmp.eq.s32.totalorder %s29, 1
      %p422 = por %p420, %p421
      %p424 = scmp.ne.s32.totalorder %s407, %s423
      %p425 = scmp.eq.s32.totalorder %s29, 0
      %p426 = por %p424, %p425
      %s428 = sadd.s32 %s427, 1
      %p431 = scmp.eq.s32.totalorder %s23, 1
      %p432 = scmp.ne.s32.totalorder %s427, %s429
      %p433 = scmp.eq.s32.totalorder %s23, 0
      %p434 = por %p432, %p433
      %p435 = scmp.ne.s32.totalorder %s427, %s429
      %p436 = scmp.eq.s32.totalorder %s28, 1
      %p437 = por %p435, %p436
      %p438 = scmp.ne.s32.totalorder %s429, %s430
      %p439 = scmp.eq.s32.totalorder %s28, 0
      %p440 = por %p438, %p439
      %p441 = scmp.ne.s32.totalorder %s429, %s430
      %p442 = scmp.eq.s32.totalorder %s29, 1
      %p443 = por %p441, %p442
      %p445 = scmp.ne.s32.totalorder %s430, %s444
      %p446 = scmp.eq.s32.totalorder %s29, 0
      %p447 = por %p445, %p446
      %p448 = scmp.le.s32.totalorder 1, %s23
      %p449 = scmp.lt.s32.totalorder %s23, 3
      %p450 = pnand %p448, %p449
      %p451 = pneg %p450
      // Predicated region
      $region9: #{_bert_forward.1} parent=5 // pred_check
        _
      $region10: #{_bert_forward.1} parent=5 // pred_check_branch
        %453 = sbr.rel (%p450) target = $region12
      $region11: #{_bert_forward.1} parent=5 // pred_region
        %s454 = ssub.s32 %s23, 1
        // Predicated region
        $region13: #{_bert_forward.1} parent=11 // pred_check
          %p455 = pneg %p44
        $region14: #{_bert_forward.1} parent=11 // pred_check_branch
          %457 = sbr.rel (%p455) target = $region16
        $region15: #{_bert_forward.1} parent=11 // pred_region
          _
        $region16: #{_bert_forward.1} parent=11 // pred_fallthru
          _
        // Predicated region
        $region17: #{_bert_forward.1} parent=11 // pred_check
          %p458 = pneg %p65
        $region18: #{_bert_forward.1} parent=11 // pred_check_branch
          %460 = sbr.rel (%p458) target = $region20
        $region19: #{_bert_forward.1} parent=11 // pred_region
          _
        $region20: #{_bert_forward.1} parent=11 // pred_fallthru
          _
        // Predicated region
        $region21: #{_bert_forward.1} parent=11 // pred_check
          %p461 = pneg %p86
        $region22: #{_bert_forward.1} parent=11 // pred_check_branch
          %463 = sbr.rel (%p461) target = $region24
        $region23: #{_bert_forward.1} parent=11 // pred_region
          _
        $region24: #{_bert_forward.1} parent=11 // pred_fallthru
          _
        // Predicated region
        $region25: #{_bert_forward.1} parent=11 // pred_check
          %p464 = pneg %p107
        $region26: #{_bert_forward.1} parent=11 // pred_check_branch
          %466 = sbr.rel (%p464) target = $region28
        $region27: #{_bert_forward.1} parent=11 // pred_region
          _
        $region28: #{_bert_forward.1} parent=11 // pred_fallthru
          _
      $region12: #{_bert_forward.1} parent=5 // pred_fallthru
        _
      %p467 = scmp.lt.s32.totalorder %s23, 2
      // Predicated region
      $region29: #{_bert_forward.1} parent=5 // pred_check
        %p468 = pneg %p467
      $region30: #{_bert_forward.1} parent=5 // pred_check_branch
        %470 = sbr.rel (%p468) target = $region32
      $region31: #{_bert_forward.1} parent=5 // pred_region
        // Predicated region
        $region33: #{_bert_forward.1} parent=31 // pred_check
          %p471 = pneg %p127
        $region34: #{_bert_forward.1} parent=31 // pred_check_branch
          %473 = sbr.rel (%p471) target = $region36
        $region35: #{_bert_forward.1} parent=31 // pred_region
          %p474 = scmp.lt.s32.totalorder %s23, 1
          %s475 = scalar_select %p474, %s23, 1
          %s476 = smul.addr %s475, 48
          %s477 = smul.addr %s476, 4
          %s478 = scalar_lea.vmem %s4, %s477
        $region36: #{_bert_forward.1} parent=31 // pred_fallthru
          _
        // Predicated region
        $region37: #{_bert_forward.1} parent=31 // pred_check
          %p479 = pneg %p153
        $region38: #{_bert_forward.1} parent=31 // pred_check_branch
          %481 = sbr.rel (%p479) target = $region40
        $region39: #{_bert_forward.1} parent=31 // pred_region
          %p482 = scmp.lt.s32.totalorder %s23, 1
          %s483 = scalar_select %p482, %s23, 1
          %s484 = smul.addr %s483, 3
          %s485 = scalar_lea.vmem %s5, %s484
        $region40: #{_bert_forward.1} parent=31 // pred_fallthru
          _
        // Predicated region
        $region41: #{_bert_forward.1} parent=31 // pred_check
          %p486 = pneg %p179
        $region42: #{_bert_forward.1} parent=31 // pred_check_branch
          %488 = sbr.rel (%p486) target = $region44
        $region43: #{_bert_forward.1} parent=31 // pred_region
          %p489 = scmp.lt.s32.totalorder %s23, 1
          %s490 = scalar_select %p489, %s23, 1
          %s491 = smul.addr %s490, 16
          %s492 = smul.addr %s491, 4
          %s493 = scalar_lea.vmem %s6, %s492
        $region44: #{_bert_forward.1} parent=31 // pred_fallthru
          _
        // Predicated region
        $region45: #{_bert_forward.1} parent=31 // pred_check
          %p494 = pneg %p205
        $region46: #{_bert_forward.1} parent=31 // pred_check_branch
          %496 = sbr.rel (%p494) target = $region48
        $region47: #{_bert_forward.1} parent=31 // pred_region
          %p497 = scmp.lt.s32.totalorder %s23, 1
          %s498 = scalar_select %p497, %s23, 1
          %s499 = scalar_lea.vmem %s7, %s498
        $region48: #{_bert_forward.1} parent=31 // pred_fallthru
          _
        // Predicated region
        $region49: #{_bert_forward.1} parent=31 // pred_check
          %p500 = pneg %p231
        $region50: #{_bert_forward.1} parent=31 // pred_check_branch
          %502 = sbr.rel (%p500) target = $region52
        $region51: #{_bert_forward.1} parent=31 // pred_region
          %p503 = scmp.lt.s32.totalorder %s23, 1
          %s504 = scalar_select %p503, %s23, 1
          %s505 = scalar_lea.vmem %s8, %s504
        $region52: #{_bert_forward.1} parent=31 // pred_fallthru
          _
        // Predicated region
        $region53: #{_bert_forward.1} parent=31 // pred_check
          %p506 = pneg %p257
        $region54: #{_bert_forward.1} parent=31 // pred_check_branch
          %508 = sbr.rel (%p506) target = $region56
        $region55: #{_bert_forward.1} parent=31 // pred_region
          %p509 = scmp.lt.s32.totalorder %s23, 1
          %s510 = scalar_select %p509, %s23, 1
          %s511 = scalar_lea.vmem %s9, %s510
        $region56: #{_bert_forward.1} parent=31 // pred_fallthru
          _
        // Predicated region
        $region57: #{_bert_forward.1} parent=31 // pred_check
          %p512 = pneg %p283
        $region58: #{_bert_forward.1} parent=31 // pred_check_branch
          %514 = sbr.rel (%p512) target = $region60
        $region59: #{_bert_forward.1} parent=31 // pred_region
          %p515 = scmp.lt.s32.totalorder %s23, 1
          %s516 = scalar_select %p515, %s23, 1
          %s517 = smul.addr %s516, 32
          %s518 = smul.addr %s517, 4
          %s519 = scalar_lea.vmem %s10, %s518
        $region60: #{_bert_forward.1} parent=31 // pred_fallthru
          _
        // Predicated region
        $region61: #{_bert_forward.1} parent=31 // pred_check
          %p520 = pneg %p309
        $region62: #{_bert_forward.1} parent=31 // pred_check_branch
          %522 = sbr.rel (%p520) target = $region64
        $region63: #{_bert_forward.1} parent=31 // pred_region
          %p523 = scmp.lt.s32.totalorder %s23, 1
          %s524 = scalar_select %p523, %s23, 1
          %s525 = smul.addr %s524, 2
          %s526 = scalar_lea.vmem %s11, %s525
        $region64: #{_bert_forward.1} parent=31 // pred_fallthru
          _
        // Predicated region
        $region65: #{_bert_forward.1} parent=31 // pred_check
          %p527 = pneg %p335
        $region66: #{_bert_forward.1} parent=31 // pred_check_branch
          %529 = sbr.rel (%p527) target = $region68
        $region67: #{_bert_forward.1} parent=31 // pred_region
          %p530 = scmp.lt.s32.totalorder %s23, 1
          %s531 = scalar_select %p530, %s23, 1
          %s532 = smul.addr %s531, 32
          %s533 = smul.addr %s532, 4
          %s534 = scalar_lea.vmem %s12, %s533
        $region68: #{_bert_forward.1} parent=31 // pred_fallthru
          _
        // Predicated region
        $region69: #{_bert_forward.1} parent=31 // pred_check
          %p535 = pneg %p361
        $region70: #{_bert_forward.1} parent=31 // pred_check_branch
          %537 = sbr.rel (%p535) target = $region72
        $region71: #{_bert_forward.1} parent=31 // pred_region
          %p538 = scmp.lt.s32.totalorder %s23, 1
          %s539 = scalar_select %p538, %s23, 1
          %s540 = scalar_lea.vmem %s13, %s539
        $region72: #{_bert_forward.1} parent=31 // pred_fallthru
          _
        // Predicated region
        $region73: #{_bert_forward.1} parent=31 // pred_check
          %p541 = pneg %p387
        $region74: #{_bert_forward.1} parent=31 // pred_check_branch
          %543 = sbr.rel (%p541) target = $region76
        $region75: #{_bert_forward.1} parent=31 // pred_region
          %p544 = scmp.lt.s32.totalorder %s23, 1
          %s545 = scalar_select %p544, %s23, 1
          %s546 = scalar_lea.vmem %s14, %s545
        $region76: #{_bert_forward.1} parent=31 // pred_fallthru
          _
        // Predicated region
        $region77: #{_bert_forward.1} parent=31 // pred_check
          %p547 = pneg %p413
        $region78: #{_bert_forward.1} parent=31 // pred_check_branch
          %549 = sbr.rel (%p547) target = $region80
        $region79: #{_bert_forward.1} parent=31 // pred_region
          %p550 = scmp.lt.s32.totalorder %s23, 1
          %s551 = scalar_select %p550, %s23, 1
          %s552 = scalar_lea.vmem %s15, %s551
        $region80: #{_bert_forward.1} parent=31 // pred_fallthru
          _
      $region32: #{_bert_forward.1} parent=5 // pred_fallthru
        _
      %p553 = scmp.le.s32.totalorder 1, %s23
      %p554 = scmp.lt.s32.totalorder %s23, 3
      %p555 = pnand %p553, %p554
      %p556 = pneg %p555
      // Predicated region
      $region81: #{_bert_forward.1} parent=5 // pred_check
        _
      $region82: #{_bert_forward.1} parent=5 // pred_check_branch
        %558 = sbr.rel (%p555) target = $region84
      $region83: #{_bert_forward.1} parent=5 // pred_region
        %s559 = ssub.s32 %s23, 1
        %p560 = pneg %p44
        %p561 = pneg %p41
        %p562 = pneg %p65
        %p563 = pneg %p62
        %p564 = pneg %p86
        %p565 = pneg %p83
        %p566 = pneg %p107
        %p567 = pneg %p104
        %p568 = scmp.lt.s32.totalorder %s28, 1
        %s569 = scalar_select %p568, %s28, 1
        %s570 = smul.addr %s569, 48
        %s571 = smul.addr %s570, 4
        %s572 = scalar_lea.vmem %s4, %s571
        %p573 = pneg %p133
        %p574 = pneg %p130
        %p575 = scmp.lt.s32.totalorder %s28, 1
        %s576 = scalar_select %p575, %s28, 1
        %s577 = smul.addr %s576, 3
        %s578 = scalar_lea.vmem %s5, %s577
        %p579 = pneg %p159
        %p580 = pneg %p156
        %p581 = scmp.lt.s32.totalorder %s28, 1
        %s582 = scalar_select %p581, %s28, 1
        %s583 = smul.addr %s582, 16
        %s584 = smul.addr %s583, 4
        %s585 = scalar_lea.vmem %s6, %s584
        %p586 = pneg %p185
        %p587 = pneg %p182
        %p588 = scmp.lt.s32.totalorder %s28, 1
        %s589 = scalar_select %p588, %s28, 1
        %s590 = scalar_lea.vmem %s7, %s589
        %p591 = pneg %p211
        %p592 = pneg %p208
        %p593 = scmp.lt.s32.totalorder %s28, 1
        %s594 = scalar_select %p593, %s28, 1
        %s595 = scalar_lea.vmem %s8, %s594
        %p596 = pneg %p237
        %p597 = pneg %p234
        %p598 = scmp.lt.s32.totalorder %s28, 1
        %s599 = scalar_select %p598, %s28, 1
        %s600 = scalar_lea.vmem %s9, %s599
        %p601 = pneg %p263
        %p602 = pneg %p260
        %p603 = scmp.lt.s32.totalorder %s28, 1
        %s604 = scalar_select %p603, %s28, 1
        %s605 = smul.addr %s604, 32
        %s606 = smul.addr %s605, 4
        %s607 = scalar_lea.vmem %s10, %s606
        %p608 = pneg %p289
        %p609 = pneg %p286
        %p610 = scmp.lt.s32.totalorder %s28, 1
        %s611 = scalar_select %p610, %s28, 1
        %s612 = smul.addr %s611, 2
        %s613 = scalar_lea.vmem %s11, %s612
        %p614 = pneg %p315
        %p615 = pneg %p312
        %p616 = scmp.lt.s32.totalorder %s28, 1
        %s617 = scalar_select %p616, %s28, 1
        %s618 = smul.addr %s617, 32
        %s619 = smul.addr %s618, 4
        %s620 = scalar_lea.vmem %s12, %s619
        %p621 = pneg %p341
        %p622 = pneg %p338
        %p623 = scmp.lt.s32.totalorder %s28, 1
        %s624 = scalar_select %p623, %s28, 1
        %s625 = scalar_lea.vmem %s13, %s624
        %p626 = pneg %p367
        %p627 = pneg %p364
        %p628 = scmp.lt.s32.totalorder %s28, 1
        %s629 = scalar_select %p628, %s28, 1
        %s630 = scalar_lea.vmem %s14, %s629
        %p631 = pneg %p393
        %p632 = pneg %p390
        %p633 = scmp.lt.s32.totalorder %s28, 1
        %s634 = scalar_select %p633, %s28, 1
        %s635 = scalar_lea.vmem %s15, %s634
        %p636 = pneg %p419
        %p637 = pneg %p416
        %p638 = pneg %p440
        %p639 = pneg %p437
        %p640 = scmp.lt.s32.totalorder %s28, 1
        %s641 = scalar_select %p640, %s28, 1
        %s642 = smul.addr %s641, 48
        %s643 = smul.addr %s642, 4
        %s644 = scalar_lea.vmem %s4, %s643
        %p645 = scmp.lt.s32.totalorder %s28, 1
        %s646 = scalar_select %p645, %s28, 1
        %s647 = smul.addr %s646, 3
        %s648 = scalar_lea.vmem %s5, %s647
        %p649 = scmp.lt.s32.totalorder %s28, 1
        %s650 = scalar_select %p649, %s28, 1
        %s651 = smul.addr %s650, 16
        %s652 = smul.addr %s651, 4
        %s653 = scalar_lea.vmem %s6, %s652
        %p654 = scmp.lt.s32.totalorder %s28, 1
        %s655 = scalar_select %p654, %s28, 1
        %s656 = scalar_lea.vmem %s7, %s655
        %p657 = scmp.lt.s32.totalorder %s28, 1
        %s658 = scalar_select %p657, %s28, 1
        %s659 = scalar_lea.vmem %s8, %s658
        %p660 = scmp.lt.s32.totalorder %s28, 1
        %s661 = scalar_select %p660, %s28, 1
        %s662 = scalar_lea.vmem %s9, %s661
        %p663 = scmp.lt.s32.totalorder %s28, 1
        %s664 = scalar_select %p663, %s28, 1
        %s665 = smul.addr %s664, 32
        %s666 = smul.addr %s665, 4
        %s667 = scalar_lea.vmem %s10, %s666
        %p668 = scmp.lt.s32.totalorder %s28, 1
        %s669 = scalar_select %p668, %s28, 1
        %s670 = smul.addr %s669, 2
        %s671 = scalar_lea.vmem %s11, %s670
        %p672 = scmp.lt.s32.totalorder %s28, 1
        %s673 = scalar_select %p672, %s28, 1
        %s674 = smul.addr %s673, 32
        %s675 = smul.addr %s674, 4
        %s676 = scalar_lea.vmem %s12, %s675
        %p677 = scmp.lt.s32.totalorder %s28, 1
        %s678 = scalar_select %p677, %s28, 1
        %s679 = scalar_lea.vmem %s13, %s678
        %p680 = scmp.lt.s32.totalorder %s28, 1
        %s681 = scalar_select %p680, %s28, 1
        %s682 = scalar_lea.vmem %s14, %s681
        %p683 = scmp.lt.s32.totalorder %s28, 1
        %s684 = scalar_select %p683, %s28, 1
        %s685 = scalar_lea.vmem %s15, %s684
        %p687 = scmp.eq.s32.totalorder %s28, 0
        // Predicated region
        $region85: #{_bert_forward.1} parent=83 // pred_check
          %p688 = pneg %p687
        $region86: #{_bert_forward.1} parent=83 // pred_check_branch
          %690 = sbr.rel (%p688) target = $region88
        $region87: #{_bert_forward.1} parent=83 // pred_region
          %v691 = vld [vmem:[%s0] sm:$0xff]
          %v692 = vld [vmem:[%s0 + $0x8] sm:$0xff]
          %v693 = vld [vmem:[%s2] sm:$0x1]
          %v694 = vld [vmem:[%s3] sm:$0x1]
          %695 = vadd.xlane.f32.xlu0 %v691
          %v696 = vpop.xlane.xlu0 %695
          %697 = vadd.xlane.f32.xlu0 %v692
          %v698 = vpop.xlane.xlu0 %697
          %v699 = vrcp.pop 128.0
          %v700 = vmul.f32 %v696, %v699
          %v701 = vmul.f32 %v698, %v699
          %v702 = vsub.f32 %v691, %v700
          %v703 = vsub.f32 %v692, %v701
          %v704 = vmul.f32 %v702, %v702
          %v705 = vmul.f32 %v703, %v703
          %706 = vadd.xlane.f32.xlu0 %v704
          %v707 = vpop.xlane.xlu0 %706
          %708 = vadd.xlane.f32.xlu0 %v705
          %v709 = vpop.xlane.xlu0 %708
          %v710 = vmul.f32 %v707, %v699
          %v711 = vmul.f32 %v709, %v699
          %v712 = vadd.f32 %v710, 1e-12
          %v713 = vadd.f32 %v711, 1e-12
          %v714 = vrsqrt.pop %v712
          %v715 = vrsqrt.pop %v713
          %v716 = vmul.f32 %v702, %v714
          %v717 = vmul.f32 %v703, %v715
          %v719 = vlaneseq
          %v720 = vshrl.u32 %v719, 7
          %v721 = vsub.s32 0, %v720
          %v722 = vrot.slane %v693, %v721
          %v724 = vmul.f32 %v716, %v722
          %v725 = vmul.f32 %v717, %v722
          %v727 = vlaneseq
          %v728 = vshrl.u32 %v727, 7
          %v729 = vsub.s32 0, %v728
          %v730 = vrot.slane %v694, %v729
          %v732 = vadd.f32 %v724, %v730
          %v733 = vadd.f32 %v725, %v730
          %734 = vst [vmem:[#allocation2] sm:$0xff] %v732
          %735 = vst [vmem:[#allocation2 + $0x8] sm:$0xff] %v733
        $region88: #{_bert_forward.1} parent=83 // pred_fallthru
          _
        %v736 = vld [vmem:[#allocation2] sm:$0xff]
        %v737 = vld [vmem:[#allocation2 + $0x8] sm:$0xff]
        %v738 = vpack.c.bf16 %v737, %v736
        %v739 = vld [vmem:[%s644] sm:$0xff]
        %v740 = vld [vmem:[%s644 + $0x8] sm:$0xf]
        %v741 = vld [vmem:[%s644 + $0xc] sm:$0xff]
        %v742 = vld [vmem:[%s644 + $0x14] sm:$0xf]
        %v743 = vld [vmem:[%s644 + $0x18] sm:$0xff]
        %v744 = vld [vmem:[%s644 + $0x20] sm:$0xf]
        %v745 = vld [vmem:[%s644 + $0x24] sm:$0xff]
        %v746 = vld [vmem:[%s644 + $0x2c] sm:$0xf]
        %v747 = vld [vmem:[%s644 + $0x30] sm:$0xff]
        %v748 = vld [vmem:[%s644 + $0x38] sm:$0xf]
        %v749 = vld [vmem:[%s644 + $0x3c] sm:$0xff]
        %v750 = vld [vmem:[%s644 + $0x44] sm:$0xf]
        %v751 = vld [vmem:[%s644 + $0x48] sm:$0xff]
        %v752 = vld [vmem:[%s644 + $0x50] sm:$0xf]
        %v753 = vld [vmem:[%s644 + $0x54] sm:$0xff]
        %v754 = vld [vmem:[%s644 + $0x5c] sm:$0xf]
        %v755 = vld [vmem:[%s644 + $0x60] sm:$0xff]
        %v756 = vld [vmem:[%s644 + $0x68] sm:$0xf]
        %v757 = vld [vmem:[%s644 + $0x6c] sm:$0xff]
        %v758 = vld [vmem:[%s644 + $0x74] sm:$0xf]
        %v759 = vld [vmem:[%s644 + $0x78] sm:$0xff]
        %v760 = vld [vmem:[%s644 + $0x80] sm:$0xf]
        %v761 = vld [vmem:[%s644 + $0x84] sm:$0xff]
        %v762 = vld [vmem:[%s644 + $0x8c] sm:$0xf]
        %v763 = vld [vmem:[%s644 + $0x90] sm:$0xff]
        %v764 = vld [vmem:[%s644 + $0x98] sm:$0xf]
        %v765 = vld [vmem:[%s644 + $0x9c] sm:$0xff]
        %v766 = vld [vmem:[%s644 + $0xa4] sm:$0xf]
        %v767 = vld [vmem:[%s644 + $0xa8] sm:$0xff]
        %v768 = vld [vmem:[%s644 + $0xb0] sm:$0xf]
        %v769 = vld [vmem:[%s644 + $0xb4] sm:$0xff]
        %v770 = vld [vmem:[%s644 + $0xbc] sm:$0xf]
        %v771 = vld [vmem:[%s648] sm:$0x7]
        %v773 = vlaneseq
        %v774 = vshrl.u32 %v773, 7
        %v775 = vsub.s32 0, %v774
        %v776 = vrot.slane %v771, %v775
        %v777 = vlaneseq
        %v778 = vshrl.u32 %v777, 7
        %v779 = vsub.s32 1, %v778
        %v780 = vrot.slane %v771, %v779
        %v781 = vlaneseq
        %v782 = vshrl.u32 %v781, 7
        %v783 = vsub.s32 2, %v782
        %v784 = vrot.slane %v771, %v783
        %v820 = vunpack.c.l.b16 %v739
        %v821 = vunpack.c.h.b16 %v739
        %v822 = vunpack.c.l.b16 %v740
        %v823 = vunpack.c.l.b16 %v741
        %v824 = vunpack.c.h.b16 %v741
        %v825 = vunpack.c.l.b16 %v742
        %v826 = vunpack.c.l.b16 %v743
        %v827 = vunpack.c.h.b16 %v743
        %v828 = vunpack.c.l.b16 %v744
        %v829 = vunpack.c.l.b16 %v745
        %v830 = vunpack.c.h.b16 %v745
        %v831 = vunpack.c.l.b16 %v746
        %v832 = vunpack.c.l.b16 %v747
        %v833 = vunpack.c.h.b16 %v747
        %v834 = vunpack.c.l.b16 %v748
        %v835 = vunpack.c.l.b16 %v749
        %v836 = vunpack.c.h.b16 %v749
        %v837 = vunpack.c.l.b16 %v750
        %v838 = vunpack.c.l.b16 %v751
        %v839 = vunpack.c.h.b16 %v751
        %v840 = vunpack.c.l.b16 %v752
        %v841 = vunpack.c.l.b16 %v753
        %v842 = vunpack.c.h.b16 %v753
        %v843 = vunpack.c.l.b16 %v754
        %v844 = vunpack.c.l.b16 %v755
        %v845 = vunpack.c.h.b16 %v755
        %v846 = vunpack.c.l.b16 %v756
        %v847 = vunpack.c.l.b16 %v757
        %v848 = vunpack.c.h.b16 %v757
        %v849 = vunpack.c.l.b16 %v758
        %v850 = vunpack.c.l.b16 %v759
        %v851 = vunpack.c.h.b16 %v759
        %v852 = vunpack.c.l.b16 %v760
        %v853 = vunpack.c.l.b16 %v761
        %v854 = vunpack.c.h.b16 %v761
        %v855 = vunpack.c.l.b16 %v762
        %v856 = vunpack.c.l.b16 %v763
        %v857 = vunpack.c.h.b16 %v763
        %v858 = vunpack.c.l.b16 %v764
        %v859 = vunpack.c.l.b16 %v765
        %v860 = vunpack.c.h.b16 %v765
        %v861 = vunpack.c.l.b16 %v766
        %v862 = vunpack.c.l.b16 %v767
        %v863 = vunpack.c.h.b16 %v767
        %v864 = vunpack.c.l.b16 %v768
        %v865 = vunpack.c.l.b16 %v769
        %v866 = vunpack.c.h.b16 %v769
        %v867 = vunpack.c.l.b16 %v770
        %v868 = vpack.c.b16 %v823, %v820
        %v869 = vpack.c.b16 %v824, %v821
        %v870 = vpack.c.b16 %v825, %v822
        %v871 = vpack.c.b16 %v829, %v826
        %v872 = vpack.c.b16 %v830, %v827
        %v873 = vpack.c.b16 %v831, %v828
        %v874 = vpack.c.b16 %v835, %v832
        %v875 = vpack.c.b16 %v836, %v833
        %v876 = vpack.c.b16 %v837, %v834
        %v877 = vpack.c.b16 %v841, %v838
        %v878 = vpack.c.b16 %v842, %v839
        %v879 = vpack.c.b16 %v843, %v840
        %v880 = vpack.c.b16 %v847, %v844
        %v881 = vpack.c.b16 %v848, %v845
        %v882 = vpack.c.b16 %v849, %v846
        %v883 = vpack.c.b16 %v853, %v850
        %v884 = vpack.c.b16 %v854, %v851
        %v885 = vpack.c.b16 %v855, %v852
        %v886 = vpack.c.b16 %v859, %v856
        %v887 = vpack.c.b16 %v860, %v857
        %v888 = vpack.c.b16 %v861, %v858
        %v889 = vpack.c.b16 %v865, %v862
        %v890 = vpack.c.b16 %v866, %v863
        %v891 = vpack.c.b16 %v867, %v864
        %916 = vmatprep.subr.bf16.mxu0 %v890
        %917 = vmatpush1.bf16.msra.mxu0 %v889
        %918 = vmatprep.subr.bf16.mxu0 %v887
        %919 = vmatpush1.bf16.msra.mxu0 %v886
        %920 = vmatprep.subr.bf16.mxu0 %v884
        %921 = vmatpush1.bf16.msra.mxu0 %v883
        %922 = vmatprep.subr.bf16.mxu0 %v881
        %923 = vmatpush1.bf16.msra.mxu0 %v880
        %924 = vmatprep.subr.bf16.mxu0 %v878
        %925 = vmatpush1.bf16.msra.mxu0 %v877
        %926 = vmatprep.subr.bf16.mxu0 %v875
        %927 = vmatpush1.bf16.msra.mxu0 %v874
        %928 = vmatprep.subr.bf16.mxu0 %v872
        %929 = vmatpush1.bf16.msra.mxu0 %v871
        %930 = vmatprep.subr.bf16.mxu0 %v869
        %931 = vmatpush1.bf16.msra.mxu0 %v868
        %932 = vmatprep.subr.bf16.mxu0 0
        %933 = vmatpush2.bf16.msra.mxu0 0
        %934 = vmatprep.subr.bf16.mxu0 0
        %935 = vmatpush2.bf16.msra.mxu0 0
        %936 = vmatprep.subr.bf16.mxu0 0
        %937 = vmatpush2.bf16.msra.mxu0 0
        %938 = vmatprep.subr.bf16.mxu0 0
        %939 = vmatpush2.bf16.msra.mxu0 0
        %940 = vmatprep.subr.bf16.mxu0 0
        %941 = vmatpush2.bf16.msra.mxu0 0
        %942 = vmatprep.subr.bf16.mxu0 0
        %943 = vmatpush2.bf16.msra.mxu0 0
        %944 = vmatprep.subr.bf16.mxu0 0
        %945 = vmatpush2.bf16.msra.mxu0 0
        %946 = vmatprep.subr.bf16.mxu0 0
        %947 = vmatpush2.bf16.msra.mxu0 0
        %948 = vmatprep.mubr.bf16.mxu0 0
        %949 = vmatmul.mubr.bf16.gmra.mxu0 %v738
        %v950 = vpop.f32.mrf.mxu0
        %v951 = vadd.f32 %v776, %v950
        %v952 = vpop.f32.mrf.mxu0
        %v953 = vadd.f32 %v780, %v952
        %v954 = vpop.f32.mrf.mxu0
        %v955 = vadd.f32 %v776, %v954
        %v956 = vpop.f32.mrf.mxu0
        %v957 = vadd.f32 %v780, %v956
        %958 = vdwg.mxu0
        %959 = vmatprep.subr.bf16.mxu0 0
        %960 = vmatpush1.bf16.msra.mxu0 %v891
        %961 = vmatprep.subr.bf16.mxu0 0
        %962 = vmatpush1.bf16.msra.mxu0 %v888
        %963 = vmatprep.subr.bf16.mxu0 0
        %964 = vmatpush1.bf16.msra.mxu0 %v885
        %965 = vmatprep.subr.bf16.mxu0 0
        %966 = vmatpush1.bf16.msra.mxu0 %v882
        %967 = vmatprep.subr.bf16.mxu0 0
        %968 = vmatpush1.bf16.msra.mxu0 %v879
        %969 = vmatprep.subr.bf16.mxu0 0
        %970 = vmatpush1.bf16.msra.mxu0 %v876
        %971 = vmatprep.subr.bf16.mxu0 0
        %972 = vmatpush1.bf16.msra.mxu0 %v873
        %973 = vmatprep.subr.bf16.mxu0 0
        %974 = vmatpush1.bf16.msra.mxu0 %v870
        %975 = vmatprep.subr.bf16.mxu0 0
        %976 = vmatpush2.bf16.msra.mxu0 0
        %977 = vmatprep.subr.bf16.mxu0 0
        %978 = vmatpush2.bf16.msra.mxu0 0
        %979 = vmatprep.subr.bf16.mxu0 0
        %980 = vmatpush2.bf16.msra.mxu0 0
        %981 = vmatprep.subr.bf16.mxu0 0
        %982 = vmatpush2.bf16.msra.mxu0 0
        %983 = vmatprep.subr.bf16.mxu0 0
        %984 = vmatpush2.bf16.msra.mxu0 0
        %985 = vmatprep.subr.bf16.mxu0 0
        %986 = vmatpush2.bf16.msra.mxu0 0
        %987 = vmatprep.subr.bf16.mxu0 0
        %988 = vmatpush2.bf16.msra.mxu0 0
        %989 = vmatprep.subr.bf16.mxu0 0
        %990 = vmatpush2.bf16.msra.mxu0 0
        %991 = vmatprep.mubr.bf16.mxu0 0
        %992 = vmatmul.mubr.bf16.gmra.mxu0 %v738
        %v993 = vpop.f32.mrf.mxu0
        %v994 = vadd.f32 %v784, %v993
        %v995 = vpop.f32.mrf.mxu0
        %v996 = vpop.f32.mrf.mxu0
        %v997 = vadd.f32 %v784, %v996
        %v998 = vpop.f32.mrf.mxu0
        %999 = vdwg.mxu0
        %v1000 = vld [vmem:[%s653] sm:$0xf]
        %v1001 = vld [vmem:[%s653 + $0x4] sm:$0xf]
        %v1002 = vld [vmem:[%s653 + $0x8] sm:$0xf]
        %v1003 = vld [vmem:[%s653 + $0xc] sm:$0xf]
        %v1004 = vld [vmem:[%s653 + $0x10] sm:$0xf]
        %v1005 = vld [vmem:[%s653 + $0x14] sm:$0xf]
        %v1006 = vld [vmem:[%s653 + $0x18] sm:$0xf]
        %v1007 = vld [vmem:[%s653 + $0x1c] sm:$0xf]
        %v1008 = vld [vmem:[%s653 + $0x20] sm:$0xf]
        %v1009 = vld [vmem:[%s653 + $0x24] sm:$0xf]
        %v1010 = vld [vmem:[%s653 + $0x28] sm:$0xf]
        %v1011 = vld [vmem:[%s653 + $0x2c] sm:$0xf]
        %v1012 = vld [vmem:[%s653 + $0x30] sm:$0xf]
        %v1013 = vld [vmem:[%s653 + $0x34] sm:$0xf]
        %v1014 = vld [vmem:[%s653 + $0x38] sm:$0xf]
        %v1015 = vld [vmem:[%s653 + $0x3c] sm:$0xf]
        %v1016 = vld [vmem:[%s1] sm:$0xff]
        %v1017 = vpack.c.bf16 %v951, %v951
        %v1018 = vpack.c.bf16 %v953, %v953
        %v1019 = vpack.c.bf16 %v994, %v994
        %vm1020 = vcmask 261120
        %v1022 = vsel %vm1020, %v1017, 0
        %v1025 = vsel %vm1020, %v1018, 0
        %1027 = vmatprep.subr.bf16.mxu0 0
        %1028 = vmatpush1.bf16.xpose.msra.mxu0 0
        %1029 = vmatprep.subr.bf16.mxu0 0
        %1030 = vmatpush1.bf16.xpose.msra.mxu0 0
        %1031 = vmatprep.subr.bf16.mxu0 0
        %1032 = vmatpush1.bf16.xpose.msra.mxu0 0
        %1033 = vmatprep.subr.bf16.mxu0 0
        %1034 = vmatpush1.bf16.xpose.msra.mxu0 0
        %1035 = vmatprep.subr.bf16.mxu0 0
        %1036 = vmatpush1.bf16.xpose.msra.mxu0 0
        %1037 = vmatprep.subr.bf16.mxu0 0
        %1038 = vmatpush1.bf16.xpose.msra.mxu0 0
        %1039 = vmatprep.subr.bf16.mxu0 0
        %1040 = vmatpush1.bf16.xpose.msra.mxu0 0
        %1041 = vmatprep.subr.bf16.mxu0 0
        %1042 = vmatpush1.bf16.xpose.msra.mxu0 %v1025
        %1043 = vmatprep.subr.bf16.mxu0 0
        %1044 = vmatpush2.bf16.xpose.msra.mxu0 0
        %1045 = vmatprep.subr.bf16.mxu0 0
        %1046 = vmatpush2.bf16.xpose.msra.mxu0 0
        %1047 = vmatprep.subr.bf16.mxu0 0
        %1048 = vmatpush2.bf16.xpose.msra.mxu0 0
        %1049 = vmatprep.subr.bf16.mxu0 0
        %1050 = vmatpush2.bf16.xpose.msra.mxu0 0
        %1051 = vmatprep.subr.bf16.mxu0 0
        %1052 = vmatpush2.bf16.xpose.msra.mxu0 0
        %1053 = vmatprep.subr.bf16.mxu0 0
        %1054 = vmatpush2.bf16.xpose.msra.mxu0 0
        %1055 = vmatprep.subr.bf16.mxu0 0
        %1056 = vmatpush2.bf16.xpose.msra.mxu0 0
        %1057 = vmatprep.subr.bf16.mxu0 0
        %1058 = vmatpush2.bf16.xpose.msra.mxu0 0
        %1059 = vmatprep.mubr.bf16.mxu0 0
        %1060 = vmatmul.mubr.bf16.gmra.mxu0 %v1022
        %v1061 = vpop.f32.mrf.mxu0
        %v1062 = vadd.f32 0.0, %v1061
        %v1063 = vpop.f32.mrf.mxu0
        %v1064 = vpop.f32.mrf.mxu0
        %v1065 = vpop.f32.mrf.mxu0
        %1066 = vdwg.mxu0
        %v1067 = vmul.f32 %v1062, 0.17677669
        %v1068 = vadd.f32 %v1067, %v1016
        %vm1069 = vcmask 64512
        %v1070 = vsel %vm1069, %v1068, -inf
        %1071 = vmax.xlane.f32.xlu0 %v1070
        %v1072 = vpop.xlane.xlu0 %1071
        %v1073 = vsub.f32 %v1068, %v1072
        %v1074 = vmul.f32 %v1073, 1.442695
        %v1075 = vpow.pop %v1074
        %v1076 = vsel %vm1069, %v1075, 0.0
        %1077 = vadd.xlane.f32.xlu0 %v1076
        %v1078 = vpop.xlane.xlu0 %1077
        %v1079 = vrcp.pop %v1078
        %v1080 = vmul.f32 %v1075, %v1079
        %v1081 = vpack.c.bf16 %v1080, %v1080
        %v1083 = vsel %vm1069, %v1081, 0
        %vm1085 = vcmask 1043456
        %v1087 = vsel %vm1085, %v1019, 0
        %1089 = vmatprep.subr.bf16.mxu0 0
        %1090 = vmatpush1.bf16.msra.mxu0 0
        %1091 = vmatprep.subr.bf16.mxu0 0
        %1092 = vmatpush1.bf16.msra.mxu0 0
        %1093 = vmatprep.subr.bf16.mxu0 0
        %1094 = vmatpush1.bf16.msra.mxu0 0
        %1095 = vmatprep.subr.bf16.mxu0 0
        %1096 = vmatpush1.bf16.msra.mxu0 0
        %1097 = vmatprep.subr.bf16.mxu0 0
        %1098 = vmatpush1.bf16.msra.mxu0 0
        %1099 = vmatprep.subr.bf16.mxu0 0
        %1100 = vmatpush1.bf16.msra.mxu0 0
        %1101 = vmatprep.subr.bf16.mxu0 0
        %1102 = vmatpush1.bf16.msra.mxu0 0
        %1103 = vmatprep.subr.bf16.mxu0 0
        %1104 = vmatpush1.bf16.msra.mxu0 %v1087
        %1105 = vmatprep.subr.bf16.mxu0 0
        %1106 = vmatpush2.bf16.msra.mxu0 0
        %1107 = vmatprep.subr.bf16.mxu0 0
        %1108 = vmatpush2.bf16.msra.mxu0 0
        %1109 = vmatprep.subr.bf16.mxu0 0
        %1110 = vmatpush2.bf16.msra.mxu0 0
        %1111 = vmatprep.subr.bf16.mxu0 0
        %1112 = vmatpush2.bf16.msra.mxu0 0
        %1113 = vmatprep.subr.bf16.mxu0 0
        %1114 = vmatpush2.bf16.msra.mxu0 0
        %1115 = vmatprep.subr.bf16.mxu0 0
        %1116 = vmatpush2.bf16.msra.mxu0 0
        %1117 = vmatprep.subr.bf16.mxu0 0
        %1118 = vmatpush2.bf16.msra.mxu0 0
        %1119 = vmatprep.subr.bf16.mxu0 0
        %1120 = vmatpush2.bf16.msra.mxu0 0
        %1121 = vmatprep.mubr.bf16.mxu0 0
        %1122 = vmatmul.mubr.bf16.gmra.mxu0 %v1083
        %v1123 = vpop.f32.mrf.mxu0
        %v1124 = vadd.f32 0.0, %v1123
        %v1125 = vpop.f32.mrf.mxu0
        %v1126 = vpop.f32.mrf.mxu0
        %v1127 = vpop.f32.mrf.mxu0
        %1128 = vdwg.mxu0
        %v1129 = vpack.c.bf16 %v1124, %v1124
        %1131 = vrot.lane.b32.xlu0 %v1017, 96
        %v1132 = vpop.permute.xlu0 %1131
        %1134 = vrot.lane.b32.xlu0 %v1018, 96
        %v1135 = vpop.permute.xlu0 %1134
        %v1137 = vsel %vm1020, %v1132, 0
        %v1140 = vsel %vm1020, %v1135, 0
        %1142 = vmatprep.subr.bf16.mxu0 0
        %1143 = vmatpush1.bf16.xpose.msra.mxu0 0
        %1144 = vmatprep.subr.bf16.mxu0 0
        %1145 = vmatpush1.bf16.xpose.msra.mxu0 0
        %1146 = vmatprep.subr.bf16.mxu0 0
        %1147 = vmatpush1.bf16.xpose.msra.mxu0 0
        %1148 = vmatprep.subr.bf16.mxu0 0
        %1149 = vmatpush1.bf16.xpose.msra.mxu0 0
        %1150 = vmatprep.subr.bf16.mxu0 0
        %1151 = vmatpush1.bf16.xpose.msra.mxu0 0
        %1152 = vmatprep.subr.bf16.mxu0 0
        %1153 = vmatpush1.bf16.xpose.msra.mxu0 0
        %1154 = vmatprep.subr.bf16.mxu0 0
        %1155 = vmatpush1.bf16.xpose.msra.mxu0 0
        %1156 = vmatprep.subr.bf16.mxu0 0
        %1157 = vmatpush1.bf16.xpose.msra.mxu0 %v1140
        %1158 = vmatprep.subr.bf16.mxu0 0
        %1159 = vmatpush2.bf16.xpose.msra.mxu0 0
        %1160 = vmatprep.subr.bf16.mxu0 0
        %1161 = vmatpush2.bf16.xpose.msra.mxu0 0
        %1162 = vmatprep.subr.bf16.mxu0 0
        %1163 = vmatpush2.bf16.xpose.msra.mxu0 0
        %1164 = vmatprep.subr.bf16.mxu0 0
        %1165 = vmatpush2.bf16.xpose.msra.mxu0 0
        %1166 = vmatprep.subr.bf16.mxu0 0
        %1167 = vmatpush2.bf16.xpose.msra.mxu0 0
        %1168 = vmatprep.subr.bf16.mxu0 0
        %1169 = vmatpush2.bf16.xpose.msra.mxu0 0
        %1170 = vmatprep.subr.bf16.mxu0 0
        %1171 = vmatpush2.bf16.xpose.msra.mxu0 0
        %1172 = vmatprep.subr.bf16.mxu0 0
        %1173 = vmatpush2.bf16.xpose.msra.mxu0 0
        %1174 = vmatprep.mubr.bf16.mxu0 0
        %1175 = vmatmul.mubr.bf16.gmra.mxu0 %v1137
        %v1176 = vpop.f32.mrf.mxu0
        %v1177 = vadd.f32 0.0, %v1176
        %v1178 = vpop.f32.mrf.mxu0
        %v1179 = vpop.f32.mrf.mxu0
        %v1180 = vpop.f32.mrf.mxu0
        %1181 = vdwg.mxu0
        %v1182 = vmul.f32 %v1177, 0.17677669
        %v1183 = vadd.f32 %v1182, %v1016
        %v1184 = vsel %vm1069, %v1183, -inf
        %1185 = vmax.xlane.f32.xlu0 %v1184
        %v1186 = vpop.xlane.xlu0 %1185
        %v1187 = vsub.f32 %v1183, %v1186
        %v1188 = vmul.f32 %v1187, 1.442695
        %v1189 = vpow.pop %v1188
        %v1190 = vsel %vm1069, %v1189, 0.0
        %1191 = vadd.xlane.f32.xlu0 %v1190
        %v1192 = vpop.xlane.xlu0 %1191
        %v1193 = vrcp.pop %v1192
        %v1194 = vmul.f32 %v1189, %v1193
        %v1195 = vpack.c.bf16 %v1194, %v1194
        %1197 = vrot.lane.b32.xlu0 %v1019, 96
        %v1198 = vpop.permute.xlu0 %1197
        %v1200 = vsel %vm1069, %v1195, 0
        %v1203 = vsel %vm1085, %v1198, 0
        %1205 = vmatprep.subr.bf16.mxu0 0
        %1206 = vmatpush1.bf16.msra.mxu0 0
        %1207 = vmatprep.subr.bf16.mxu0 0
        %1208 = vmatpush1.bf16.msra.mxu0 0
        %1209 = vmatprep.subr.bf16.mxu0 0
        %1210 = vmatpush1.bf16.msra.mxu0 0
        %1211 = vmatprep.subr.bf16.mxu0 0
        %1212 = vmatpush1.bf16.msra.mxu0 0
        %1213 = vmatprep.subr.bf16.mxu0 0
        %1214 = vmatpush1.bf16.msra.mxu0 0
        %1215 = vmatprep.subr.bf16.mxu0 0
        %1216 = vmatpush1.bf16.msra.mxu0 0
        %1217 = vmatprep.subr.bf16.mxu0 0
        %1218 = vmatpush1.bf16.msra.mxu0 0
        %1219 = vmatprep.subr.bf16.mxu0 0
        %1220 = vmatpush1.bf16.msra.mxu0 %v1203
        %1221 = vmatprep.subr.bf16.mxu0 0
        %1222 = vmatpush2.bf16.msra.mxu0 0
        %1223 = vmatprep.subr.bf16.mxu0 0
        %1224 = vmatpush2.bf16.msra.mxu0 0
        %1225 = vmatprep.subr.bf16.mxu0 0
        %1226 = vmatpush2.bf16.msra.mxu0 0
        %1227 = vmatprep.subr.bf16.mxu0 0
        %1228 = vmatpush2.bf16.msra.mxu0 0
        %1229 = vmatprep.subr.bf16.mxu0 0
        %1230 = vmatpush2.bf16.msra.mxu0 0
        %1231 = vmatprep.subr.bf16.mxu0 0
        %1232 = vmatpush2.bf16.msra.mxu0 0
        %1233 = vmatprep.subr.bf16.mxu0 0
        %1234 = vmatpush2.bf16.msra.mxu0 0
        %1235 = vmatprep.subr.bf16.mxu0 0
        %1236 = vmatpush2.bf16.msra.mxu0 0
        %1237 = vmatprep.mubr.bf16.mxu0 0
        %1238 = vmatmul.mubr.bf16.gmra.mxu0 %v1200
        %v1239 = vpop.f32.mrf.mxu0
        %v1240 = vadd.f32 0.0, %v1239
        %v1241 = vpop.f32.mrf.mxu0
        %v1242 = vpop.f32.mrf.mxu0
        %v1243 = vpop.f32.mrf.mxu0
        %1244 = vdwg.mxu0
        %v1245 = vpack.c.bf16 %v1240, %v1240
        %v1250 = vunpack.c.l.b16 %v1004
        %v1251 = vunpack.c.l.b16 %v1005
        %v1252 = vunpack.c.l.b16 %v1006
        %v1253 = vunpack.c.l.b16 %v1007
        %v1254 = vpack.c.b16 %v1251, %v1250
        %v1255 = vpack.c.b16 %v1253, %v1252
        %v1259 = vsel %vm1020, %v1245, 0
        %1261 = vmatprep.subr.bf16.mxu0 0
        %1262 = vmatpush1.bf16.msra.mxu0 0
        %1263 = vmatprep.subr.bf16.mxu0 0
        %1264 = vmatpush1.bf16.msra.mxu0 0
        %1265 = vmatprep.subr.bf16.mxu0 0
        %1266 = vmatpush1.bf16.msra.mxu0 0
        %1267 = vmatprep.subr.bf16.mxu0 0
        %1268 = vmatpush1.bf16.msra.mxu0 0
        %1269 = vmatprep.subr.bf16.mxu0 0
        %1270 = vmatpush1.bf16.msra.mxu0 0
        %1271 = vmatprep.subr.bf16.mxu0 0
        %1272 = vmatpush1.bf16.msra.mxu0 0
        %1273 = vmatprep.subr.bf16.mxu0 0
        %1274 = vmatpush1.bf16.msra.mxu0 %v1255
        %1275 = vmatprep.subr.bf16.mxu0 0
        %1276 = vmatpush1.bf16.msra.mxu0 %v1254
        %1277 = vmatprep.subr.bf16.mxu0 0
        %1278 = vmatpush2.bf16.msra.mxu0 0
        %1279 = vmatprep.subr.bf16.mxu0 0
        %1280 = vmatpush2.bf16.msra.mxu0 0
        %1281 = vmatprep.subr.bf16.mxu0 0
        %1282 = vmatpush2.bf16.msra.mxu0 0
        %1283 = vmatprep.subr.bf16.mxu0 0
        %1284 = vmatpush2.bf16.msra.mxu0 0
        %1285 = vmatprep.subr.bf16.mxu0 0
        %1286 = vmatpush2.bf16.msra.mxu0 0
        %1287 = vmatprep.subr.bf16.mxu0 0
        %1288 = vmatpush2.bf16.msra.mxu0 0
        %1289 = vmatprep.subr.bf16.mxu0 0
        %1290 = vmatpush2.bf16.msra.mxu0 0
        %1291 = vmatprep.subr.bf16.mxu0 0
        %1292 = vmatpush2.bf16.msra.mxu0 0
        %1293 = vmatprep.mubr.bf16.mxu0 0
        %1294 = vmatmul.mubr.bf16.gmra.mxu0 %v1259
        %v1295 = vpop.f32.mrf.mxu0
        %v1296 = vadd.f32 0.0, %v1295
        %v1297 = vpop.f32.mrf.mxu0
        %v1298 = vpop.f32.mrf.mxu0
        %v1299 = vpop.f32.mrf.mxu0
        %1300 = vdwg.mxu0
        %v1305 = vunpack.c.l.b16 %v1000
        %v1306 = vunpack.c.l.b16 %v1001
        %v1307 = vunpack.c.l.b16 %v1002
        %v1308 = vunpack.c.l.b16 %v1003
        %v1309 = vpack.c.b16 %v1306, %v1305
        %v1310 = vpack.c.b16 %v1308, %v1307
        %v1314 = vsel %vm1020, %v1129, 0
        %1316 = vmatprep.subr.bf16.mxu0 0
        %1317 = vmatpush1.bf16.msra.mxu0 0
        %1318 = vmatprep.subr.bf16.mxu0 0
        %1319 = vmatpush1.bf16.msra.mxu0 0
        %1320 = vmatprep.subr.bf16.mxu0 0
        %1321 = vmatpush1.bf16.msra.mxu0 0
        %1322 = vmatprep.subr.bf16.mxu0 0
        %1323 = vmatpush1.bf16.msra.mxu0 0
        %1324 = vmatprep.subr.bf16.mxu0 0
        %1325 = vmatpush1.bf16.msra.mxu0 0
        %1326 = vmatprep.subr.bf16.mxu0 0
        %1327 = vmatpush1.bf16.msra.mxu0 0
        %1328 = vmatprep.subr.bf16.mxu0 0
        %1329 = vmatpush1.bf16.msra.mxu0 %v1310
        %1330 = vmatprep.subr.bf16.mxu0 0
        %1331 = vmatpush1.bf16.msra.mxu0 %v1309
        %1332 = vmatprep.subr.bf16.mxu0 0
        %1333 = vmatpush2.bf16.msra.mxu0 0
        %1334 = vmatprep.subr.bf16.mxu0 0
        %1335 = vmatpush2.bf16.msra.mxu0 0
        %1336 = vmatprep.subr.bf16.mxu0 0
        %1337 = vmatpush2.bf16.msra.mxu0 0
        %1338 = vmatprep.subr.bf16.mxu0 0
        %1339 = vmatpush2.bf16.msra.mxu0 0
        %1340 = vmatprep.subr.bf16.mxu0 0
        %1341 = vmatpush2.bf16.msra.mxu0 0
        %1342 = vmatprep.subr.bf16.mxu0 0
        %1343 = vmatpush2.bf16.msra.mxu0 0
        %1344 = vmatprep.subr.bf16.mxu0 0
        %1345 = vmatpush2.bf16.msra.mxu0 0
        %1346 = vmatprep.subr.bf16.mxu0 0
        %1347 = vmatpush2.bf16.msra.mxu0 0
        %1348 = vmatprep.mubr.bf16.mxu0 0
        %1349 = vmatmul.mubr.bf16.gmra.mxu0 %v1314
        %v1350 = vpop.f32.mrf.mxu0
        %v1351 = vadd.f32 %v1296, %v1350
        %v1352 = vpop.f32.mrf.mxu0
        %v1353 = vpop.f32.mrf.mxu0
        %v1354 = vpop.f32.mrf.mxu0
        %1355 = vdwg.mxu0
        %1356 = vrot.lane.b32.xlu0 %v1017, 64
        %v1357 = vpop.permute.xlu0 %1356
        %1358 = vrot.lane.b32.xlu0 %v1018, 64
        %v1359 = vpop.permute.xlu0 %1358
        %v1361 = vsel %vm1020, %v1357, 0
        %v1364 = vsel %vm1020, %v1359, 0
        %1366 = vmatprep.subr.bf16.mxu0 0
        %1367 = vmatpush1.bf16.xpose.msra.mxu0 0
        %1368 = vmatprep.subr.bf16.mxu0 0
        %1369 = vmatpush1.bf16.xpose.msra.mxu0 0
        %1370 = vmatprep.subr.bf16.mxu0 0
        %1371 = vmatpush1.bf16.xpose.msra.mxu0 0
        %1372 = vmatprep.subr.bf16.mxu0 0
        %1373 = vmatpush1.bf16.xpose.msra.mxu0 0
        %1374 = vmatprep.subr.bf16.mxu0 0
        %1375 = vmatpush1.bf16.xpose.msra.mxu0 0
        %1376 = vmatprep.subr.bf16.mxu0 0
        %1377 = vmatpush1.bf16.xpose.msra.mxu0 0
        %1378 = vmatprep.subr.bf16.mxu0 0
        %1379 = vmatpush1.bf16.xpose.msra.mxu0 0
        %1380 = vmatprep.subr.bf16.mxu0 0
        %1381 = vmatpush1.bf16.xpose.msra.mxu0 %v1364
        %1382 = vmatprep.subr.bf16.mxu0 0
        %1383 = vmatpush2.bf16.xpose.msra.mxu0 0
        %1384 = vmatprep.subr.bf16.mxu0 0
        %1385 = vmatpush2.bf16.xpose.msra.mxu0 0
        %1386 = vmatprep.subr.bf16.mxu0 0
        %1387 = vmatpush2.bf16.xpose.msra.mxu0 0
        %1388 = vmatprep.subr.bf16.mxu0 0
        %1389 = vmatpush2.bf16.xpose.msra.mxu0 0
        %1390 = vmatprep.subr.bf16.mxu0 0
        %1391 = vmatpush2.bf16.xpose.msra.mxu0 0
        %1392 = vmatprep.subr.bf16.mxu0 0
        %1393 = vmatpush2.bf16.xpose.msra.mxu0 0
        %1394 = vmatprep.subr.bf16.mxu0 0
        %1395 = vmatpush2.bf16.xpose.msra.mxu0 0
        %1396 = vmatprep.subr.bf16.mxu0 0
        %1397 = vmatpush2.bf16.xpose.msra.mxu0 0
        %1398 = vmatprep.mubr.bf16.mxu0 0
        %1399 = vmatmul.mubr.bf16.gmra.mxu0 %v1361
        %v1400 = vpop.f32.mrf.mxu0
        %v1401 = vadd.f32 0.0, %v1400
        %v1402 = vpop.f32.mrf.mxu0
        %v1403 = vpop.f32.mrf.mxu0
        %v1404 = vpop.f32.mrf.mxu0
        %1405 = vdwg.mxu0
        %v1406 = vmul.f32 %v1401, 0.17677669
        %v1407 = vadd.f32 %v1406, %v1016
        %v1408 = vsel %vm1069, %v1407, -inf
        %1409 = vmax.xlane.f32.xlu0 %v1408
        %v1410 = vpop.xlane.xlu0 %1409
        %v1411 = vsub.f32 %v1407, %v1410
        %v1412 = vmul.f32 %v1411, 1.442695
        %v1413 = vpow.pop %v1412
        %v1414 = vsel %vm1069, %v1413, 0.0
        %1415 = vadd.xlane.f32.xlu0 %v1414
        %v1416 = vpop.xlane.xlu0 %1415
        %v1417 = vrcp.pop %v1416
        %v1418 = vmul.f32 %v1413, %v1417
        %v1419 = vpack.c.bf16 %v1418, %v1418
        %1420 = vrot.lane.b32.xlu0 %v1019, 64
        %v1421 = vpop.permute.xlu0 %1420
        %v1423 = vsel %vm1069, %v1419, 0
        %v1426 = vsel %vm1085, %v1421, 0
        %1428 = vmatprep.subr.bf16.mxu0 0
        %1429 = vmatpush1.bf16.msra.mxu0 0
        %1430 = vmatprep.subr.bf16.mxu0 0
        %1431 = vmatpush1.bf16.msra.mxu0 0
        %1432 = vmatprep.subr.bf16.mxu0 0
        %1433 = vmatpush1.bf16.msra.mxu0 0
        %1434 = vmatprep.subr.bf16.mxu0 0
        %1435 = vmatpush1.bf16.msra.mxu0 0
        %1436 = vmatprep.subr.bf16.mxu0 0
        %1437 = vmatpush1.bf16.msra.mxu0 0
        %1438 = vmatprep.subr.bf16.mxu0 0
        %1439 = vmatpush1.bf16.msra.mxu0 0
        %1440 = vmatprep.subr.bf16.mxu0 0
        %1441 = vmatpush1.bf16.msra.mxu0 0
        %1442 = vmatprep.subr.bf16.mxu0 0
        %1443 = vmatpush1.bf16.msra.mxu0 %v1426
        %1444 = vmatprep.subr.bf16.mxu0 0
        %1445 = vmatpush2.bf16.msra.mxu0 0
        %1446 = vmatprep.subr.bf16.mxu0 0
        %1447 = vmatpush2.bf16.msra.mxu0 0
        %1448 = vmatprep.subr.bf16.mxu0 0
        %1449 = vmatpush2.bf16.msra.mxu0 0
        %1450 = vmatprep.subr.bf16.mxu0 0
        %1451 = vmatpush2.bf16.msra.mxu0 0
        %1452 = vmatprep.subr.bf16.mxu0 0
        %1453 = vmatpush2.bf16.msra.mxu0 0
        %1454 = vmatprep.subr.bf16.mxu0 0
        %1455 = vmatpush2.bf16.msra.mxu0 0
        %1456 = vmatprep.subr.bf16.mxu0 0
        %1457 = vmatpush2.bf16.msra.mxu0 0
        %1458 = vmatprep.subr.bf16.mxu0 0
        %1459 = vmatpush2.bf16.msra.mxu0 0
        %1460 = vmatprep.mubr.bf16.mxu0 0
        %1461 = vmatmul.mubr.bf16.gmra.mxu0 %v1423
        %v1462 = vpop.f32.mrf.mxu0
        %v1463 = vadd.f32 0.0, %v1462
        %v1464 = vpop.f32.mrf.mxu0
        %v1465 = vpop.f32.mrf.mxu0
        %v1466 = vpop.f32.mrf.mxu0
        %1467 = vdwg.mxu0
        %v1468 = vpack.c.bf16 %v1463, %v1463
        %v1473 = vunpack.c.l.b16 %v1008
        %v1474 = vunpack.c.l.b16 %v1009
        %v1475 = vunpack.c.l.b16 %v1010
        %v1476 = vunpack.c.l.b16 %v1011
        %v1477 = vpack.c.b16 %v1474, %v1473
        %v1478 = vpack.c.b16 %v1476, %v1475
        %v1482 = vsel %vm1020, %v1468, 0
        %1484 = vmatprep.subr.bf16.mxu0 0
        %1485 = vmatpush1.bf16.msra.mxu0 0
        %1486 = vmatprep.subr.bf16.mxu0 0
        %1487 = vmatpush1.bf16.msra.mxu0 0
        %1488 = vmatprep.subr.bf16.mxu0 0
        %1489 = vmatpush1.bf16.msra.mxu0 0
        %1490 = vmatprep.subr.bf16.mxu0 0
        %1491 = vmatpush1.bf16.msra.mxu0 0
        %1492 = vmatprep.subr.bf16.mxu0 0
        %1493 = vmatpush1.bf16.msra.mxu0 0
        %1494 = vmatprep.subr.bf16.mxu0 0
        %1495 = vmatpush1.bf16.msra.mxu0 0
        %1496 = vmatprep.subr.bf16.mxu0 0
        %1497 = vmatpush1.bf16.msra.mxu0 %v1478
        %1498 = vmatprep.subr.bf16.mxu0 0
        %1499 = vmatpush1.bf16.msra.mxu0 %v1477
        %1500 = vmatprep.subr.bf16.mxu0 0
        %1501 = vmatpush2.bf16.msra.mxu0 0
        %1502 = vmatprep.subr.bf16.mxu0 0
        %1503 = vmatpush2.bf16.msra.mxu0 0
        %1504 = vmatprep.subr.bf16.mxu0 0
        %1505 = vmatpush2.bf16.msra.mxu0 0
        %1506 = vmatprep.subr.bf16.mxu0 0
        %1507 = vmatpush2.bf16.msra.mxu0 0
        %1508 = vmatprep.subr.bf16.mxu0 0
        %1509 = vmatpush2.bf16.msra.mxu0 0
        %1510 = vmatprep.subr.bf16.mxu0 0
        %1511 = vmatpush2.bf16.msra.mxu0 0
        %1512 = vmatprep.subr.bf16.mxu0 0
        %1513 = vmatpush2.bf16.msra.mxu0 0
        %1514 = vmatprep.subr.bf16.mxu0 0
        %1515 = vmatpush2.bf16.msra.mxu0 0
        %1516 = vmatprep.mubr.bf16.mxu0 0
        %1517 = vmatmul.mubr.bf16.gmra.mxu0 %v1482
        %v1518 = vpop.f32.mrf.mxu0
        %v1519 = vadd.f32 0.0, %v1518
        %v1520 = vpop.f32.mrf.mxu0
        %v1521 = vpop.f32.mrf.mxu0
        %v1522 = vpop.f32.mrf.mxu0
        %1523 = vdwg.mxu0
        %v1524 = vadd.f32 %v1351, %v1519
        %1525 = vrot.lane.b32.xlu0 %v1017, 32
        %v1526 = vpop.permute.xlu0 %1525
        %1527 = vrot.lane.b32.xlu0 %v1018, 32
        %v1528 = vpop.permute.xlu0 %1527
        %v1530 = vsel %vm1020, %v1526, 0
        %v1533 = vsel %vm1020, %v1528, 0
        %1535 = vmatprep.subr.bf16.mxu0 0
        %1536 = vmatpush1.bf16.xpose.msra.mxu0 0
        %1537 = vmatprep.subr.bf16.mxu0 0
        %1538 = vmatpush1.bf16.xpose.msra.mxu0 0
        %1539 = vmatprep.subr.bf16.mxu0 0
        %1540 = vmatpush1.bf16.xpose.msra.mxu0 0
        %1541 = vmatprep.subr.bf16.mxu0 0
        %1542 = vmatpush1.bf16.xpose.msra.mxu0 0
        %1543 = vmatprep.subr.bf16.mxu0 0
        %1544 = vmatpush1.bf16.xpose.msra.mxu0 0
        %1545 = vmatprep.subr.bf16.mxu0 0
        %1546 = vmatpush1.bf16.xpose.msra.mxu0 0
        %1547 = vmatprep.subr.bf16.mxu0 0
        %1548 = vmatpush1.bf16.xpose.msra.mxu0 0
        %1549 = vmatprep.subr.bf16.mxu0 0
        %1550 = vmatpush1.bf16.xpose.msra.mxu0 %v1533
        %1551 = vmatprep.subr.bf16.mxu0 0
        %1552 = vmatpush2.bf16.xpose.msra.mxu0 0
        %1553 = vmatprep.subr.bf16.mxu0 0
        %1554 = vmatpush2.bf16.xpose.msra.mxu0 0
        %1555 = vmatprep.subr.bf16.mxu0 0
        %1556 = vmatpush2.bf16.xpose.msra.mxu0 0
        %1557 = vmatprep.subr.bf16.mxu0 0
        %1558 = vmatpush2.bf16.xpose.msra.mxu0 0
        %1559 = vmatprep.subr.bf16.mxu0 0
        %1560 = vmatpush2.bf16.xpose.msra.mxu0 0
        %1561 = vmatprep.subr.bf16.mxu0 0
        %1562 = vmatpush2.bf16.xpose.msra.mxu0 0
        %1563 = vmatprep.subr.bf16.mxu0 0
        %1564 = vmatpush2.bf16.xpose.msra.mxu0 0
        %1565 = vmatprep.subr.bf16.mxu0 0
        %1566 = vmatpush2.bf16.xpose.msra.mxu0 0
        %1567 = vmatprep.mubr.bf16.mxu0 0
        %1568 = vmatmul.mubr.bf16.gmra.mxu0 %v1530
        %v1569 = vpop.f32.mrf.mxu0
        %v1570 = vadd.f32 0.0, %v1569
        %v1571 = vpop.f32.mrf.mxu0
        %v1572 = vpop.f32.mrf.mxu0
        %v1573 = vpop.f32.mrf.mxu0
        %1574 = vdwg.mxu0
        %v1575 = vmul.f32 %v1570, 0.17677669
        %v1576 = vadd.f32 %v1575, %v1016
        %v1577 = vsel %vm1069, %v1576, -inf
        %1578 = vmax.xlane.f32.xlu0 %v1577
        %v1579 = vpop.xlane.xlu0 %1578
        %v1580 = vsub.f32 %v1576, %v1579
        %v1581 = vmul.f32 %v1580, 1.442695
        %v1582 = vpow.pop %v1581
        %v1583 = vsel %vm1069, %v1582, 0.0
        %1584 = vadd.xlane.f32.xlu0 %v1583
        %v1585 = vpop.xlane.xlu0 %1584
        %v1586 = vrcp.pop %v1585
        %v1587 = vmul.f32 %v1582, %v1586
        %v1588 = vpack.c.bf16 %v1587, %v1587
        %1589 = vrot.lane.b32.xlu0 %v1019, 32
        %v1590 = vpop.permute.xlu0 %1589
        %v1592 = vsel %vm1069, %v1588, 0
        %v1595 = vsel %vm1085, %v1590, 0
        %1597 = vmatprep.subr.bf16.mxu0 0
        %1598 = vmatpush1.bf16.msra.mxu0 0
        %1599 = vmatprep.subr.bf16.mxu0 0
        %1600 = vmatpush1.bf16.msra.mxu0 0
        %1601 = vmatprep.subr.bf16.mxu0 0
        %1602 = vmatpush1.bf16.msra.mxu0 0
        %1603 = vmatprep.subr.bf16.mxu0 0
        %1604 = vmatpush1.bf16.msra.mxu0 0
        %1605 = vmatprep.subr.bf16.mxu0 0
        %1606 = vmatpush1.bf16.msra.mxu0 0
        %1607 = vmatprep.subr.bf16.mxu0 0
        %1608 = vmatpush1.bf16.msra.mxu0 0
        %1609 = vmatprep.subr.bf16.mxu0 0
        %1610 = vmatpush1.bf16.msra.mxu0 0
        %1611 = vmatprep.subr.bf16.mxu0 0
        %1612 = vmatpush1.bf16.msra.mxu0 %v1595
        %1613 = vmatprep.subr.bf16.mxu0 0
        %1614 = vmatpush2.bf16.msra.mxu0 0
        %1615 = vmatprep.subr.bf16.mxu0 0
        %1616 = vmatpush2.bf16.msra.mxu0 0
        %1617 = vmatprep.subr.bf16.mxu0 0
        %1618 = vmatpush2.bf16.msra.mxu0 0
        %1619 = vmatprep.subr.bf16.mxu0 0
        %1620 = vmatpush2.bf16.msra.mxu0 0
        %1621 = vmatprep.subr.bf16.mxu0 0
        %1622 = vmatpush2.bf16.msra.mxu0 0
        %1623 = vmatprep.subr.bf16.mxu0 0
        %1624 = vmatpush2.bf16.msra.mxu0 0
        %1625 = vmatprep.subr.bf16.mxu0 0
        %1626 = vmatpush2.bf16.msra.mxu0 0
        %1627 = vmatprep.subr.bf16.mxu0 0
        %1628 = vmatpush2.bf16.msra.mxu0 0
        %1629 = vmatprep.mubr.bf16.mxu0 0
        %1630 = vmatmul.mubr.bf16.gmra.mxu0 %v1592
        %v1631 = vpop.f32.mrf.mxu0
        %v1632 = vadd.f32 0.0, %v1631
        %v1633 = vpop.f32.mrf.mxu0
        %v1634 = vpop.f32.mrf.mxu0
        %v1635 = vpop.f32.mrf.mxu0
        %1636 = vdwg.mxu0
        %v1637 = vpack.c.bf16 %v1632, %v1632
        %v1642 = vunpack.c.l.b16 %v1012
        %v1643 = vunpack.c.l.b16 %v1013
        %v1644 = vunpack.c.l.b16 %v1014
        %v1645 = vunpack.c.l.b16 %v1015
        %v1646 = vpack.c.b16 %v1643, %v1642
        %v1647 = vpack.c.b16 %v1645, %v1644
        %v1651 = vsel %vm1020, %v1637, 0
        %1653 = vmatprep.subr.bf16.mxu0 0
        %1654 = vmatpush1.bf16.msra.mxu0 0
        %1655 = vmatprep.subr.bf16.mxu0 0
        %1656 = vmatpush1.bf16.msra.mxu0 0
        %1657 = vmatprep.subr.bf16.mxu0 0
        %1658 = vmatpush1.bf16.msra.mxu0 0
        %1659 = vmatprep.subr.bf16.mxu0 0
        %1660 = vmatpush1.bf16.msra.mxu0 0
        %1661 = vmatprep.subr.bf16.mxu0 0
        %1662 = vmatpush1.bf16.msra.mxu0 0
        %1663 = vmatprep.subr.bf16.mxu0 0
        %1664 = vmatpush1.bf16.msra.mxu0 0
        %1665 = vmatprep.subr.bf16.mxu0 0
        %1666 = vmatpush1.bf16.msra.mxu0 %v1647
        %1667 = vmatprep.subr.bf16.mxu0 0
        %1668 = vmatpush1.bf16.msra.mxu0 %v1646
        %1669 = vmatprep.subr.bf16.mxu0 0
        %1670 = vmatpush2.bf16.msra.mxu0 0
        %1671 = vmatprep.subr.bf16.mxu0 0
        %1672 = vmatpush2.bf16.msra.mxu0 0
        %1673 = vmatprep.subr.bf16.mxu0 0
        %1674 = vmatpush2.bf16.msra.mxu0 0
        %1675 = vmatprep.subr.bf16.mxu0 0
        %1676 = vmatpush2.bf16.msra.mxu0 0
        %1677 = vmatprep.subr.bf16.mxu0 0
        %1678 = vmatpush2.bf16.msra.mxu0 0
        %1679 = vmatprep.subr.bf16.mxu0 0
        %1680 = vmatpush2.bf16.msra.mxu0 0
        %1681 = vmatprep.subr.bf16.mxu0 0
        %1682 = vmatpush2.bf16.msra.mxu0 0
        %1683 = vmatprep.subr.bf16.mxu0 0
        %1684 = vmatpush2.bf16.msra.mxu0 0
        %1685 = vmatprep.mubr.bf16.mxu0 0
        %1686 = vmatmul.mubr.bf16.gmra.mxu0 %v1651
        %v1687 = vpop.f32.mrf.mxu0
        %v1688 = vadd.f32 0.0, %v1687
        %v1689 = vpop.f32.mrf.mxu0
        %v1690 = vpop.f32.mrf.mxu0
        %v1691 = vpop.f32.mrf.mxu0
        %1692 = vdwg.mxu0
        %v1693 = vadd.f32 %v1524, %v1688
        %s1694 = scalar_lea.vmem %s1, 8
        %v1695 = vld [vmem:[%s1694] sm:$0xff]
        %v1696 = vpack.c.bf16 %v955, %v955
        %v1697 = vpack.c.bf16 %v957, %v957
        %v1698 = vpack.c.bf16 %v997, %v997
        %v1700 = vsel %vm1020, %v1696, 0
        %v1703 = vsel %vm1020, %v1697, 0
        %1705 = vmatprep.subr.bf16.mxu0 0
        %1706 = vmatpush1.bf16.xpose.msra.mxu0 0
        %1707 = vmatprep.subr.bf16.mxu0 0
        %1708 = vmatpush1.bf16.xpose.msra.mxu0 0
        %1709 = vmatprep.subr.bf16.mxu0 0
        %1710 = vmatpush1.bf16.xpose.msra.mxu0 0
        %1711 = vmatprep.subr.bf16.mxu0 0
        %1712 = vmatpush1.bf16.xpose.msra.mxu0 0
        %1713 = vmatprep.subr.bf16.mxu0 0
        %1714 = vmatpush1.bf16.xpose.msra.mxu0 0
        %1715 = vmatprep.subr.bf16.mxu0 0
        %1716 = vmatpush1.bf16.xpose.msra.mxu0 0
        %1717 = vmatprep.subr.bf16.mxu0 0
        %1718 = vmatpush1.bf16.xpose.msra.mxu0 0
        %1719 = vmatprep.subr.bf16.mxu0 0
        %1720 = vmatpush1.bf16.xpose.msra.mxu0 %v1703
        %1721 = vmatprep.subr.bf16.mxu0 0
        %1722 = vmatpush2.bf16.xpose.msra.mxu0 0
        %1723 = vmatprep.subr.bf16.mxu0 0
        %1724 = vmatpush2.bf16.xpose.msra.mxu0 0
        %1725 = vmatprep.subr.bf16.mxu0 0
        %1726 = vmatpush2.bf16.xpose.msra.mxu0 0
        %1727 = vmatprep.subr.bf16.mxu0 0
        %1728 = vmatpush2.bf16.xpose.msra.mxu0 0
        %1729 = vmatprep.subr.bf16.mxu0 0
        %1730 = vmatpush2.bf16.xpose.msra.mxu0 0
        %1731 = vmatprep.subr.bf16.mxu0 0
        %1732 = vmatpush2.bf16.xpose.msra.mxu0 0
        %1733 = vmatprep.subr.bf16.mxu0 0
        %1734 = vmatpush2.bf16.xpose.msra.mxu0 0
        %1735 = vmatprep.subr.bf16.mxu0 0
        %1736 = vmatpush2.bf16.xpose.msra.mxu0 0
        %1737 = vmatprep.mubr.bf16.mxu0 0
        %1738 = vmatmul.mubr.bf16.gmra.mxu0 %v1700
        %v1739 = vpop.f32.mrf.mxu0
        %v1740 = vadd.f32 0.0, %v1739
        %v1741 = vpop.f32.mrf.mxu0
        %v1742 = vpop.f32.mrf.mxu0
        %v1743 = vpop.f32.mrf.mxu0
        %1744 = vdwg.mxu0
        %v1745 = vmul.f32 %v1740, 0.17677669
        %v1746 = vadd.f32 %v1745, %v1695
        %v1747 = vsel %vm1069, %v1746, -inf
        %1748 = vmax.xlane.f32.xlu0 %v1747
        %v1749 = vpop.xlane.xlu0 %1748
        %v1750 = vsub.f32 %v1746, %v1749
        %v1751 = vmul.f32 %v1750, 1.442695
        %v1752 = vpow.pop %v1751
        %v1753 = vsel %vm1069, %v1752, 0.0
        %1754 = vadd.xlane.f32.xlu0 %v1753
        %v1755 = vpop.xlane.xlu0 %1754
        %v1756 = vrcp.pop %v1755
        %v1757 = vmul.f32 %v1752, %v1756
        %v1758 = vpack.c.bf16 %v1757, %v1757
        %v1760 = vsel %vm1069, %v1758, 0
        %v1763 = vsel %vm1085, %v1698, 0
        %1765 = vmatprep.subr.bf16.mxu0 0
        %1766 = vmatpush1.bf16.msra.mxu0 0
        %1767 = vmatprep.subr.bf16.mxu0 0
        %1768 = vmatpush1.bf16.msra.mxu0 0
        %1769 = vmatprep.subr.bf16.mxu0 0
        %1770 = vmatpush1.bf16.msra.mxu0 0
        %1771 = vmatprep.subr.bf16.mxu0 0
        %1772 = vmatpush1.bf16.msra.mxu0 0
        %1773 = vmatprep.subr.bf16.mxu0 0
        %1774 = vmatpush1.bf16.msra.mxu0 0
        %1775 = vmatprep.subr.bf16.mxu0 0
        %1776 = vmatpush1.bf16.msra.mxu0 0
        %1777 = vmatprep.subr.bf16.mxu0 0
        %1778 = vmatpush1.bf16.msra.mxu0 0
        %1779 = vmatprep.subr.bf16.mxu0 0
        %1780 = vmatpush1.bf16.msra.mxu0 %v1763
        %1781 = vmatprep.subr.bf16.mxu0 0
        %1782 = vmatpush2.bf16.msra.mxu0 0
        %1783 = vmatprep.subr.bf16.mxu0 0
        %1784 = vmatpush2.bf16.msra.mxu0 0
        %1785 = vmatprep.subr.bf16.mxu0 0
        %1786 = vmatpush2.bf16.msra.mxu0 0
        %1787 = vmatprep.subr.bf16.mxu0 0
        %1788 = vmatpush2.bf16.msra.mxu0 0
        %1789 = vmatprep.subr.bf16.mxu0 0
        %1790 = vmatpush2.bf16.msra.mxu0 0
        %1791 = vmatprep.subr.bf16.mxu0 0
        %1792 = vmatpush2.bf16.msra.mxu0 0
        %1793 = vmatprep.subr.bf16.mxu0 0
        %1794 = vmatpush2.bf16.msra.mxu0 0
        %1795 = vmatprep.subr.bf16.mxu0 0
        %1796 = vmatpush2.bf16.msra.mxu0 0
        %1797 = vmatprep.mubr.bf16.mxu0 0
        %1798 = vmatmul.mubr.bf16.gmra.mxu0 %v1760
        %v1799 = vpop.f32.mrf.mxu0
        %v1800 = vadd.f32 0.0, %v1799
        %v1801 = vpop.f32.mrf.mxu0
        %v1802 = vpop.f32.mrf.mxu0
        %v1803 = vpop.f32.mrf.mxu0
        %1804 = vdwg.mxu0
        %v1805 = vpack.c.bf16 %v1800, %v1800
        %1807 = vrot.lane.b32.xlu0 %v1696, 96
        %v1808 = vpop.permute.xlu0 %1807
        %1810 = vrot.lane.b32.xlu0 %v1697, 96
        %v1811 = vpop.permute.xlu0 %1810
        %v1813 = vsel %vm1020, %v1808, 0
        %v1816 = vsel %vm1020, %v1811, 0
        %1818 = vmatprep.subr.bf16.mxu0 0
        %1819 = vmatpush1.bf16.xpose.msra.mxu0 0
        %1820 = vmatprep.subr.bf16.mxu0 0
        %1821 = vmatpush1.bf16.xpose.msra.mxu0 0
        %1822 = vmatprep.subr.bf16.mxu0 0
        %1823 = vmatpush1.bf16.xpose.msra.mxu0 0
        %1824 = vmatprep.subr.bf16.mxu0 0
        %1825 = vmatpush1.bf16.xpose.msra.mxu0 0
        %1826 = vmatprep.subr.bf16.mxu0 0
        %1827 = vmatpush1.bf16.xpose.msra.mxu0 0
        %1828 = vmatprep.subr.bf16.mxu0 0
        %1829 = vmatpush1.bf16.xpose.msra.mxu0 0
        %1830 = vmatprep.subr.bf16.mxu0 0
        %1831 = vmatpush1.bf16.xpose.msra.mxu0 0
        %1832 = vmatprep.subr.bf16.mxu0 0
        %1833 = vmatpush1.bf16.xpose.msra.mxu0 %v1816
        %1834 = vmatprep.subr.bf16.mxu0 0
        %1835 = vmatpush2.bf16.xpose.msra.mxu0 0
        %1836 = vmatprep.subr.bf16.mxu0 0
        %1837 = vmatpush2.bf16.xpose.msra.mxu0 0
        %1838 = vmatprep.subr.bf16.mxu0 0
        %1839 = vmatpush2.bf16.xpose.msra.mxu0 0
        %1840 = vmatprep.subr.bf16.mxu0 0
        %1841 = vmatpush2.bf16.xpose.msra.mxu0 0
        %1842 = vmatprep.subr.bf16.mxu0 0
        %1843 = vmatpush2.bf16.xpose.msra.mxu0 0
        %1844 = vmatprep.subr.bf16.mxu0 0
        %1845 = vmatpush2.bf16.xpose.msra.mxu0 0
        %1846 = vmatprep.subr.bf16.mxu0 0
        %1847 = vmatpush2.bf16.xpose.msra.mxu0 0
        %1848 = vmatprep.subr.bf16.mxu0 0
        %1849 = vmatpush2.bf16.xpose.msra.mxu0 0
        %1850 = vmatprep.mubr.bf16.mxu0 0
        %1851 = vmatmul.mubr.bf16.gmra.mxu0 %v1813
        %v1852 = vpop.f32.mrf.mxu0
        %v1853 = vadd.f32 0.0, %v1852
        %v1854 = vpop.f32.mrf.mxu0
        %v1855 = vpop.f32.mrf.mxu0
        %v1856 = vpop.f32.mrf.mxu0
        %1857 = vdwg.mxu0
        %v1858 = vmul.f32 %v1853, 0.17677669
        %v1859 = vadd.f32 %v1858, %v1695
        %v1860 = vsel %vm1069, %v1859, -inf
        %1861 = vmax.xlane.f32.xlu0 %v1860
        %v1862 = vpop.xlane.xlu0 %1861
        %v1863 = vsub.f32 %v1859, %v1862
        %v1864 = vmul.f32 %v1863, 1.442695
        %v1865 = vpow.pop %v1864
        %v1866 = vsel %vm1069, %v1865, 0.0
        %1867 = vadd.xlane.f32.xlu0 %v1866
        %v1868 = vpop.xlane.xlu0 %1867
        %v1869 = vrcp.pop %v1868
        %v1870 = vmul.f32 %v1865, %v1869
        %v1871 = vpack.c.bf16 %v1870, %v1870
        %1873 = vrot.lane.b32.xlu0 %v1698, 96
        %v1874 = vpop.permute.xlu0 %1873
        %v1876 = vsel %vm1069, %v1871, 0
        %v1879 = vsel %vm1085, %v1874, 0
        %1881 = vmatprep.subr.bf16.mxu0 0
        %1882 = vmatpush1.bf16.msra.mxu0 0
        %1883 = vmatprep.subr.bf16.mxu0 0
        %1884 = vmatpush1.bf16.msra.mxu0 0
        %1885 = vmatprep.subr.bf16.mxu0 0
        %1886 = vmatpush1.bf16.msra.mxu0 0
        %1887 = vmatprep.subr.bf16.mxu0 0
        %1888 = vmatpush1.bf16.msra.mxu0 0
        %1889 = vmatprep.subr.bf16.mxu0 0
        %1890 = vmatpush1.bf16.msra.mxu0 0
        %1891 = vmatprep.subr.bf16.mxu0 0
        %1892 = vmatpush1.bf16.msra.mxu0 0
        %1893 = vmatprep.subr.bf16.mxu0 0
        %1894 = vmatpush1.bf16.msra.mxu0 0
        %1895 = vmatprep.subr.bf16.mxu0 0
        %1896 = vmatpush1.bf16.msra.mxu0 %v1879
        %1897 = vmatprep.subr.bf16.mxu0 0
        %1898 = vmatpush2.bf16.msra.mxu0 0
        %1899 = vmatprep.subr.bf16.mxu0 0
        %1900 = vmatpush2.bf16.msra.mxu0 0
        %1901 = vmatprep.subr.bf16.mxu0 0
        %1902 = vmatpush2.bf16.msra.mxu0 0
        %1903 = vmatprep.subr.bf16.mxu0 0
        %1904 = vmatpush2.bf16.msra.mxu0 0
        %1905 = vmatprep.subr.bf16.mxu0 0
        %1906 = vmatpush2.bf16.msra.mxu0 0
        %1907 = vmatprep.subr.bf16.mxu0 0
        %1908 = vmatpush2.bf16.msra.mxu0 0
        %1909 = vmatprep.subr.bf16.mxu0 0
        %1910 = vmatpush2.bf16.msra.mxu0 0
        %1911 = vmatprep.subr.bf16.mxu0 0
        %1912 = vmatpush2.bf16.msra.mxu0 0
        %1913 = vmatprep.mubr.bf16.mxu0 0
        %1914 = vmatmul.mubr.bf16.gmra.mxu0 %v1876
        %v1915 = vpop.f32.mrf.mxu0
        %v1916 = vadd.f32 0.0, %v1915
        %v1917 = vpop.f32.mrf.mxu0
        %v1918 = vpop.f32.mrf.mxu0
        %v1919 = vpop.f32.mrf.mxu0
        %1920 = vdwg.mxu0
        %v1921 = vpack.c.bf16 %v1916, %v1916
        %v1923 = vsel %vm1020, %v1921, 0
        %1925 = vmatprep.subr.bf16.mxu0 0
        %1926 = vmatpush1.bf16.msra.mxu0 0
        %1927 = vmatprep.subr.bf16.mxu0 0
        %1928 = vmatpush1.bf16.msra.mxu0 0
        %1929 = vmatprep.subr.bf16.mxu0 0
        %1930 = vmatpush1.bf16.msra.mxu0 0
        %1931 = vmatprep.subr.bf16.mxu0 0
        %1932 = vmatpush1.bf16.msra.mxu0 0
        %1933 = vmatprep.subr.bf16.mxu0 0
        %1934 = vmatpush1.bf16.msra.mxu0 0
        %1935 = vmatprep.subr.bf16.mxu0 0
        %1936 = vmatpush1.bf16.msra.mxu0 0
        %1937 = vmatprep.subr.bf16.mxu0 0
        %1938 = vmatpush1.bf16.msra.mxu0 %v1255
        %1939 = vmatprep.subr.bf16.mxu0 0
        %1940 = vmatpush1.bf16.msra.mxu0 %v1254
        %1941 = vmatprep.subr.bf16.mxu0 0
        %1942 = vmatpush2.bf16.msra.mxu0 0
        %1943 = vmatprep.subr.bf16.mxu0 0
        %1944 = vmatpush2.bf16.msra.mxu0 0
        %1945 = vmatprep.subr.bf16.mxu0 0
        %1946 = vmatpush2.bf16.msra.mxu0 0
        %1947 = vmatprep.subr.bf16.mxu0 0
        %1948 = vmatpush2.bf16.msra.mxu0 0
        %1949 = vmatprep.subr.bf16.mxu0 0
        %1950 = vmatpush2.bf16.msra.mxu0 0
        %1951 = vmatprep.subr.bf16.mxu0 0
        %1952 = vmatpush2.bf16.msra.mxu0 0
        %1953 = vmatprep.subr.bf16.mxu0 0
        %1954 = vmatpush2.bf16.msra.mxu0 0
        %1955 = vmatprep.subr.bf16.mxu0 0
        %1956 = vmatpush2.bf16.msra.mxu0 0
        %1957 = vmatprep.mubr.bf16.mxu0 0
        %1958 = vmatmul.mubr.bf16.gmra.mxu0 %v1923
        %v1959 = vpop.f32.mrf.mxu0
        %v1960 = vadd.f32 0.0, %v1959
        %v1961 = vpop.f32.mrf.mxu0
        %v1962 = vpop.f32.mrf.mxu0
        %v1963 = vpop.f32.mrf.mxu0
        %1964 = vdwg.mxu0
        %v1966 = vsel %vm1020, %v1805, 0
        %1968 = vmatprep.subr.bf16.mxu0 0
        %1969 = vmatpush1.bf16.msra.mxu0 0
        %1970 = vmatprep.subr.bf16.mxu0 0
        %1971 = vmatpush1.bf16.msra.mxu0 0
        %1972 = vmatprep.subr.bf16.mxu0 0
        %1973 = vmatpush1.bf16.msra.mxu0 0
        %1974 = vmatprep.subr.bf16.mxu0 0
        %1975 = vmatpush1.bf16.msra.mxu0 0
        %1976 = vmatprep.subr.bf16.mxu0 0
        %1977 = vmatpush1.bf16.msra.mxu0 0
        %1978 = vmatprep.subr.bf16.mxu0 0
        %1979 = vmatpush1.bf16.msra.mxu0 0
        %1980 = vmatprep.subr.bf16.mxu0 0
        %1981 = vmatpush1.bf16.msra.mxu0 %v1310
        %1982 = vmatprep.subr.bf16.mxu0 0
        %1983 = vmatpush1.bf16.msra.mxu0 %v1309
        %1984 = vmatprep.subr.bf16.mxu0 0
        %1985 = vmatpush2.bf16.msra.mxu0 0
        %1986 = vmatprep.subr.bf16.mxu0 0
        %1987 = vmatpush2.bf16.msra.mxu0 0
        %1988 = vmatprep.subr.bf16.mxu0 0
        %1989 = vmatpush2.bf16.msra.mxu0 0
        %1990 = vmatprep.subr.bf16.mxu0 0
        %1991 = vmatpush2.bf16.msra.mxu0 0
        %1992 = vmatprep.subr.bf16.mxu0 0
        %1993 = vmatpush2.bf16.msra.mxu0 0
        %1994 = vmatprep.subr.bf16.mxu0 0
        %1995 = vmatpush2.bf16.msra.mxu0 0
        %1996 = vmatprep.subr.bf16.mxu0 0
        %1997 = vmatpush2.bf16.msra.mxu0 0
        %1998 = vmatprep.subr.bf16.mxu0 0
        %1999 = vmatpush2.bf16.msra.mxu0 0
        %2000 = vmatprep.mubr.bf16.mxu0 0
        %2001 = vmatmul.mubr.bf16.gmra.mxu0 %v1966
        %v2002 = vpop.f32.mrf.mxu0
        %v2003 = vadd.f32 %v1960, %v2002
        %v2004 = vpop.f32.mrf.mxu0
        %v2005 = vpop.f32.mrf.mxu0
        %v2006 = vpop.f32.mrf.mxu0
        %2007 = vdwg.mxu0
        %2008 = vrot.lane.b32.xlu0 %v1696, 64
        %v2009 = vpop.permute.xlu0 %2008
        %2010 = vrot.lane.b32.xlu0 %v1697, 64
        %v2011 = vpop.permute.xlu0 %2010
        %v2013 = vsel %vm1020, %v2009, 0
        %v2016 = vsel %vm1020, %v2011, 0
        %2018 = vmatprep.subr.bf16.mxu0 0
        %2019 = vmatpush1.bf16.xpose.msra.mxu0 0
        %2020 = vmatprep.subr.bf16.mxu0 0
        %2021 = vmatpush1.bf16.xpose.msra.mxu0 0
        %2022 = vmatprep.subr.bf16.mxu0 0
        %2023 = vmatpush1.bf16.xpose.msra.mxu0 0
        %2024 = vmatprep.subr.bf16.mxu0 0
        %2025 = vmatpush1.bf16.xpose.msra.mxu0 0
        %2026 = vmatprep.subr.bf16.mxu0 0
        %2027 = vmatpush1.bf16.xpose.msra.mxu0 0
        %2028 = vmatprep.subr.bf16.mxu0 0
        %2029 = vmatpush1.bf16.xpose.msra.mxu0 0
        %2030 = vmatprep.subr.bf16.mxu0 0
        %2031 = vmatpush1.bf16.xpose.msra.mxu0 0
        %2032 = vmatprep.subr.bf16.mxu0 0
        %2033 = vmatpush1.bf16.xpose.msra.mxu0 %v2016
        %2034 = vmatprep.subr.bf16.mxu0 0
        %2035 = vmatpush2.bf16.xpose.msra.mxu0 0
        %2036 = vmatprep.subr.bf16.mxu0 0
        %2037 = vmatpush2.bf16.xpose.msra.mxu0 0
        %2038 = vmatprep.subr.bf16.mxu0 0
        %2039 = vmatpush2.bf16.xpose.msra.mxu0 0
        %2040 = vmatprep.subr.bf16.mxu0 0
        %2041 = vmatpush2.bf16.xpose.msra.mxu0 0
        %2042 = vmatprep.subr.bf16.mxu0 0
        %2043 = vmatpush2.bf16.xpose.msra.mxu0 0
        %2044 = vmatprep.subr.bf16.mxu0 0
        %2045 = vmatpush2.bf16.xpose.msra.mxu0 0
        %2046 = vmatprep.subr.bf16.mxu0 0
        %2047 = vmatpush2.bf16.xpose.msra.mxu0 0
        %2048 = vmatprep.subr.bf16.mxu0 0
        %2049 = vmatpush2.bf16.xpose.msra.mxu0 0
        %2050 = vmatprep.mubr.bf16.mxu0 0
        %2051 = vmatmul.mubr.bf16.gmra.mxu0 %v2013
        %v2052 = vpop.f32.mrf.mxu0
        %v2053 = vadd.f32 0.0, %v2052
        %v2054 = vpop.f32.mrf.mxu0
        %v2055 = vpop.f32.mrf.mxu0
        %v2056 = vpop.f32.mrf.mxu0
        %2057 = vdwg.mxu0
        %v2058 = vmul.f32 %v2053, 0.17677669
        %v2059 = vadd.f32 %v2058, %v1695
        %v2060 = vsel %vm1069, %v2059, -inf
        %2061 = vmax.xlane.f32.xlu0 %v2060
        %v2062 = vpop.xlane.xlu0 %2061
        %v2063 = vsub.f32 %v2059, %v2062
        %v2064 = vmul.f32 %v2063, 1.442695
        %v2065 = vpow.pop %v2064
        %v2066 = vsel %vm1069, %v2065, 0.0
        %2067 = vadd.xlane.f32.xlu0 %v2066
        %v2068 = vpop.xlane.xlu0 %2067
        %v2069 = vrcp.pop %v2068
        %v2070 = vmul.f32 %v2065, %v2069
        %v2071 = vpack.c.bf16 %v2070, %v2070
        %2072 = vrot.lane.b32.xlu0 %v1698, 64
        %v2073 = vpop.permute.xlu0 %2072
        %v2075 = vsel %vm1069, %v2071, 0
        %v2078 = vsel %vm1085, %v2073, 0
        %2080 = vmatprep.subr.bf16.mxu0 0
        %2081 = vmatpush1.bf16.msra.mxu0 0
        %2082 = vmatprep.subr.bf16.mxu0 0
        %2083 = vmatpush1.bf16.msra.mxu0 0
        %2084 = vmatprep.subr.bf16.mxu0 0
        %2085 = vmatpush1.bf16.msra.mxu0 0
        %2086 = vmatprep.subr.bf16.mxu0 0
        %2087 = vmatpush1.bf16.msra.mxu0 0
        %2088 = vmatprep.subr.bf16.mxu0 0
        %2089 = vmatpush1.bf16.msra.mxu0 0
        %2090 = vmatprep.subr.bf16.mxu0 0
        %2091 = vmatpush1.bf16.msra.mxu0 0
        %2092 = vmatprep.subr.bf16.mxu0 0
        %2093 = vmatpush1.bf16.msra.mxu0 0
        %2094 = vmatprep.subr.bf16.mxu0 0
        %2095 = vmatpush1.bf16.msra.mxu0 %v2078
        %2096 = vmatprep.subr.bf16.mxu0 0
        %2097 = vmatpush2.bf16.msra.mxu0 0
        %2098 = vmatprep.subr.bf16.mxu0 0
        %2099 = vmatpush2.bf16.msra.mxu0 0
        %2100 = vmatprep.subr.bf16.mxu0 0
        %2101 = vmatpush2.bf16.msra.mxu0 0
        %2102 = vmatprep.subr.bf16.mxu0 0
        %2103 = vmatpush2.bf16.msra.mxu0 0
        %2104 = vmatprep.subr.bf16.mxu0 0
        %2105 = vmatpush2.bf16.msra.mxu0 0
        %2106 = vmatprep.subr.bf16.mxu0 0
        %2107 = vmatpush2.bf16.msra.mxu0 0
        %2108 = vmatprep.subr.bf16.mxu0 0
        %2109 = vmatpush2.bf16.msra.mxu0 0
        %2110 = vmatprep.subr.bf16.mxu0 0
        %2111 = vmatpush2.bf16.msra.mxu0 0
        %2112 = vmatprep.mubr.bf16.mxu0 0
        %2113 = vmatmul.mubr.bf16.gmra.mxu0 %v2075
        %v2114 = vpop.f32.mrf.mxu0
        %v2115 = vadd.f32 0.0, %v2114
        %v2116 = vpop.f32.mrf.mxu0
        %v2117 = vpop.f32.mrf.mxu0
        %v2118 = vpop.f32.mrf.mxu0
        %2119 = vdwg.mxu0
        %v2120 = vpack.c.bf16 %v2115, %v2115
        %v2122 = vsel %vm1020, %v2120, 0
        %2124 = vmatprep.subr.bf16.mxu0 0
        %2125 = vmatpush1.bf16.msra.mxu0 0
        %2126 = vmatprep.subr.bf16.mxu0 0
        %2127 = vmatpush1.bf16.msra.mxu0 0
        %2128 = vmatprep.subr.bf16.mxu0 0
        %2129 = vmatpush1.bf16.msra.mxu0 0
        %2130 = vmatprep.subr.bf16.mxu0 0
        %2131 = vmatpush1.bf16.msra.mxu0 0
        %2132 = vmatprep.subr.bf16.mxu0 0
        %2133 = vmatpush1.bf16.msra.mxu0 0
        %2134 = vmatprep.subr.bf16.mxu0 0
        %2135 = vmatpush1.bf16.msra.mxu0 0
        %2136 = vmatprep.subr.bf16.mxu0 0
        %2137 = vmatpush1.bf16.msra.mxu0 %v1478
        %2138 = vmatprep.subr.bf16.mxu0 0
        %2139 = vmatpush1.bf16.msra.mxu0 %v1477
        %2140 = vmatprep.subr.bf16.mxu0 0
        %2141 = vmatpush2.bf16.msra.mxu0 0
        %2142 = vmatprep.subr.bf16.mxu0 0
        %2143 = vmatpush2.bf16.msra.mxu0 0
        %2144 = vmatprep.subr.bf16.mxu0 0
        %2145 = vmatpush2.bf16.msra.mxu0 0
        %2146 = vmatprep.subr.bf16.mxu0 0
        %2147 = vmatpush2.bf16.msra.mxu0 0
        %2148 = vmatprep.subr.bf16.mxu0 0
        %2149 = vmatpush2.bf16.msra.mxu0 0
        %2150 = vmatprep.subr.bf16.mxu0 0
        %2151 = vmatpush2.bf16.msra.mxu0 0
        %2152 = vmatprep.subr.bf16.mxu0 0
        %2153 = vmatpush2.bf16.msra.mxu0 0
        %2154 = vmatprep.subr.bf16.mxu0 0
        %2155 = vmatpush2.bf16.msra.mxu0 0
        %2156 = vmatprep.mubr.bf16.mxu0 0
        %2157 = vmatmul.mubr.bf16.gmra.mxu0 %v2122
        %v2158 = vpop.f32.mrf.mxu0
        %v2159 = vadd.f32 0.0, %v2158
        %v2160 = vpop.f32.mrf.mxu0
        %v2161 = vpop.f32.mrf.mxu0
        %v2162 = vpop.f32.mrf.mxu0
        %2163 = vdwg.mxu0
        %v2164 = vadd.f32 %v2003, %v2159
        %2165 = vrot.lane.b32.xlu0 %v1696, 32
        %v2166 = vpop.permute.xlu0 %2165
        %2167 = vrot.lane.b32.xlu0 %v1697, 32
        %v2168 = vpop.permute.xlu0 %2167
        %v2170 = vsel %vm1020, %v2166, 0
        %v2173 = vsel %vm1020, %v2168, 0
        %2175 = vmatprep.subr.bf16.mxu0 0
        %2176 = vmatpush1.bf16.xpose.msra.mxu0 0
        %2177 = vmatprep.subr.bf16.mxu0 0
        %2178 = vmatpush1.bf16.xpose.msra.mxu0 0
        %2179 = vmatprep.subr.bf16.mxu0 0
        %2180 = vmatpush1.bf16.xpose.msra.mxu0 0
        %2181 = vmatprep.subr.bf16.mxu0 0
        %2182 = vmatpush1.bf16.xpose.msra.mxu0 0
        %2183 = vmatprep.subr.bf16.mxu0 0
        %2184 = vmatpush1.bf16.xpose.msra.mxu0 0
        %2185 = vmatprep.subr.bf16.mxu0 0
        %2186 = vmatpush1.bf16.xpose.msra.mxu0 0
        %2187 = vmatprep.subr.bf16.mxu0 0
        %2188 = vmatpush1.bf16.xpose.msra.mxu0 0
        %2189 = vmatprep.subr.bf16.mxu0 0
        %2190 = vmatpush1.bf16.xpose.msra.mxu0 %v2173
        %2191 = vmatprep.subr.bf16.mxu0 0
        %2192 = vmatpush2.bf16.xpose.msra.mxu0 0
        %2193 = vmatprep.subr.bf16.mxu0 0
        %2194 = vmatpush2.bf16.xpose.msra.mxu0 0
        %2195 = vmatprep.subr.bf16.mxu0 0
        %2196 = vmatpush2.bf16.xpose.msra.mxu0 0
        %2197 = vmatprep.subr.bf16.mxu0 0
        %2198 = vmatpush2.bf16.xpose.msra.mxu0 0
        %2199 = vmatprep.subr.bf16.mxu0 0
        %2200 = vmatpush2.bf16.xpose.msra.mxu0 0
        %2201 = vmatprep.subr.bf16.mxu0 0
        %2202 = vmatpush2.bf16.xpose.msra.mxu0 0
        %2203 = vmatprep.subr.bf16.mxu0 0
        %2204 = vmatpush2.bf16.xpose.msra.mxu0 0
        %2205 = vmatprep.subr.bf16.mxu0 0
        %2206 = vmatpush2.bf16.xpose.msra.mxu0 0
        %2207 = vmatprep.mubr.bf16.mxu0 0
        %2208 = vmatmul.mubr.bf16.gmra.mxu0 %v2170
        %v2209 = vpop.f32.mrf.mxu0
        %v2210 = vadd.f32 0.0, %v2209
        %v2211 = vpop.f32.mrf.mxu0
        %v2212 = vpop.f32.mrf.mxu0
        %v2213 = vpop.f32.mrf.mxu0
        %2214 = vdwg.mxu0
        %v2215 = vmul.f32 %v2210, 0.17677669
        %v2216 = vadd.f32 %v2215, %v1695
        %v2217 = vsel %vm1069, %v2216, -inf
        %2218 = vmax.xlane.f32.xlu0 %v2217
        %v2219 = vpop.xlane.xlu0 %2218
        %v2220 = vsub.f32 %v2216, %v2219
        %v2221 = vmul.f32 %v2220, 1.442695
        %v2222 = vpow.pop %v2221
        %v2223 = vsel %vm1069, %v2222, 0.0
        %2224 = vadd.xlane.f32.xlu0 %v2223
        %v2225 = vpop.xlane.xlu0 %2224
        %v2226 = vrcp.pop %v2225
        %v2227 = vmul.f32 %v2222, %v2226
        %v2228 = vpack.c.bf16 %v2227, %v2227
        %2229 = vrot.lane.b32.xlu0 %v1698, 32
        %v2230 = vpop.permute.xlu0 %2229
        %v2232 = vsel %vm1069, %v2228, 0
        %v2235 = vsel %vm1085, %v2230, 0
        %2237 = vmatprep.subr.bf16.mxu0 0
        %2238 = vmatpush1.bf16.msra.mxu0 0
        %2239 = vmatprep.subr.bf16.mxu0 0
        %2240 = vmatpush1.bf16.msra.mxu0 0
        %2241 = vmatprep.subr.bf16.mxu0 0
        %2242 = vmatpush1.bf16.msra.mxu0 0
        %2243 = vmatprep.subr.bf16.mxu0 0
        %2244 = vmatpush1.bf16.msra.mxu0 0
        %2245 = vmatprep.subr.bf16.mxu0 0
        %2246 = vmatpush1.bf16.msra.mxu0 0
        %2247 = vmatprep.subr.bf16.mxu0 0
        %2248 = vmatpush1.bf16.msra.mxu0 0
        %2249 = vmatprep.subr.bf16.mxu0 0
        %2250 = vmatpush1.bf16.msra.mxu0 0
        %2251 = vmatprep.subr.bf16.mxu0 0
        %2252 = vmatpush1.bf16.msra.mxu0 %v2235
        %2253 = vmatprep.subr.bf16.mxu0 0
        %2254 = vmatpush2.bf16.msra.mxu0 0
        %2255 = vmatprep.subr.bf16.mxu0 0
        %2256 = vmatpush2.bf16.msra.mxu0 0
        %2257 = vmatprep.subr.bf16.mxu0 0
        %2258 = vmatpush2.bf16.msra.mxu0 0
        %2259 = vmatprep.subr.bf16.mxu0 0
        %2260 = vmatpush2.bf16.msra.mxu0 0
        %2261 = vmatprep.subr.bf16.mxu0 0
        %2262 = vmatpush2.bf16.msra.mxu0 0
        %2263 = vmatprep.subr.bf16.mxu0 0
        %2264 = vmatpush2.bf16.msra.mxu0 0
        %2265 = vmatprep.subr.bf16.mxu0 0
        %2266 = vmatpush2.bf16.msra.mxu0 0
        %2267 = vmatprep.subr.bf16.mxu0 0
        %2268 = vmatpush2.bf16.msra.mxu0 0
        %2269 = vmatprep.mubr.bf16.mxu0 0
        %2270 = vmatmul.mubr.bf16.gmra.mxu0 %v2232
        %v2271 = vpop.f32.mrf.mxu0
        %v2272 = vadd.f32 0.0, %v2271
        %v2273 = vpop.f32.mrf.mxu0
        %v2274 = vpop.f32.mrf.mxu0
        %v2275 = vpop.f32.mrf.mxu0
        %2276 = vdwg.mxu0
        %v2277 = vpack.c.bf16 %v2272, %v2272
        %v2279 = vsel %vm1020, %v2277, 0
        %2281 = vmatprep.subr.bf16.mxu0 0
        %2282 = vmatpush1.bf16.msra.mxu0 0
        %2283 = vmatprep.subr.bf16.mxu0 0
        %2284 = vmatpush1.bf16.msra.mxu0 0
        %2285 = vmatprep.subr.bf16.mxu0 0
        %2286 = vmatpush1.bf16.msra.mxu0 0
        %2287 = vmatprep.subr.bf16.mxu0 0
        %2288 = vmatpush1.bf16.msra.mxu0 0
        %2289 = vmatprep.subr.bf16.mxu0 0
        %2290 = vmatpush1.bf16.msra.mxu0 0
        %2291 = vmatprep.subr.bf16.mxu0 0
        %2292 = vmatpush1.bf16.msra.mxu0 0
        %2293 = vmatprep.subr.bf16.mxu0 0
        %2294 = vmatpush1.bf16.msra.mxu0 %v1647
        %2295 = vmatprep.subr.bf16.mxu0 0
        %2296 = vmatpush1.bf16.msra.mxu0 %v1646
        %2297 = vmatprep.subr.bf16.mxu0 0
        %2298 = vmatpush2.bf16.msra.mxu0 0
        %2299 = vmatprep.subr.bf16.mxu0 0
        %2300 = vmatpush2.bf16.msra.mxu0 0
        %2301 = vmatprep.subr.bf16.mxu0 0
        %2302 = vmatpush2.bf16.msra.mxu0 0
        %2303 = vmatprep.subr.bf16.mxu0 0
        %2304 = vmatpush2.bf16.msra.mxu0 0
        %2305 = vmatprep.subr.bf16.mxu0 0
        %2306 = vmatpush2.bf16.msra.mxu0 0
        %2307 = vmatprep.subr.bf16.mxu0 0
        %2308 = vmatpush2.bf16.msra.mxu0 0
        %2309 = vmatprep.subr.bf16.mxu0 0
        %2310 = vmatpush2.bf16.msra.mxu0 0
        %2311 = vmatprep.subr.bf16.mxu0 0
        %2312 = vmatpush2.bf16.msra.mxu0 0
        %2313 = vmatprep.mubr.bf16.mxu0 0
        %2314 = vmatmul.mubr.bf16.gmra.mxu0 %v2279
        %v2315 = vpop.f32.mrf.mxu0
        %v2316 = vadd.f32 0.0, %v2315
        %v2317 = vpop.f32.mrf.mxu0
        %v2318 = vpop.f32.mrf.mxu0
        %v2319 = vpop.f32.mrf.mxu0
        %2320 = vdwg.mxu0
        %v2321 = vadd.f32 %v2164, %v2316
        %v2322 = vld [vmem:[%s656] sm:$0x1]
        %v2324 = vlaneseq
        %v2325 = vshrl.u32 %v2324, 7
        %v2326 = vsub.s32 0, %v2325
        %v2327 = vrot.slane %v2322, %v2326
        %v2329 = vadd.f32 %v1693, %v2327
        %v2330 = vadd.f32 %v2321, %v2327
        %v2331 = vadd.f32 %v736, %v2329
        %v2332 = vadd.f32 %v737, %v2330
        %v2333 = vld [vmem:[%s659] sm:$0x1]
        %v2334 = vld [vmem:[%s662] sm:$0x1]
        %2335 = vadd.xlane.f32.xlu0 %v2331
        %v2336 = vpop.xlane.xlu0 %2335
        %2337 = vadd.xlane.f32.xlu0 %v2332
        %v2338 = vpop.xlane.xlu0 %2337
        %v2339 = vrcp.pop 128.0
        %v2340 = vmul.f32 %v2336, %v2339
        %v2341 = vmul.f32 %v2338, %v2339
        %v2342 = vsub.f32 %v2331, %v2340
        %v2343 = vsub.f32 %v2332, %v2341
        %v2344 = vmul.f32 %v2342, %v2342
        %v2345 = vmul.f32 %v2343, %v2343
        %2346 = vadd.xlane.f32.xlu0 %v2344
        %v2347 = vpop.xlane.xlu0 %2346
        %2348 = vadd.xlane.f32.xlu0 %v2345
        %v2349 = vpop.xlane.xlu0 %2348
        %v2350 = vmul.f32 %v2347, %v2339
        %v2351 = vmul.f32 %v2349, %v2339
        %v2352 = vadd.f32 %v2350, 1e-12
        %v2353 = vadd.f32 %v2351, 1e-12
        %v2354 = vrsqrt.pop %v2352
        %v2355 = vrsqrt.pop %v2353
        %v2356 = vmul.f32 %v2342, %v2354
        %v2357 = vmul.f32 %v2343, %v2355
        %v2359 = vlaneseq
        %v2360 = vshrl.u32 %v2359, 7
        %v2361 = vsub.s32 0, %v2360
        %v2362 = vrot.slane %v2333, %v2361
        %v2364 = vmul.f32 %v2356, %v2362
        %v2365 = vmul.f32 %v2357, %v2362
        %v2367 = vlaneseq
        %v2368 = vshrl.u32 %v2367, 7
        %v2369 = vsub.s32 0, %v2368
        %v2370 = vrot.slane %v2334, %v2369
        %v2372 = vadd.f32 %v2364, %v2370
        %v2373 = vadd.f32 %v2365, %v2370
        %v2374 = vpack.c.bf16 %v2373, %v2372
        %v2375 = vld [vmem:[%s667] sm:$0xff]
        %v2376 = vld [vmem:[%s667 + $0x8] sm:$0xff]
        %v2377 = vld [vmem:[%s667 + $0x10] sm:$0xff]
        %v2378 = vld [vmem:[%s667 + $0x18] sm:$0xff]
        %v2379 = vld [vmem:[%s667 + $0x20] sm:$0xff]
        %v2380 = vld [vmem:[%s667 + $0x28] sm:$0xff]
        %v2381 = vld [vmem:[%s667 + $0x30] sm:$0xff]
        %v2382 = vld [vmem:[%s667 + $0x38] sm:$0xff]
        %v2383 = vld [vmem:[%s667 + $0x40] sm:$0xff]
        %v2384 = vld [vmem:[%s667 + $0x48] sm:$0xff]
        %v2385 = vld [vmem:[%s667 + $0x50] sm:$0xff]
        %v2386 = vld [vmem:[%s667 + $0x58] sm:$0xff]
        %v2387 = vld [vmem:[%s667 + $0x60] sm:$0xff]
        %v2388 = vld [vmem:[%s667 + $0x68] sm:$0xff]
        %v2389 = vld [vmem:[%s667 + $0x70] sm:$0xff]
        %v2390 = vld [vmem:[%s667 + $0x78] sm:$0xff]
        %v2391 = vld [vmem:[%s671] sm:$0x3]
        %v2393 = vlaneseq
        %v2394 = vshrl.u32 %v2393, 7
        %v2395 = vsub.s32 0, %v2394
        %v2396 = vrot.slane %v2391, %v2395
        %v2397 = vlaneseq
        %v2398 = vshrl.u32 %v2397, 7
        %v2399 = vsub.s32 1, %v2398
        %v2400 = vrot.slane %v2391, %v2399
        %v2419 = vunpack.c.l.b16 %v2375
        %v2420 = vunpack.c.h.b16 %v2375
        %v2421 = vunpack.c.l.b16 %v2376
        %v2422 = vunpack.c.h.b16 %v2376
        %v2423 = vunpack.c.l.b16 %v2377
        %v2424 = vunpack.c.h.b16 %v2377
        %v2425 = vunpack.c.l.b16 %v2378
        %v2426 = vunpack.c.h.b16 %v2378
        %v2427 = vunpack.c.l.b16 %v2379
        %v2428 = vunpack.c.h.b16 %v2379
        %v2429 = vunpack.c.l.b16 %v2380
        %v2430 = vunpack.c.h.b16 %v2380
        %v2431 = vunpack.c.l.b16 %v2381
        %v2432 = vunpack.c.h.b16 %v2381
        %v2433 = vunpack.c.l.b16 %v2382
        %v2434 = vunpack.c.h.b16 %v2382
        %v2435 = vunpack.c.l.b16 %v2383
        %v2436 = vunpack.c.h.b16 %v2383
        %v2437 = vunpack.c.l.b16 %v2384
        %v2438 = vunpack.c.h.b16 %v2384
        %v2439 = vunpack.c.l.b16 %v2385
        %v2440 = vunpack.c.h.b16 %v2385
        %v2441 = vunpack.c.l.b16 %v2386
        %v2442 = vunpack.c.h.b16 %v2386
        %v2443 = vunpack.c.l.b16 %v2387
        %v2444 = vunpack.c.h.b16 %v2387
        %v2445 = vunpack.c.l.b16 %v2388
        %v2446 = vunpack.c.h.b16 %v2388
        %v2447 = vunpack.c.l.b16 %v2389
        %v2448 = vunpack.c.h.b16 %v2389
        %v2449 = vunpack.c.l.b16 %v2390
        %v2450 = vunpack.c.h.b16 %v2390
        %v2451 = vpack.c.b16 %v2421, %v2419
        %v2452 = vpack.c.b16 %v2422, %v2420
        %v2453 = vpack.c.b16 %v2425, %v2423
        %v2454 = vpack.c.b16 %v2426, %v2424
        %v2455 = vpack.c.b16 %v2429, %v2427
        %v2456 = vpack.c.b16 %v2430, %v2428
        %v2457 = vpack.c.b16 %v2433, %v2431
        %v2458 = vpack.c.b16 %v2434, %v2432
        %v2459 = vpack.c.b16 %v2437, %v2435
        %v2460 = vpack.c.b16 %v2438, %v2436
        %v2461 = vpack.c.b16 %v2441, %v2439
        %v2462 = vpack.c.b16 %v2442, %v2440
        %v2463 = vpack.c.b16 %v2445, %v2443
        %v2464 = vpack.c.b16 %v2446, %v2444
        %v2465 = vpack.c.b16 %v2449, %v2447
        %v2466 = vpack.c.b16 %v2450, %v2448
        %2483 = vmatprep.subr.bf16.mxu0 %v2466
        %2484 = vmatpush1.bf16.msra.mxu0 %v2465
        %2485 = vmatprep.subr.bf16.mxu0 %v2464
        %2486 = vmatpush1.bf16.msra.mxu0 %v2463
        %2487 = vmatprep.subr.bf16.mxu0 %v2462
        %2488 = vmatpush1.bf16.msra.mxu0 %v2461
        %2489 = vmatprep.subr.bf16.mxu0 %v2460
        %2490 = vmatpush1.bf16.msra.mxu0 %v2459
        %2491 = vmatprep.subr.bf16.mxu0 %v2458
        %2492 = vmatpush1.bf16.msra.mxu0 %v2457
        %2493 = vmatprep.subr.bf16.mxu0 %v2456
        %2494 = vmatpush1.bf16.msra.mxu0 %v2455
        %2495 = vmatprep.subr.bf16.mxu0 %v2454
        %2496 = vmatpush1.bf16.msra.mxu0 %v2453
        %2497 = vmatprep.subr.bf16.mxu0 %v2452
        %2498 = vmatpush1.bf16.msra.mxu0 %v2451
        %2499 = vmatprep.subr.bf16.mxu0 0
        %2500 = vmatpush2.bf16.msra.mxu0 0
        %2501 = vmatprep.subr.bf16.mxu0 0
        %2502 = vmatpush2.bf16.msra.mxu0 0
        %2503 = vmatprep.subr.bf16.mxu0 0
        %2504 = vmatpush2.bf16.msra.mxu0 0
        %2505 = vmatprep.subr.bf16.mxu0 0
        %2506 = vmatpush2.bf16.msra.mxu0 0
        %2507 = vmatprep.subr.bf16.mxu0 0
        %2508 = vmatpush2.bf16.msra.mxu0 0
        %2509 = vmatprep.subr.bf16.mxu0 0
        %2510 = vmatpush2.bf16.msra.mxu0 0
        %2511 = vmatprep.subr.bf16.mxu0 0
        %2512 = vmatpush2.bf16.msra.mxu0 0
        %2513 = vmatprep.subr.bf16.mxu0 0
        %2514 = vmatpush2.bf16.msra.mxu0 0
        %2515 = vmatprep.mubr.bf16.mxu0 0
        %2516 = vmatmul.mubr.bf16.gmra.mxu0 %v2374
        %v2517 = vpop.f32.mrf.mxu0
        %v2518 = vadd.f32 %v2396, %v2517
        %v2519 = vpop.f32.mrf.mxu0
        %v2520 = vadd.f32 %v2400, %v2519
        %v2521 = vpop.f32.mrf.mxu0
        %v2522 = vadd.f32 %v2396, %v2521
        %v2523 = vpop.f32.mrf.mxu0
        %v2524 = vadd.f32 %v2400, %v2523
        %2525 = vdwg.mxu0
        %v2526 = vmul.f32 %v2518, 0.5
        %v2527 = vmul.f32 %v2520, 0.5
        %v2528 = vmul.f32 %v2522, 0.5
        %v2529 = vmul.f32 %v2524, 0.5
        %v2530 = vmul.f32 %v2518, 0.044715
        %v2531 = vmul.f32 %v2520, 0.044715
        %v2532 = vmul.f32 %v2522, 0.044715
        %v2533 = vmul.f32 %v2524, 0.044715
        %v2534 = vmul.f32 %v2530, %v2518
        %v2535 = vmul.f32 %v2531, %v2520
        %v2536 = vmul.f32 %v2532, %v2522
        %v2537 = vmul.f32 %v2533, %v2524
        %v2538 = vmul.f32 %v2534, %v2518
        %v2539 = vmul.f32 %v2535, %v2520
        %v2540 = vmul.f32 %v2536, %v2522
        %v2541 = vmul.f32 %v2537, %v2524
        %v2542 = vadd.f32 %v2518, %v2538
        %v2543 = vadd.f32 %v2520, %v2539
        %v2544 = vadd.f32 %v2522, %v2540
        %v2545 = vadd.f32 %v2524, %v2541
        %v2546 = vmul.f32 %v2542, 0.7978846
        %v2547 = vmul.f32 %v2543, 0.7978846
        %v2548 = vmul.f32 %v2544, 0.7978846
        %v2549 = vmul.f32 %v2545, 0.7978846
        %v2550 = vtanh.pop %v2546
        %v2551 = vtanh.pop %v2547
        %v2552 = vtanh.pop %v2548
        %v2553 = vtanh.pop %v2549
        %v2554 = vadd.f32 %v2550, 1.0
        %v2555 = vadd.f32 %v2551, 1.0
        %v2556 = vadd.f32 %v2552, 1.0
        %v2557 = vadd.f32 %v2553, 1.0
        %v2558 = vmul.f32 %v2526, %v2554
        %v2559 = vmul.f32 %v2527, %v2555
        %v2560 = vmul.f32 %v2528, %v2556
        %v2561 = vmul.f32 %v2529, %v2557
        %v2562 = vpack.c.bf16 %v2560, %v2558
        %v2563 = vpack.c.bf16 %v2561, %v2559
        %v2564 = vld [vmem:[%s676] sm:$0xf]
        %v2565 = vld [vmem:[%s676 + $0x4] sm:$0xf]
        %v2566 = vld [vmem:[%s676 + $0x8] sm:$0xf]
        %v2567 = vld [vmem:[%s676 + $0xc] sm:$0xf]
        %v2568 = vld [vmem:[%s676 + $0x10] sm:$0xf]
        %v2569 = vld [vmem:[%s676 + $0x14] sm:$0xf]
        %v2570 = vld [vmem:[%s676 + $0x18] sm:$0xf]
        %v2571 = vld [vmem:[%s676 + $0x1c] sm:$0xf]
        %v2572 = vld [vmem:[%s676 + $0x20] sm:$0xf]
        %v2573 = vld [vmem:[%s676 + $0x24] sm:$0xf]
        %v2574 = vld [vmem:[%s676 + $0x28] sm:$0xf]
        %v2575 = vld [vmem:[%s676 + $0x2c] sm:$0xf]
        %v2576 = vld [vmem:[%s676 + $0x30] sm:$0xf]
        %v2577 = vld [vmem:[%s676 + $0x34] sm:$0xf]
        %v2578 = vld [vmem:[%s676 + $0x38] sm:$0xf]
        %v2579 = vld [vmem:[%s676 + $0x3c] sm:$0xf]
        %v2580 = vld [vmem:[%s676 + $0x40] sm:$0xf]
        %v2581 = vld [vmem:[%s676 + $0x44] sm:$0xf]
        %v2582 = vld [vmem:[%s676 + $0x48] sm:$0xf]
        %v2583 = vld [vmem:[%s676 + $0x4c] sm:$0xf]
        %v2584 = vld [vmem:[%s676 + $0x50] sm:$0xf]
        %v2585 = vld [vmem:[%s676 + $0x54] sm:$0xf]
        %v2586 = vld [vmem:[%s676 + $0x58] sm:$0xf]
        %v2587 = vld [vmem:[%s676 + $0x5c] sm:$0xf]
        %v2588 = vld [vmem:[%s676 + $0x60] sm:$0xf]
        %v2589 = vld [vmem:[%s676 + $0x64] sm:$0xf]
        %v2590 = vld [vmem:[%s676 + $0x68] sm:$0xf]
        %v2591 = vld [vmem:[%s676 + $0x6c] sm:$0xf]
        %v2592 = vld [vmem:[%s676 + $0x70] sm:$0xf]
        %v2593 = vld [vmem:[%s676 + $0x74] sm:$0xf]
        %v2594 = vld [vmem:[%s676 + $0x78] sm:$0xf]
        %v2595 = vld [vmem:[%s676 + $0x7c] sm:$0xf]
        %v2596 = vld [vmem:[%s679] sm:$0x1]
        %v2598 = vlaneseq
        %v2599 = vshrl.u32 %v2598, 7
        %v2600 = vsub.s32 0, %v2599
        %v2601 = vrot.slane %v2596, %v2600
        %v2635 = vunpack.c.l.b16 %v2564
        %v2636 = vunpack.c.l.b16 %v2565
        %v2637 = vunpack.c.l.b16 %v2566
        %v2638 = vunpack.c.l.b16 %v2567
        %v2639 = vunpack.c.l.b16 %v2568
        %v2640 = vunpack.c.l.b16 %v2569
        %v2641 = vunpack.c.l.b16 %v2570
        %v2642 = vunpack.c.l.b16 %v2571
        %v2643 = vunpack.c.l.b16 %v2572
        %v2644 = vunpack.c.l.b16 %v2573
        %v2645 = vunpack.c.l.b16 %v2574
        %v2646 = vunpack.c.l.b16 %v2575
        %v2647 = vunpack.c.l.b16 %v2576
        %v2648 = vunpack.c.l.b16 %v2577
        %v2649 = vunpack.c.l.b16 %v2578
        %v2650 = vunpack.c.l.b16 %v2579
        %v2651 = vunpack.c.l.b16 %v2580
        %v2652 = vunpack.c.l.b16 %v2581
        %v2653 = vunpack.c.l.b16 %v2582
        %v2654 = vunpack.c.l.b16 %v2583
        %v2655 = vunpack.c.l.b16 %v2584
        %v2656 = vunpack.c.l.b16 %v2585
        %v2657 = vunpack.c.l.b16 %v2586
        %v2658 = vunpack.c.l.b16 %v2587
        %v2659 = vunpack.c.l.b16 %v2588
        %v2660 = vunpack.c.l.b16 %v2589
        %v2661 = vunpack.c.l.b16 %v2590
        %v2662 = vunpack.c.l.b16 %v2591
        %v2663 = vunpack.c.l.b16 %v2592
        %v2664 = vunpack.c.l.b16 %v2593
        %v2665 = vunpack.c.l.b16 %v2594
        %v2666 = vunpack.c.l.b16 %v2595
        %v2667 = vpack.c.b16 %v2636, %v2635
        %v2668 = vpack.c.b16 %v2638, %v2637
        %v2669 = vpack.c.b16 %v2640, %v2639
        %v2670 = vpack.c.b16 %v2642, %v2641
        %v2671 = vpack.c.b16 %v2644, %v2643
        %v2672 = vpack.c.b16 %v2646, %v2645
        %v2673 = vpack.c.b16 %v2648, %v2647
        %v2674 = vpack.c.b16 %v2650, %v2649
        %v2675 = vpack.c.b16 %v2652, %v2651
        %v2676 = vpack.c.b16 %v2654, %v2653
        %v2677 = vpack.c.b16 %v2656, %v2655
        %v2678 = vpack.c.b16 %v2658, %v2657
        %v2679 = vpack.c.b16 %v2660, %v2659
        %v2680 = vpack.c.b16 %v2662, %v2661
        %v2681 = vpack.c.b16 %v2664, %v2663
        %v2682 = vpack.c.b16 %v2666, %v2665
        %2699 = vmatprep.subr.bf16.mxu0 0
        %2700 = vmatpush1.bf16.msra.mxu0 %v2674
        %2701 = vmatprep.subr.bf16.mxu0 0
        %2702 = vmatpush1.bf16.msra.mxu0 %v2673
        %2703 = vmatprep.subr.bf16.mxu0 0
        %2704 = vmatpush1.bf16.msra.mxu0 %v2672
        %2705 = vmatprep.subr.bf16.mxu0 0
        %2706 = vmatpush1.bf16.msra.mxu0 %v2671
        %2707 = vmatprep.subr.bf16.mxu0 0
        %2708 = vmatpush1.bf16.msra.mxu0 %v2670
        %2709 = vmatprep.subr.bf16.mxu0 0
        %2710 = vmatpush1.bf16.msra.mxu0 %v2669
        %2711 = vmatprep.subr.bf16.mxu0 0
        %2712 = vmatpush1.bf16.msra.mxu0 %v2668
        %2713 = vmatprep.subr.bf16.mxu0 0
        %2714 = vmatpush1.bf16.msra.mxu0 %v2667
        %2715 = vmatprep.subr.bf16.mxu0 0
        %2716 = vmatpush2.bf16.msra.mxu0 %v2682
        %2717 = vmatprep.subr.bf16.mxu0 0
        %2718 = vmatpush2.bf16.msra.mxu0 %v2681
        %2719 = vmatprep.subr.bf16.mxu0 0
        %2720 = vmatpush2.bf16.msra.mxu0 %v2680
        %2721 = vmatprep.subr.bf16.mxu0 0
        %2722 = vmatpush2.bf16.msra.mxu0 %v2679
        %2723 = vmatprep.subr.bf16.mxu0 0
        %2724 = vmatpush2.bf16.msra.mxu0 %v2678
        %2725 = vmatprep.subr.bf16.mxu0 0
        %2726 = vmatpush2.bf16.msra.mxu0 %v2677
        %2727 = vmatprep.subr.bf16.mxu0 0
        %2728 = vmatpush2.bf16.msra.mxu0 %v2676
        %2729 = vmatprep.subr.bf16.mxu0 0
        %2730 = vmatpush2.bf16.msra.mxu0 %v2675
        %2731 = vmatprep.mubr.bf16.mxu0 %v2563
        %2732 = vmatmul.mubr.bf16.gmra.mxu0 %v2562
        %v2733 = vpop.f32.mrf.mxu0
        %v2734 = vadd.f32 %v2601, %v2733
        %v2735 = vpop.f32.mrf.mxu0
        %v2736 = vpop.f32.mrf.mxu0
        %v2737 = vadd.f32 %v2601, %v2736
        %v2738 = vpop.f32.mrf.mxu0
        %2739 = vdwg.mxu0
        %v2740 = vadd.f32 %v2372, %v2734
        %v2741 = vadd.f32 %v2373, %v2737
        %v2742 = vld [vmem:[%s682] sm:$0x1]
        %v2743 = vld [vmem:[%s685] sm:$0x1]
        %2744 = vadd.xlane.f32.xlu0 %v2740
        %v2745 = vpop.xlane.xlu0 %2744
        %2746 = vadd.xlane.f32.xlu0 %v2741
        %v2747 = vpop.xlane.xlu0 %2746
        %v2748 = vmul.f32 %v2745, %v2339
        %v2749 = vmul.f32 %v2747, %v2339
        %v2750 = vsub.f32 %v2740, %v2748
        %v2751 = vsub.f32 %v2741, %v2749
        %v2752 = vmul.f32 %v2750, %v2750
        %v2753 = vmul.f32 %v2751, %v2751
        %2754 = vadd.xlane.f32.xlu0 %v2752
        %v2755 = vpop.xlane.xlu0 %2754
        %2756 = vadd.xlane.f32.xlu0 %v2753
        %v2757 = vpop.xlane.xlu0 %2756
        %v2758 = vmul.f32 %v2755, %v2339
        %v2759 = vmul.f32 %v2757, %v2339
        %v2760 = vadd.f32 %v2758, 1e-12
        %v2761 = vadd.f32 %v2759, 1e-12
        %v2762 = vrsqrt.pop %v2760
        %v2763 = vrsqrt.pop %v2761
        %v2764 = vmul.f32 %v2750, %v2762
        %v2765 = vmul.f32 %v2751, %v2763
        %v2767 = vlaneseq
        %v2768 = vshrl.u32 %v2767, 7
        %v2769 = vsub.s32 0, %v2768
        %v2770 = vrot.slane %v2742, %v2769
        %v2772 = vmul.f32 %v2764, %v2770
        %v2773 = vmul.f32 %v2765, %v2770
        %v2775 = vlaneseq
        %v2776 = vshrl.u32 %v2775, 7
        %v2777 = vsub.s32 0, %v2776
        %v2778 = vrot.slane %v2743, %v2777
        %v2780 = vadd.f32 %v2772, %v2778
        %v2781 = vadd.f32 %v2773, %v2778
        %2782 = vst [vmem:[#allocation2] sm:$0xff] %v2780
        %2783 = vst [vmem:[#allocation2 + $0x8] sm:$0xff] %v2781
        // Predicated region
        $region89: #{_bert_forward.1} parent=83 // pred_check
          %p2784 = pneg %p437
        $region90: #{_bert_forward.1} parent=83 // pred_check_branch
          %2786 = sbr.rel (%p2784) target = $region92
        $region91: #{_bert_forward.1} parent=83 // pred_region
          %s2788 = ssub.s32 256, 256
          %2789 = vsyncadd [#allocation3], %s2788
          %s2790 = sshll.u32 [#allocation2], 4
          %s2791 = int_to_ptr.vmem [resolvable:$true] %s2790
          %2796 = dma.vmem_to_hbm [thread:$0]  %s2791, 256, %s16, [#allocation3], 128, 128, 8
        $region92: #{_bert_forward.1} parent=83 // pred_fallthru
          _
        // Predicated region
        $region93: #{_bert_forward.1} parent=83 // pred_check
          %p2797 = pneg %p437
        $region94: #{_bert_forward.1} parent=83 // pred_check_branch
          %2799 = sbr.rel (%p2797) target = $region96
        $region95: #{_bert_forward.1} parent=83 // pred_region
          %2800 = dma.done [#allocation3], 256
        $region96: #{_bert_forward.1} parent=83 // pred_fallthru
          _
      $region84: #{_bert_forward.1} parent=5 // pred_fallthru
        _
      %p2801 = scmp.le.s32.totalorder 2, %s23
      // Predicated region
      $region97: #{_bert_forward.1} parent=5 // pred_check
        %p2802 = pneg %p2801
      $region98: #{_bert_forward.1} parent=5 // pred_check_branch
        %2804 = sbr.rel (%p2802) target = $region100
      $region99: #{_bert_forward.1} parent=5 // pred_region
        %s2805 = ssub.s32 %s23, 2
      $region100: #{_bert_forward.1} parent=5 // pred_fallthru
        _
    $region6: #{_bert_forward.1} parent=1 // loop_footer
      %s27 = sadd.s32 1, %s23
    $region7: #{_bert_forward.1} parent=1 // loop_footer_branch
      %22 = sbr.rel target = $region3
    $region8: #{_bert_forward.1} parent=1 // loop_exit
      _
    %2806 = vsyncpa [#allocation3], 1
    %s2807 = scalar_lea.sflag [#allocation3], 1
    %2808 = vsyncpa %s2807, 1

</llo_original>
